<compile_context>
chip_gen: v7x
topology: tpu7x:2x2x1
jax: 0.10.0
libtpu: 0.0.40
codegen_flags: <defaults>
</compile_context>

<pallas_src>
import numpy as np
import jax
import jax.numpy as jnp
from jax.experimental import pallas as pl
from jax.experimental.pallas import tpu as pltpu


# ---------------------------------------------------------------------------
# Bilinear x2 upsample coefficients (PyTorch align_corners=False semantics)
# ---------------------------------------------------------------------------
def bilinear_matrix(out_size, in_size):
    m = np.zeros((out_size, in_size), dtype=np.float32)
    scale = in_size / out_size
    for i in range(out_size):
        src = max((i + 0.5) * scale - 0.5, 0.0)
        i0 = min(int(np.floor(src)), in_size - 1)
        i1 = min(i0 + 1, in_size - 1)
        lam = src - i0
        m[i, i0] += 1.0 - lam
        m[i, i1] += lam
    return m


def phase_tap_vectors(in_size):
    # (2, 2, in_size): [output parity r, tap a, position p].
    # Tap a=0 is the center tap (reads p); a=1 is the neighbour (reads p-1 for
    # r=0, p+1 for r=1).  Out-of-range neighbours get weight 0, so they can be
    # satisfied by an (irrelevant, zeroed) halo read.  Edge clamping of the
    # exact align_corners=False matrix folds into the center tap.
    m = bilinear_matrix(2 * in_size, in_size)
    v = np.zeros((2, 2, in_size), np.float32)
    for r in range(2):
        d = -1 if r == 0 else 1
        for p in range(in_size):
            v[r, 0, p] = m[2 * p + r, p]
            pj = p + d
            if 0 <= pj < in_size:
                v[r, 1, p] = m[2 * p + r, pj]
    return v


# ---------------------------------------------------------------------------
# Fused Pallas kernel: DSConv+ReLU x2, 1x1+sigmoid, bilinear x2, x*y
# One grid step == one batch image.
# ---------------------------------------------------------------------------
def mcsa_kernel(u_ref, dw1_ref, db1_ref, pw1_ref, dw2_ref, db2_ref, pw2_ref,
                fcw_ref, fcb_ref, vh_ref, vw_ref, o_ref, pad_ref, pady_ref):
    # u_ref   : (1, H2, W2, C4)  pixel-unshuffled input (phase k at [kC:(k+1)C])
    # dw*_ref : (3, 3, C4)       depthwise 3x3 weights;  db*: (1, C4) bias
    # pw*_ref : (C4, C4)         pointwise weights (in, out), no bias
    # fcw_ref : (C4, C), fcb_ref: (1, C)
    # vh_ref  : (4, H2, 1, 1)    bilinear H tap vectors, index = 2*r + a
    # vw_ref  : (4, W2, 1)       bilinear W tap vectors, index = 2*s + b
    # o_ref   : (1, H2, W2, C4)  output, phase k on channel slice [kC:(k+1)C]
    # pad_ref : (1, H2+2, W2+2, C4) VMEM scratch (zero halo for the 3x3 convs)
    # pady_ref: (1, H2+2, W2+2, C)  VMEM scratch (halo for the upsample taps)
    _, H2, W2, C4 = u_ref.shape
    C = fcw_ref.shape[1]

    # Zero only the 1-element halo ring (interiors are always overwritten).
    # Done every grid step so correctness does not depend on which TensorCore
    # runs which slice of the "parallel" axis (scratch is per-core).
    def zero_ring(ref, ch):
        zr = jnp.zeros((1, 1, W2 + 2, ch), jnp.float32)
        zc = jnp.zeros((1, H2, 1, ch), jnp.float32)
        ref[0:1, 0:1, :, :] = zr
        ref[0:1, H2 + 1:H2 + 2, :, :] = zr
        ref[0:1, 1:H2 + 1, 0:1, :] = zc
        ref[0:1, 1:H2 + 1, W2 + 1:W2 + 2, :] = zc

    zero_ring(pad_ref, C4)
    zero_ring(pady_ref, C)

    def dsconv_relu(act, dw, db, pw_ref):
        # depthwise 3x3 (+bias) -> pointwise 1x1 (no bias) -> ReLU.
        pad_ref[0:1, 1:H2 + 1, 1:W2 + 1, :] = act
        acc = jnp.zeros((1, H2, W2, C4), jnp.float32)
        # TODO(synk): replace the kx shifts with pltpu.roll (XLU) + masked tap
        # weights on an H-halo-only scratch to avoid misaligned sublane slices.
        for ky in range(3):
            for kx in range(3):
                tap = pad_ref[0:1, ky:ky + H2, kx:kx + W2, :]
                acc = acc + tap * dw[ky, kx, :]
        acc = acc + db
        # Pixels folded into the matmul M dim; bf16 MXU operands, f32 accum.
        z = jnp.dot(acc.reshape(H2 * W2, C4).astype(jnp.bfloat16),
                    pw_ref[...].astype(jnp.bfloat16),
                    preferred_element_type=jnp.float32)
        return jnp.maximum(z, 0.0).reshape(1, H2, W2, C4)

    act = dsconv_relu(u_ref[...], dw1_ref[...], db1_ref[...], pw1_ref)
    act = dsconv_relu(act, dw2_ref[...], db2_ref[...], pw2_ref)

    # Final 1x1 conv (C4 -> C) + sigmoid (f32 EUP), bf16 MXU matmul.
    y = jnp.dot(act.reshape(H2 * W2, C4).astype(jnp.bfloat16),
                fcw_ref[...].astype(jnp.bfloat16),
                preferred_element_type=jnp.float32) + fcb_ref[...]
    y = jax.nn.sigmoid(y).reshape(1, H2, W2, C)

    # Bilinear x2 upsample decomposed into its 4 output phases using separable
    # per-row (vh) / per-column (vw) tap vectors.  Out-of-range taps have
    # coefficient 0, so the (zeroed) halo never contributes.
    pady_ref[0:1, 1:H2 + 1, 1:W2 + 1, :] = y
    vh = vh_ref[...]                       # (4, H2, 1, 1)
    vw = vw_ref[...]                       # (4, W2, 1)
    ups = []
    for k in range(4):                     # k = r + 2*s (r: H parity, s: W parity)
        r, s = k % 2, k // 2
        up = jnp.zeros((1, H2, W2, C), jnp.float32)
        for a in range(2):                 # H tap: center, then -1 (r=0) / +1 (r=1)
            dp = 0 if a == 0 else (-1 if r == 0 else 1)
            ch = vh[2 * r + a]             # (H2, 1, 1)
            for b in range(2):             # W tap: center, then -1 (s=0) / +1 (s=1)
                dq = 0 if b == 0 else (-1 if s == 0 else 1)
                cw = vw[2 * s + b]         # (W2, 1)
                tap = pady_ref[0:1, 1 + dp:1 + dp + H2, 1 + dq:1 + dq + W2, :]
                up = up + (ch * cw) * tap
        ups.append(up)
    # u holds exactly the 4 x-phases channel-concatenated, so the final x*y is
    # one lane-dense whole-block multiply + store.
    o_ref[...] = u_ref[...] * jnp.concatenate(ups, axis=-1)


# ---------------------------------------------------------------------------
# Wrapper
# ---------------------------------------------------------------------------
def mcsa_layer(x, params):
    N, H, W, C = x.shape
    H2, W2 = H // 2, W // 2
    C4 = 4 * C

    # Pixel-unshuffle; channel order matches torch.cat((x[...,::2,::2],
    # x[...,1::2,::2], x[...,::2,1::2], x[...,1::2,1::2]), dim=1):  k = r + 2*s.
    u = jnp.concatenate([x[:, ::2, ::2, :], x[:, 1::2, ::2, :],
                         x[:, ::2, 1::2, :], x[:, 1::2, 1::2, :]], axis=-1)

    vh = jnp.asarray(phase_tap_vectors(H2).reshape(4, H2, 1, 1))
    vw = jnp.asarray(phase_tap_vectors(W2).reshape(4, W2, 1))

    out_ph = pl.pallas_call(
        mcsa_kernel,
        out_shape=jax.ShapeDtypeStruct((N, H2, W2, C4), jnp.float32),
        grid_spec=pltpu.PrefetchScalarGridSpec(
            num_scalar_prefetch=0,
            grid=(N,),
            in_specs=[
                pl.BlockSpec((1, H2, W2, C4), lambda n: (n, 0, 0, 0)),
                pl.BlockSpec((3, 3, C4), lambda n: (0, 0, 0)),
                pl.BlockSpec((1, C4), lambda n: (0, 0)),
                pl.BlockSpec((C4, C4), lambda n: (0, 0)),
                pl.BlockSpec((3, 3, C4), lambda n: (0, 0, 0)),
                pl.BlockSpec((1, C4), lambda n: (0, 0)),
                pl.BlockSpec((C4, C4), lambda n: (0, 0)),
                pl.BlockSpec((C4, C), lambda n: (0, 0)),
                pl.BlockSpec((1, C), lambda n: (0, 0)),
                pl.BlockSpec((4, H2, 1, 1), lambda n: (0, 0, 0, 0)),
                pl.BlockSpec((4, W2, 1), lambda n: (0, 0, 0)),
            ],
            out_specs=pl.BlockSpec((1, H2, W2, C4), lambda n: (n, 0, 0, 0)),
            scratch_shapes=[
                pltpu.VMEM((1, H2 + 2, W2 + 2, C4), jnp.float32),
                pltpu.VMEM((1, H2 + 2, W2 + 2, C), jnp.float32),
            ],
        ),
        compiler_params=pltpu.CompilerParams(
            dimension_semantics=("parallel",),
            vmem_limit_bytes=64 * 1024 * 1024),
    )(u,
      params['dw_w1'], params['dw_b1'].reshape(1, C4), params['pw_w1'],
      params['dw_w2'], params['dw_b2'].reshape(1, C4), params['pw_w2'],
      params['fc_w'], params['fc_b'].reshape(1, C), vh, vw)

    # Re-interleave the channel-stacked phases back to (N, H, W, C):
    #   out_ph[n, p, q, (2s + r)*C + c]  ->  out[n, 2p + r, 2q + s, c]
    out6 = out_ph.reshape(N, H2, W2, 2, 2, C)            # (n, p, q, s, r, c)
    return jnp.transpose(out6, (0, 1, 4, 2, 3, 5)).reshape(N, H, W, C)


# ---------------------------------------------------------------------------
# Pure-JAX reference (lax.conv / einsum + dense bilinear matrix) for checking
# ---------------------------------------------------------------------------
def reference(x, p, up_mat):
    hp = jax.lax.Precision.HIGHEST
    u = jnp.concatenate(
        [x[:, ::2, ::2, :], x[:, 1::2, ::2, :],
         x[:, ::2, 1::2, :], x[:, 1::2, 1::2, :]], axis=-1)

    def dsconv(z, dw_w, dw_b, pw_w):
        C4 = z.shape[-1]
        k = dw_w.reshape(3, 3, 1, C4)
        z = jax.lax.conv_general_dilated(
            z, k, window_strides=(1, 1), padding=((1, 1), (1, 1)),
            dimension_numbers=('NHWC', 'HWIO', 'NHWC'),
            feature_group_count=C4, precision=hp)
        z = z + dw_b
        return jax.nn.relu(jnp.einsum('nhwc,cd->nhwd', z, pw_w, precision=hp))

    a = dsconv(u, p['dw_w1'], p['dw_b1'], p['pw_w1'])
    a = dsconv(a, p['dw_w2'], p['dw_b2'], p['pw_w2'])
    y = jax.nn.sigmoid(
        jnp.einsum('nhwc,cd->nhwd', a, p['fc_w'], precision=hp) + p['fc_b'])
    N, H2, W2, C = y.shape
    up = jnp.einsum('ij,njc->nic', up_mat, y.reshape(N, H2 * W2, C),
                    precision=hp)
    return x * up.reshape(N, 2 * H2, 2 * W2, C)


# ---------------------------------------------------------------------------
if __name__ == "__main__":
    num_feat = 8
    N, H, W = 2, 16, 16
    C = num_feat
    C4 = 4 * C

    key = jax.random.PRNGKey(0)
    ks = jax.random.split(key, 9)
    params = {
        'dw_w1': 0.2 * jax.random.normal(ks[0], (3, 3, C4), jnp.float32),
        'dw_b1': 0.1 * jax.random.normal(ks[1], (C4,), jnp.float32),
        'pw_w1': 0.2 * jax.random.normal(ks[2], (C4, C4), jnp.float32),
        'dw_w2': 0.2 * jax.random.normal(ks[3], (3, 3, C4), jnp.float32),
        'dw_b2': 0.1 * jax.random.normal(ks[4], (C4,), jnp.float32),
        'pw_w2': 0.2 * jax.random.normal(ks[5], (C4, C4), jnp.float32),
        'fc_w': 0.2 * jax.random.normal(ks[6], (C4, C), jnp.float32),
        'fc_b': 0.1 * jax.random.normal(ks[7], (C,), jnp.float32),
    }
    x = jax.random.normal(ks[8], (N, H, W, C), jnp.float32)

    mcsa = jax.jit(mcsa_layer)
    out = jax.block_until_ready(mcsa(x, params))

    # Reference uses the dense (H*W, H2*W2) align_corners=False matrix and f32
    # HIGHEST matmuls; the kernel uses bf16 MXU operands, hence the 2e-2 tol.
    up_mat = jnp.asarray(np.kron(bilinear_matrix(H, H // 2),
                                 bilinear_matrix(W, W // 2)))
    ref = jax.block_until_ready(reference(x, params, up_mat))

    assert out.shape == (N, H, W, C)
    max_err = float(jnp.max(jnp.abs(out - ref)))
    if max_err < 2e-2:
        print("KERNEL_OK")
    else:
        print(f"MISMATCH max_err={max_err}")
</pallas_src>

<mosaic_0001>
module attributes {stable_mosaic.version = 11 : i64} {
  func.func @mcsa_kernel(%arg0: i32, %arg1: memref<1x8x8x32xf32, #tpu.memory_space<vmem>>, %arg2: memref<3x3x32xf32, #tpu.memory_space<vmem>>, %arg3: memref<1x32xf32, #tpu.memory_space<vmem>>, %arg4: memref<32x32xf32, #tpu.memory_space<vmem>>, %arg5: memref<3x3x32xf32, #tpu.memory_space<vmem>>, %arg6: memref<1x32xf32, #tpu.memory_space<vmem>>, %arg7: memref<32x32xf32, #tpu.memory_space<vmem>>, %arg8: memref<32x8xf32, #tpu.memory_space<vmem>>, %arg9: memref<1x8xf32, #tpu.memory_space<vmem>>, %arg10: memref<4x8x1x1xf32, #tpu.memory_space<vmem>>, %arg11: memref<4x8x1xf32, #tpu.memory_space<vmem>>, %arg12: memref<1x8x8x32xf32, #tpu.memory_space<vmem>>, %arg13: memref<1x10x10x32xf32, #tpu.memory_space<vmem>>, %arg14: memref<1x10x10x8xf32, #tpu.memory_space<vmem>>) attributes {dimension_semantics = [#tpu.dimension_semantics<parallel>], iteration_bounds = array<i64: 2>, scalar_prefetch = 0 : i64, scratch_operands = 2 : i64, tpu.core_type = #tpu.core_type<tc>, window_params = [{transform_indices = @transform_0, window_bounds = array<i64: 1, 8, 8, 32>}, {pipeline_mode = #tpu.pipeline_mode<synchronous>, transform_indices = @transform_1, window_bounds = array<i64: 3, 3, 32>}, {pipeline_mode = #tpu.pipeline_mode<synchronous>, transform_indices = @transform_2, window_bounds = array<i64: 1, 32>}, {pipeline_mode = #tpu.pipeline_mode<synchronous>, transform_indices = @transform_3, window_bounds = array<i64: 32, 32>}, {pipeline_mode = #tpu.pipeline_mode<synchronous>, transform_indices = @transform_4, window_bounds = array<i64: 3, 3, 32>}, {pipeline_mode = #tpu.pipeline_mode<synchronous>, transform_indices = @transform_5, window_bounds = array<i64: 1, 32>}, {pipeline_mode = #tpu.pipeline_mode<synchronous>, transform_indices = @transform_6, window_bounds = array<i64: 32, 32>}, {pipeline_mode = #tpu.pipeline_mode<synchronous>, transform_indices = @transform_7, window_bounds = array<i64: 32, 8>}, {pipeline_mode = #tpu.pipeline_mode<synchronous>, transform_indices = @transform_8, window_bounds = array<i64: 1, 8>}, {pipeline_mode = #tpu.pipeline_mode<synchronous>, transform_indices = @transform_9, window_bounds = array<i64: 4, 8, 1, 1>}, {pipeline_mode = #tpu.pipeline_mode<synchronous>, transform_indices = @transform_10, window_bounds = array<i64: 4, 8, 1>}, {transform_indices = @transform_11, window_bounds = array<i64: 1, 8, 8, 32>}]} {
    %cst = arith.constant 0.000000e+00 : f32
    %0 = vector.broadcast %cst : f32 to vector<1x1x10x32xf32>
    %cst_0 = arith.constant 0.000000e+00 : f32
    %1 = vector.broadcast %cst_0 : f32 to vector<1x8x1x32xf32>
    %c0 = arith.constant 0 : index
    %c0_1 = arith.constant 0 : index
    %c0_2 = arith.constant 0 : index
    %c0_3 = arith.constant 0 : index
    %2 = vector.load %arg13[%c0, %c0_1, %c0_2, %c0_3] : memref<1x10x10x32xf32, #tpu.memory_space<vmem>>, vector<1x1x10x32xf32>
    tpu.vector_store %arg13[%c0, %c0_1, %c0_2, %c0_3], %0 {strides = array<i32>} : memref<1x10x10x32xf32, #tpu.memory_space<vmem>>, vector<1x1x10x32xf32>,
    %c0_4 = arith.constant 0 : index
    %c9 = arith.constant 9 : index
    %c0_5 = arith.constant 0 : index
    %c0_6 = arith.constant 0 : index
    %3 = vector.load %arg13[%c0_4, %c9, %c0_5, %c0_6] : memref<1x10x10x32xf32, #tpu.memory_space<vmem>>, vector<1x1x10x32xf32>
    tpu.vector_store %arg13[%c0_4, %c9, %c0_5, %c0_6], %0 {strides = array<i32>} : memref<1x10x10x32xf32, #tpu.memory_space<vmem>>, vector<1x1x10x32xf32>,
    %c0_7 = arith.constant 0 : index
    %c1 = arith.constant 1 : index
    %c0_8 = arith.constant 0 : index
    %c0_9 = arith.constant 0 : index
    %4 = vector.load %arg13[%c0_7, %c1, %c0_8, %c0_9] : memref<1x10x10x32xf32, #tpu.memory_space<vmem>>, vector<1x8x1x32xf32>
    tpu.vector_store %arg13[%c0_7, %c1, %c0_8, %c0_9], %1 {strides = array<i32>} : memref<1x10x10x32xf32, #tpu.memory_space<vmem>>, vector<1x8x1x32xf32>,
    %c0_10 = arith.constant 0 : index
    %c1_11 = arith.constant 1 : index
    %c9_12 = arith.constant 9 : index
    %c0_13 = arith.constant 0 : index
    %5 = vector.load %arg13[%c0_10, %c1_11, %c9_12, %c0_13] : memref<1x10x10x32xf32, #tpu.memory_space<vmem>>, vector<1x8x1x32xf32>
    tpu.vector_store %arg13[%c0_10, %c1_11, %c9_12, %c0_13], %1 {strides = array<i32>} : memref<1x10x10x32xf32, #tpu.memory_space<vmem>>, vector<1x8x1x32xf32>,
    %cst_14 = arith.constant 0.000000e+00 : f32
    %6 = vector.broadcast %cst_14 : f32 to vector<1x1x10x8xf32>
    %cst_15 = arith.constant 0.000000e+00 : f32
    %7 = vector.broadcast %cst_15 : f32 to vector<1x8x1x8xf32>
    %c0_16 = arith.constant 0 : index
    %c0_17 = arith.constant 0 : index
    %c0_18 = arith.constant 0 : index
    %c0_19 = arith.constant 0 : index
    %8 = vector.load %arg14[%c0_16, %c0_17, %c0_18, %c0_19] : memref<1x10x10x8xf32, #tpu.memory_space<vmem>>, vector<1x1x10x8xf32>
    tpu.vector_store %arg14[%c0_16, %c0_17, %c0_18, %c0_19], %6 {strides = array<i32>} : memref<1x10x10x8xf32, #tpu.memory_space<vmem>>, vector<1x1x10x8xf32>,
    %c0_20 = arith.constant 0 : index
    %c9_21 = arith.constant 9 : index
    %c0_22 = arith.constant 0 : index
    %c0_23 = arith.constant 0 : index
    %9 = vector.load %arg14[%c0_20, %c9_21, %c0_22, %c0_23] : memref<1x10x10x8xf32, #tpu.memory_space<vmem>>, vector<1x1x10x8xf32>
    tpu.vector_store %arg14[%c0_20, %c9_21, %c0_22, %c0_23], %6 {strides = array<i32>} : memref<1x10x10x8xf32, #tpu.memory_space<vmem>>, vector<1x1x10x8xf32>,
    %c0_24 = arith.constant 0 : index
    %c1_25 = arith.constant 1 : index
    %c0_26 = arith.constant 0 : index
    %c0_27 = arith.constant 0 : index
    %10 = vector.load %arg14[%c0_24, %c1_25, %c0_26, %c0_27] : memref<1x10x10x8xf32, #tpu.memory_space<vmem>>, vector<1x8x1x8xf32>
    tpu.vector_store %arg14[%c0_24, %c1_25, %c0_26, %c0_27], %7 {strides = array<i32>} : memref<1x10x10x8xf32, #tpu.memory_space<vmem>>, vector<1x8x1x8xf32>,
    %c0_28 = arith.constant 0 : index
    %c1_29 = arith.constant 1 : index
    %c9_30 = arith.constant 9 : index
    %c0_31 = arith.constant 0 : index
    %11 = vector.load %arg14[%c0_28, %c1_29, %c9_30, %c0_31] : memref<1x10x10x8xf32, #tpu.memory_space<vmem>>, vector<1x8x1x8xf32>
    tpu.vector_store %arg14[%c0_28, %c1_29, %c9_30, %c0_31], %7 {strides = array<i32>} : memref<1x10x10x8xf32, #tpu.memory_space<vmem>>, vector<1x8x1x8xf32>,
    %c0_32 = arith.constant 0 : index
    %c0_33 = arith.constant 0 : index
    %c0_34 = arith.constant 0 : index
    %c0_35 = arith.constant 0 : index
    %12 = vector.load %arg1[%c0_32, %c0_33, %c0_34, %c0_35] : memref<1x8x8x32xf32, #tpu.memory_space<vmem>>, vector<1x8x8x32xf32>
    %c0_36 = arith.constant 0 : index
    %c0_37 = arith.constant 0 : index
    %c0_38 = arith.constant 0 : index
    %13 = vector.load %arg2[%c0_36, %c0_37, %c0_38] : memref<3x3x32xf32, #tpu.memory_space<vmem>>, vector<3x3x32xf32>
    %c0_39 = arith.constant 0 : index
    %c0_40 = arith.constant 0 : index
    %14 = vector.load %arg3[%c0_39, %c0_40] : memref<1x32xf32, #tpu.memory_space<vmem>>, vector<1x32xf32>
    %c0_41 = arith.constant 0 : index
    %c1_42 = arith.constant 1 : index
    %c1_43 = arith.constant 1 : index
    %c0_44 = arith.constant 0 : index
    %15 = vector.load %arg13[%c0_41, %c1_42, %c1_43, %c0_44] : memref<1x10x10x32xf32, #tpu.memory_space<vmem>>, vector<1x8x8x32xf32>
    tpu.vector_store %arg13[%c0_41, %c1_42, %c1_43, %c0_44], %12 {strides = array<i32>} : memref<1x10x10x32xf32, #tpu.memory_space<vmem>>, vector<1x8x8x32xf32>,
    %cst_45 = arith.constant 0.000000e+00 : f32
    %16 = vector.broadcast %cst_45 : f32 to vector<1x8x8x32xf32>
    %c0_46 = arith.constant 0 : index
    %c0_47 = arith.constant 0 : index
    %c0_48 = arith.constant 0 : index
    %c0_49 = arith.constant 0 : index
    %17 = vector.load %arg13[%c0_46, %c0_47, %c0_48, %c0_49] : memref<1x10x10x32xf32, #tpu.memory_space<vmem>>, vector<1x8x8x32xf32>
    %18 = vector.extract_strided_slice %13 {offsets = [0, 0, 0], sizes = [1, 1, 32], strides = [1, 1, 1]} : vector<3x3x32xf32> to vector<1x1x32xf32>
    %19 = vector.shape_cast %18 : vector<1x1x32xf32> to vector<32xf32>
    %20 = vector.shape_cast %19 : vector<32xf32> to vector<1x1x1x32xf32>
    %21 = vector.broadcast %20 : vector<1x1x1x32xf32> to vector<1x8x8x32xf32>
    %22 = arith.mulf %17, %21 : vector<1x8x8x32xf32>
    %23 = arith.addf %16, %22 : vector<1x8x8x32xf32>
    %c0_50 = arith.constant 0 : index
    %c0_51 = arith.constant 0 : index
    %c1_52 = arith.constant 1 : index
    %c0_53 = arith.constant 0 : index
    %24 = vector.load %arg13[%c0_50, %c0_51, %c1_52, %c0_53] : memref<1x10x10x32xf32, #tpu.memory_space<vmem>>, vector<1x8x8x32xf32>
    %25 = vector.extract_strided_slice %13 {offsets = [0, 1, 0], sizes = [1, 1, 32], strides = [1, 1, 1]} : vector<3x3x32xf32> to vector<1x1x32xf32>
    %26 = vector.shape_cast %25 : vector<1x1x32xf32> to vector<32xf32>
    %27 = vector.shape_cast %26 : vector<32xf32> to vector<1x1x1x32xf32>
    %28 = vector.broadcast %27 : vector<1x1x1x32xf32> to vector<1x8x8x32xf32>
    %29 = arith.mulf %24, %28 : vector<1x8x8x32xf32>
    %30 = arith.addf %23, %29 : vector<1x8x8x32xf32>
    %c0_54 = arith.constant 0 : index
    %c0_55 = arith.constant 0 : index
    %c2 = arith.constant 2 : index
    %c0_56 = arith.constant 0 : index
    %31 = vector.load %arg13[%c0_54, %c0_55, %c2, %c0_56] : memref<1x10x10x32xf32, #tpu.memory_space<vmem>>, vector<1x8x8x32xf32>
    %32 = vector.extract_strided_slice %13 {offsets = [0, 2, 0], sizes = [1, 1, 32], strides = [1, 1, 1]} : vector<3x3x32xf32> to vector<1x1x32xf32>
    %33 = vector.shape_cast %32 : vector<1x1x32xf32> to vector<32xf32>
    %34 = vector.shape_cast %33 : vector<32xf32> to vector<1x1x1x32xf32>
    %35 = vector.broadcast %34 : vector<1x1x1x32xf32> to vector<1x8x8x32xf32>
    %36 = arith.mulf %31, %35 : vector<1x8x8x32xf32>
    %37 = arith.addf %30, %36 : vector<1x8x8x32xf32>
    %c0_57 = arith.constant 0 : index
    %c1_58 = arith.constant 1 : index
    %c0_59 = arith.constant 0 : index
    %c0_60 = arith.constant 0 : index
    %38 = vector.load %arg13[%c0_57, %c1_58, %c0_59, %c0_60] : memref<1x10x10x32xf32, #tpu.memory_space<vmem>>, vector<1x8x8x32xf32>
    %39 = vector.extract_strided_slice %13 {offsets = [1, 0, 0], sizes = [1, 1, 32], strides = [1, 1, 1]} : vector<3x3x32xf32> to vector<1x1x32xf32>
    %40 = vector.shape_cast %39 : vector<1x1x32xf32> to vector<32xf32>
    %41 = vector.shape_cast %40 : vector<32xf32> to vector<1x1x1x32xf32>
    %42 = vector.broadcast %41 : vector<1x1x1x32xf32> to vector<1x8x8x32xf32>
    %43 = arith.mulf %38, %42 : vector<1x8x8x32xf32>
    %44 = arith.addf %37, %43 : vector<1x8x8x32xf32>
    %c0_61 = arith.constant 0 : index
    %c1_62 = arith.constant 1 : index
    %c1_63 = arith.constant 1 : index
    %c0_64 = arith.constant 0 : index
    %45 = vector.load %arg13[%c0_61, %c1_62, %c1_63, %c0_64] : memref<1x10x10x32xf32, #tpu.memory_space<vmem>>, vector<1x8x8x32xf32>
    %46 = vector.extract_strided_slice %13 {offsets = [1, 1, 0], sizes = [1, 1, 32], strides = [1, 1, 1]} : vector<3x3x32xf32> to vector<1x1x32xf32>
    %47 = vector.shape_cast %46 : vector<1x1x32xf32> to vector<32xf32>
    %48 = vector.shape_cast %47 : vector<32xf32> to vector<1x1x1x32xf32>
    %49 = vector.broadcast %48 : vector<1x1x1x32xf32> to vector<1x8x8x32xf32>
    %50 = arith.mulf %45, %49 : vector<1x8x8x32xf32>
    %51 = arith.addf %44, %50 : vector<1x8x8x32xf32>
    %c0_65 = arith.constant 0 : index
    %c1_66 = arith.constant 1 : index
    %c2_67 = arith.constant 2 : index
    %c0_68 = arith.constant 0 : index
    %52 = vector.load %arg13[%c0_65, %c1_66, %c2_67, %c0_68] : memref<1x10x10x32xf32, #tpu.memory_space<vmem>>, vector<1x8x8x32xf32>
    %53 = vector.extract_strided_slice %13 {offsets = [1, 2, 0], sizes = [1, 1, 32], strides = [1, 1, 1]} : vector<3x3x32xf32> to vector<1x1x32xf32>
    %54 = vector.shape_cast %53 : vector<1x1x32xf32> to vector<32xf32>
    %55 = vector.shape_cast %54 : vector<32xf32> to vector<1x1x1x32xf32>
    %56 = vector.broadcast %55 : vector<1x1x1x32xf32> to vector<1x8x8x32xf32>
    %57 = arith.mulf %52, %56 : vector<1x8x8x32xf32>
    %58 = arith.addf %51, %57 : vector<1x8x8x32xf32>
    %c0_69 = arith.constant 0 : index
    %c2_70 = arith.constant 2 : index
    %c0_71 = arith.constant 0 : index
    %c0_72 = arith.constant 0 : index
    %59 = vector.load %arg13[%c0_69, %c2_70, %c0_71, %c0_72] : memref<1x10x10x32xf32, #tpu.memory_space<vmem>>, vector<1x8x8x32xf32>
    %60 = vector.extract_strided_slice %13 {offsets = [2, 0, 0], sizes = [1, 1, 32], strides = [1, 1, 1]} : vector<3x3x32xf32> to vector<1x1x32xf32>
    %61 = vector.shape_cast %60 : vector<1x1x32xf32> to vector<32xf32>
    %62 = vector.shape_cast %61 : vector<32xf32> to vector<1x1x1x32xf32>
    %63 = vector.broadcast %62 : vector<1x1x1x32xf32> to vector<1x8x8x32xf32>
    %64 = arith.mulf %59, %63 : vector<1x8x8x32xf32>
    %65 = arith.addf %58, %64 : vector<1x8x8x32xf32>
    %c0_73 = arith.constant 0 : index
    %c2_74 = arith.constant 2 : index
    %c1_75 = arith.constant 1 : index
    %c0_76 = arith.constant 0 : index
    %66 = vector.load %arg13[%c0_73, %c2_74, %c1_75, %c0_76] : memref<1x10x10x32xf32, #tpu.memory_space<vmem>>, vector<1x8x8x32xf32>
    %67 = vector.extract_strided_slice %13 {offsets = [2, 1, 0], sizes = [1, 1, 32], strides = [1, 1, 1]} : vector<3x3x32xf32> to vector<1x1x32xf32>
    %68 = vector.shape_cast %67 : vector<1x1x32xf32> to vector<32xf32>
    %69 = vector.shape_cast %68 : vector<32xf32> to vector<1x1x1x32xf32>
    %70 = vector.broadcast %69 : vector<1x1x1x32xf32> to vector<1x8x8x32xf32>
    %71 = arith.mulf %66, %70 : vector<1x8x8x32xf32>
    %72 = arith.addf %65, %71 : vector<1x8x8x32xf32>
    %c0_77 = arith.constant 0 : index
    %c2_78 = arith.constant 2 : index
    %c2_79 = arith.constant 2 : index
    %c0_80 = arith.constant 0 : index
    %73 = vector.load %arg13[%c0_77, %c2_78, %c2_79, %c0_80] : memref<1x10x10x32xf32, #tpu.memory_space<vmem>>, vector<1x8x8x32xf32>
    %74 = vector.extract_strided_slice %13 {offsets = [2, 2, 0], sizes = [1, 1, 32], strides = [1, 1, 1]} : vector<3x3x32xf32> to vector<1x1x32xf32>
    %75 = vector.shape_cast %74 : vector<1x1x32xf32> to vector<32xf32>
    %76 = vector.shape_cast %75 : vector<32xf32> to vector<1x1x1x32xf32>
    %77 = vector.broadcast %76 : vector<1x1x1x32xf32> to vector<1x8x8x32xf32>
    %78 = arith.mulf %73, %77 : vector<1x8x8x32xf32>
    %79 = arith.addf %72, %78 : vector<1x8x8x32xf32>
    %80 = vector.shape_cast %14 : vector<1x32xf32> to vector<1x1x1x32xf32>
    %81 = vector.broadcast %80 : vector<1x1x1x32xf32> to vector<1x8x8x32xf32>
    %82 = arith.addf %79, %81 : vector<1x8x8x32xf32>
    %83 = vector.shape_cast %82 : vector<1x8x8x32xf32> to vector<64x32xf32>
    %84 = arith.truncf %83 : vector<64x32xf32> to vector<64x32xbf16>
    %c0_81 = arith.constant 0 : index
    %c0_82 = arith.constant 0 : index
    %85 = vector.load %arg4[%c0_81, %c0_82] : memref<32x32xf32, #tpu.memory_space<vmem>>, vector<32x32xf32>
    %86 = arith.truncf %85 : vector<32x32xf32> to vector<32x32xbf16>
    %cst_83 = arith.constant dense<0.000000e+00> : vector<64x32xf32>
    %87 = tpu.matmul %84, %86, %cst_83 {dimension_numbers = #tpu.dot_dimension_numbers<[1], [0], [0], [1], [0, 0, 1, 1], [], []>} : vector<64x32xbf16>, vector<32x32xbf16>, vector<64x32xf32> -> vector<64x32xf32>
    %cst_84 = arith.constant 0.000000e+00 : f32
    %88 = vector.broadcast %cst_84 : f32 to vector<64x32xf32>
    %89 = arith.maximumf %87, %88 : vector<64x32xf32>
    %90 = vector.shape_cast %89 : vector<64x32xf32> to vector<1x8x8x32xf32>
    %c0_85 = arith.constant 0 : index
    %c0_86 = arith.constant 0 : index
    %c0_87 = arith.constant 0 : index
    %91 = vector.load %arg5[%c0_85, %c0_86, %c0_87] : memref<3x3x32xf32, #tpu.memory_space<vmem>>, vector<3x3x32xf32>
    %c0_88 = arith.constant 0 : index
    %c0_89 = arith.constant 0 : index
    %92 = vector.load %arg6[%c0_88, %c0_89] : memref<1x32xf32, #tpu.memory_space<vmem>>, vector<1x32xf32>
    %c0_90 = arith.constant 0 : index
    %c1_91 = arith.constant 1 : index
    %c1_92 = arith.constant 1 : index
    %c0_93 = arith.constant 0 : index
    %93 = vector.load %arg13[%c0_90, %c1_91, %c1_92, %c0_93] : memref<1x10x10x32xf32, #tpu.memory_space<vmem>>, vector<1x8x8x32xf32>
    tpu.vector_store %arg13[%c0_90, %c1_91, %c1_92, %c0_93], %90 {strides = array<i32>} : memref<1x10x10x32xf32, #tpu.memory_space<vmem>>, vector<1x8x8x32xf32>,
    %cst_94 = arith.constant 0.000000e+00 : f32
    %94 = vector.broadcast %cst_94 : f32 to vector<1x8x8x32xf32>
    %c0_95 = arith.constant 0 : index
    %c0_96 = arith.constant 0 : index
    %c0_97 = arith.constant 0 : index
    %c0_98 = arith.constant 0 : index
    %95 = vector.load %arg13[%c0_95, %c0_96, %c0_97, %c0_98] : memref<1x10x10x32xf32, #tpu.memory_space<vmem>>, vector<1x8x8x32xf32>
    %96 = vector.extract_strided_slice %91 {offsets = [0, 0, 0], sizes = [1, 1, 32], strides = [1, 1, 1]} : vector<3x3x32xf32> to vector<1x1x32xf32>
    %97 = vector.shape_cast %96 : vector<1x1x32xf32> to vector<32xf32>
    %98 = vector.shape_cast %97 : vector<32xf32> to vector<1x1x1x32xf32>
    %99 = vector.broadcast %98 : vector<1x1x1x32xf32> to vector<1x8x8x32xf32>
    %100 = arith.mulf %95, %99 : vector<1x8x8x32xf32>
    %101 = arith.addf %94, %100 : vector<1x8x8x32xf32>
    %c0_99 = arith.constant 0 : index
    %c0_100 = arith.constant 0 : index
    %c1_101 = arith.constant 1 : index
    %c0_102 = arith.constant 0 : index
    %102 = vector.load %arg13[%c0_99, %c0_100, %c1_101, %c0_102] : memref<1x10x10x32xf32, #tpu.memory_space<vmem>>, vector<1x8x8x32xf32>
    %103 = vector.extract_strided_slice %91 {offsets = [0, 1, 0], sizes = [1, 1, 32], strides = [1, 1, 1]} : vector<3x3x32xf32> to vector<1x1x32xf32>
    %104 = vector.shape_cast %103 : vector<1x1x32xf32> to vector<32xf32>
    %105 = vector.shape_cast %104 : vector<32xf32> to vector<1x1x1x32xf32>
    %106 = vector.broadcast %105 : vector<1x1x1x32xf32> to vector<1x8x8x32xf32>
    %107 = arith.mulf %102, %106 : vector<1x8x8x32xf32>
    %108 = arith.addf %101, %107 : vector<1x8x8x32xf32>
    %c0_103 = arith.constant 0 : index
    %c0_104 = arith.constant 0 : index
    %c2_105 = arith.constant 2 : index
    %c0_106 = arith.constant 0 : index
    %109 = vector.load %arg13[%c0_103, %c0_104, %c2_105, %c0_106] : memref<1x10x10x32xf32, #tpu.memory_space<vmem>>, vector<1x8x8x32xf32>
    %110 = vector.extract_strided_slice %91 {offsets = [0, 2, 0], sizes = [1, 1, 32], strides = [1, 1, 1]} : vector<3x3x32xf32> to vector<1x1x32xf32>
    %111 = vector.shape_cast %110 : vector<1x1x32xf32> to vector<32xf32>
    %112 = vector.shape_cast %111 : vector<32xf32> to vector<1x1x1x32xf32>
    %113 = vector.broadcast %112 : vector<1x1x1x32xf32> to vector<1x8x8x32xf32>
    %114 = arith.mulf %109, %113 : vector<1x8x8x32xf32>
    %115 = arith.addf %108, %114 : vector<1x8x8x32xf32>
    %c0_107 = arith.constant 0 : index
    %c1_108 = arith.constant 1 : index
    %c0_109 = arith.constant 0 : index
    %c0_110 = arith.constant 0 : index
    %116 = vector.load %arg13[%c0_107, %c1_108, %c0_109, %c0_110] : memref<1x10x10x32xf32, #tpu.memory_space<vmem>>, vector<1x8x8x32xf32>
    %117 = vector.extract_strided_slice %91 {offsets = [1, 0, 0], sizes = [1, 1, 32], strides = [1, 1, 1]} : vector<3x3x32xf32> to vector<1x1x32xf32>
    %118 = vector.shape_cast %117 : vector<1x1x32xf32> to vector<32xf32>
    %119 = vector.shape_cast %118 : vector<32xf32> to vector<1x1x1x32xf32>
    %120 = vector.broadcast %119 : vector<1x1x1x32xf32> to vector<1x8x8x32xf32>
    %121 = arith.mulf %116, %120 : vector<1x8x8x32xf32>
    %122 = arith.addf %115, %121 : vector<1x8x8x32xf32>
    %c0_111 = arith.constant 0 : index
    %c1_112 = arith.constant 1 : index
    %c1_113 = arith.constant 1 : index
    %c0_114 = arith.constant 0 : index
    %123 = vector.load %arg13[%c0_111, %c1_112, %c1_113, %c0_114] : memref<1x10x10x32xf32, #tpu.memory_space<vmem>>, vector<1x8x8x32xf32>
    %124 = vector.extract_strided_slice %91 {offsets = [1, 1, 0], sizes = [1, 1, 32], strides = [1, 1, 1]} : vector<3x3x32xf32> to vector<1x1x32xf32>
    %125 = vector.shape_cast %124 : vector<1x1x32xf32> to vector<32xf32>
    %126 = vector.shape_cast %125 : vector<32xf32> to vector<1x1x1x32xf32>
    %127 = vector.broadcast %126 : vector<1x1x1x32xf32> to vector<1x8x8x32xf32>
    %128 = arith.mulf %123, %127 : vector<1x8x8x32xf32>
    %129 = arith.addf %122, %128 : vector<1x8x8x32xf32>
    %c0_115 = arith.constant 0 : index
    %c1_116 = arith.constant 1 : index
    %c2_117 = arith.constant 2 : index
    %c0_118 = arith.constant 0 : index
    %130 = vector.load %arg13[%c0_115, %c1_116, %c2_117, %c0_118] : memref<1x10x10x32xf32, #tpu.memory_space<vmem>>, vector<1x8x8x32xf32>
    %131 = vector.extract_strided_slice %91 {offsets = [1, 2, 0], sizes = [1, 1, 32], strides = [1, 1, 1]} : vector<3x3x32xf32> to vector<1x1x32xf32>
    %132 = vector.shape_cast %131 : vector<1x1x32xf32> to vector<32xf32>
    %133 = vector.shape_cast %132 : vector<32xf32> to vector<1x1x1x32xf32>
    %134 = vector.broadcast %133 : vector<1x1x1x32xf32> to vector<1x8x8x32xf32>
    %135 = arith.mulf %130, %134 : vector<1x8x8x32xf32>
    %136 = arith.addf %129, %135 : vector<1x8x8x32xf32>
    %c0_119 = arith.constant 0 : index
    %c2_120 = arith.constant 2 : index
    %c0_121 = arith.constant 0 : index
    %c0_122 = arith.constant 0 : index
    %137 = vector.load %arg13[%c0_119, %c2_120, %c0_121, %c0_122] : memref<1x10x10x32xf32, #tpu.memory_space<vmem>>, vector<1x8x8x32xf32>
    %138 = vector.extract_strided_slice %91 {offsets = [2, 0, 0], sizes = [1, 1, 32], strides = [1, 1, 1]} : vector<3x3x32xf32> to vector<1x1x32xf32>
    %139 = vector.shape_cast %138 : vector<1x1x32xf32> to vector<32xf32>
    %140 = vector.shape_cast %139 : vector<32xf32> to vector<1x1x1x32xf32>
    %141 = vector.broadcast %140 : vector<1x1x1x32xf32> to vector<1x8x8x32xf32>
    %142 = arith.mulf %137, %141 : vector<1x8x8x32xf32>
    %143 = arith.addf %136, %142 : vector<1x8x8x32xf32>
    %c0_123 = arith.constant 0 : index
    %c2_124 = arith.constant 2 : index
    %c1_125 = arith.constant 1 : index
    %c0_126 = arith.constant 0 : index
    %144 = vector.load %arg13[%c0_123, %c2_124, %c1_125, %c0_126] : memref<1x10x10x32xf32, #tpu.memory_space<vmem>>, vector<1x8x8x32xf32>
    %145 = vector.extract_strided_slice %91 {offsets = [2, 1, 0], sizes = [1, 1, 32], strides = [1, 1, 1]} : vector<3x3x32xf32> to vector<1x1x32xf32>
    %146 = vector.shape_cast %145 : vector<1x1x32xf32> to vector<32xf32>
    %147 = vector.shape_cast %146 : vector<32xf32> to vector<1x1x1x32xf32>
    %148 = vector.broadcast %147 : vector<1x1x1x32xf32> to vector<1x8x8x32xf32>
    %149 = arith.mulf %144, %148 : vector<1x8x8x32xf32>
    %150 = arith.addf %143, %149 : vector<1x8x8x32xf32>
    %c0_127 = arith.constant 0 : index
    %c2_128 = arith.constant 2 : index
    %c2_129 = arith.constant 2 : index
    %c0_130 = arith.constant 0 : index
    %151 = vector.load %arg13[%c0_127, %c2_128, %c2_129, %c0_130] : memref<1x10x10x32xf32, #tpu.memory_space<vmem>>, vector<1x8x8x32xf32>
    %152 = vector.extract_strided_slice %91 {offsets = [2, 2, 0], sizes = [1, 1, 32], strides = [1, 1, 1]} : vector<3x3x32xf32> to vector<1x1x32xf32>
    %153 = vector.shape_cast %152 : vector<1x1x32xf32> to vector<32xf32>
    %154 = vector.shape_cast %153 : vector<32xf32> to vector<1x1x1x32xf32>
    %155 = vector.broadcast %154 : vector<1x1x1x32xf32> to vector<1x8x8x32xf32>
    %156 = arith.mulf %151, %155 : vector<1x8x8x32xf32>
    %157 = arith.addf %150, %156 : vector<1x8x8x32xf32>
    %158 = vector.shape_cast %92 : vector<1x32xf32> to vector<1x1x1x32xf32>
    %159 = vector.broadcast %158 : vector<1x1x1x32xf32> to vector<1x8x8x32xf32>
    %160 = arith.addf %157, %159 : vector<1x8x8x32xf32>
    %161 = vector.shape_cast %160 : vector<1x8x8x32xf32> to vector<64x32xf32>
    %162 = arith.truncf %161 : vector<64x32xf32> to vector<64x32xbf16>
    %c0_131 = arith.constant 0 : index
    %c0_132 = arith.constant 0 : index
    %163 = vector.load %arg7[%c0_131, %c0_132] : memref<32x32xf32, #tpu.memory_space<vmem>>, vector<32x32xf32>
    %164 = arith.truncf %163 : vector<32x32xf32> to vector<32x32xbf16>
    %cst_133 = arith.constant dense<0.000000e+00> : vector<64x32xf32>
    %165 = tpu.matmul %162, %164, %cst_133 {dimension_numbers = #tpu.dot_dimension_numbers<[1], [0], [0], [1], [0, 0, 1, 1], [], []>} : vector<64x32xbf16>, vector<32x32xbf16>, vector<64x32xf32> -> vector<64x32xf32>
    %cst_134 = arith.constant 0.000000e+00 : f32
    %166 = vector.broadcast %cst_134 : f32 to vector<64x32xf32>
    %167 = arith.maximumf %165, %166 : vector<64x32xf32>
    %168 = vector.shape_cast %167 : vector<64x32xf32> to vector<1x8x8x32xf32>
    %169 = vector.shape_cast %168 : vector<1x8x8x32xf32> to vector<64x32xf32>
    %170 = arith.truncf %169 : vector<64x32xf32> to vector<64x32xbf16>
    %c0_135 = arith.constant 0 : index
    %c0_136 = arith.constant 0 : index
    %171 = vector.load %arg8[%c0_135, %c0_136] : memref<32x8xf32, #tpu.memory_space<vmem>>, vector<32x8xf32>
    %172 = arith.truncf %171 : vector<32x8xf32> to vector<32x8xbf16>
    %cst_137 = arith.constant dense<0.000000e+00> : vector<64x8xf32>
    %173 = tpu.matmul %170, %172, %cst_137 {dimension_numbers = #tpu.dot_dimension_numbers<[1], [0], [0], [1], [0, 0, 1, 1], [], []>} : vector<64x32xbf16>, vector<32x8xbf16>, vector<64x8xf32> -> vector<64x8xf32>
    %c0_138 = arith.constant 0 : index
    %c0_139 = arith.constant 0 : index
    %174 = vector.load %arg9[%c0_138, %c0_139] : memref<1x8xf32, #tpu.memory_space<vmem>>, vector<1x8xf32>
    %175 = vector.broadcast %174 : vector<1x8xf32> to vector<64x8xf32>
    %176 = arith.addf %173, %175 : vector<64x8xf32>
    %177 = arith.negf %176 : vector<64x8xf32>
    %178 = math.exp %177 : vector<64x8xf32>
    %cst_140 = arith.constant 1.000000e+00 : f32
    %179 = vector.broadcast %cst_140 : f32 to vector<64x8xf32>
    %180 = arith.addf %179, %178 : vector<64x8xf32>
    %181 = arith.divf %179, %180 : vector<64x8xf32>
    %182 = vector.shape_cast %181 : vector<64x8xf32> to vector<1x8x8x8xf32>
    %c0_141 = arith.constant 0 : index
    %c1_142 = arith.constant 1 : index
    %c1_143 = arith.constant 1 : index
    %c0_144 = arith.constant 0 : index
    %183 = vector.load %arg14[%c0_141, %c1_142, %c1_143, %c0_144] : memref<1x10x10x8xf32, #tpu.memory_space<vmem>>, vector<1x8x8x8xf32>
    tpu.vector_store %arg14[%c0_141, %c1_142, %c1_143, %c0_144], %182 {strides = array<i32>} : memref<1x10x10x8xf32, #tpu.memory_space<vmem>>, vector<1x8x8x8xf32>,
    %c0_145 = arith.constant 0 : index
    %c0_146 = arith.constant 0 : index
    %c0_147 = arith.constant 0 : index
    %c0_148 = arith.constant 0 : index
    %184 = vector.load %arg10[%c0_145, %c0_146, %c0_147, %c0_148] : memref<4x8x1x1xf32, #tpu.memory_space<vmem>>, vector<4x8x1x1xf32>
    %c0_149 = arith.constant 0 : index
    %c0_150 = arith.constant 0 : index
    %c0_151 = arith.constant 0 : index
    %185 = vector.load %arg11[%c0_149, %c0_150, %c0_151] : memref<4x8x1xf32, #tpu.memory_space<vmem>>, vector<4x8x1xf32>
    %cst_152 = arith.constant 0.000000e+00 : f32
    %186 = vector.broadcast %cst_152 : f32 to vector<1x8x8x8xf32>
    %187 = vector.extract_strided_slice %184 {offsets = [0, 0, 0, 0], sizes = [1, 8, 1, 1], strides = [1, 1, 1, 1]} : vector<4x8x1x1xf32> to vector<1x8x1x1xf32>
    %188 = vector.shape_cast %187 : vector<1x8x1x1xf32> to vector<8x1x1xf32>
    %189 = vector.extract_strided_slice %185 {offsets = [0, 0, 0], sizes = [1, 8, 1], strides = [1, 1, 1]} : vector<4x8x1xf32> to vector<1x8x1xf32>
    %190 = vector.shape_cast %189 : vector<1x8x1xf32> to vector<8x1xf32>
    %c0_153 = arith.constant 0 : index
    %c1_154 = arith.constant 1 : index
    %c1_155 = arith.constant 1 : index
    %c0_156 = arith.constant 0 : index
    %191 = vector.load %arg14[%c0_153, %c1_154, %c1_155, %c0_156] : memref<1x10x10x8xf32, #tpu.memory_space<vmem>>, vector<1x8x8x8xf32>
    %192 = vector.shape_cast %190 : vector<8x1xf32> to vector<1x8x1xf32>
    %193 = vector.broadcast %188 : vector<8x1x1xf32> to vector<8x8x1xf32>
    %194 = vector.broadcast %192 : vector<1x8x1xf32> to vector<8x8x1xf32>
    %195 = arith.mulf %193, %194 : vector<8x8x1xf32>
    %196 = vector.shape_cast %195 : vector<8x8x1xf32> to vector<1x8x8x1xf32>
    %197 = vector.broadcast %196 : vector<1x8x8x1xf32> to vector<1x8x8x8xf32>
    %198 = arith.mulf %197, %191 : vector<1x8x8x8xf32>
    %199 = arith.addf %186, %198 : vector<1x8x8x8xf32>
    %200 = vector.extract_strided_slice %185 {offsets = [1, 0, 0], sizes = [1, 8, 1], strides = [1, 1, 1]} : vector<4x8x1xf32> to vector<1x8x1xf32>
    %201 = vector.shape_cast %200 : vector<1x8x1xf32> to vector<8x1xf32>
    %c0_157 = arith.constant 0 : index
    %c1_158 = arith.constant 1 : index
    %c0_159 = arith.constant 0 : index
    %c0_160 = arith.constant 0 : index
    %202 = vector.load %arg14[%c0_157, %c1_158, %c0_159, %c0_160] : memref<1x10x10x8xf32, #tpu.memory_space<vmem>>, vector<1x8x8x8xf32>
    %203 = vector.shape_cast %201 : vector<8x1xf32> to vector<1x8x1xf32>
    %204 = vector.broadcast %188 : vector<8x1x1xf32> to vector<8x8x1xf32>
    %205 = vector.broadcast %203 : vector<1x8x1xf32> to vector<8x8x1xf32>
    %206 = arith.mulf %204, %205 : vector<8x8x1xf32>
    %207 = vector.shape_cast %206 : vector<8x8x1xf32> to vector<1x8x8x1xf32>
    %208 = vector.broadcast %207 : vector<1x8x8x1xf32> to vector<1x8x8x8xf32>
    %209 = arith.mulf %208, %202 : vector<1x8x8x8xf32>
    %210 = arith.addf %199, %209 : vector<1x8x8x8xf32>
    %211 = vector.extract_strided_slice %184 {offsets = [1, 0, 0, 0], sizes = [1, 8, 1, 1], strides = [1, 1, 1, 1]} : vector<4x8x1x1xf32> to vector<1x8x1x1xf32>
    %212 = vector.shape_cast %211 : vector<1x8x1x1xf32> to vector<8x1x1xf32>
    %213 = vector.extract_strided_slice %185 {offsets = [0, 0, 0], sizes = [1, 8, 1], strides = [1, 1, 1]} : vector<4x8x1xf32> to vector<1x8x1xf32>
    %214 = vector.shape_cast %213 : vector<1x8x1xf32> to vector<8x1xf32>
    %c0_161 = arith.constant 0 : index
    %c0_162 = arith.constant 0 : index
    %c1_163 = arith.constant 1 : index
    %c0_164 = arith.constant 0 : index
    %215 = vector.load %arg14[%c0_161, %c0_162, %c1_163, %c0_164] : memref<1x10x10x8xf32, #tpu.memory_space<vmem>>, vector<1x8x8x8xf32>
    %216 = vector.shape_cast %214 : vector<8x1xf32> to vector<1x8x1xf32>
    %217 = vector.broadcast %212 : vector<8x1x1xf32> to vector<8x8x1xf32>
    %218 = vector.broadcast %216 : vector<1x8x1xf32> to vector<8x8x1xf32>
    %219 = arith.mulf %217, %218 : vector<8x8x1xf32>
    %220 = vector.shape_cast %219 : vector<8x8x1xf32> to vector<1x8x8x1xf32>
    %221 = vector.broadcast %220 : vector<1x8x8x1xf32> to vector<1x8x8x8xf32>
    %222 = arith.mulf %221, %215 : vector<1x8x8x8xf32>
    %223 = arith.addf %210, %222 : vector<1x8x8x8xf32>
    %224 = vector.extract_strided_slice %185 {offsets = [1, 0, 0], sizes = [1, 8, 1], strides = [1, 1, 1]} : vector<4x8x1xf32> to vector<1x8x1xf32>
    %225 = vector.shape_cast %224 : vector<1x8x1xf32> to vector<8x1xf32>
    %c0_165 = arith.constant 0 : index
    %c0_166 = arith.constant 0 : index
    %c0_167 = arith.constant 0 : index
    %c0_168 = arith.constant 0 : index
    %226 = vector.load %arg14[%c0_165, %c0_166, %c0_167, %c0_168] : memref<1x10x10x8xf32, #tpu.memory_space<vmem>>, vector<1x8x8x8xf32>
    %227 = vector.shape_cast %225 : vector<8x1xf32> to vector<1x8x1xf32>
    %228 = vector.broadcast %212 : vector<8x1x1xf32> to vector<8x8x1xf32>
    %229 = vector.broadcast %227 : vector<1x8x1xf32> to vector<8x8x1xf32>
    %230 = arith.mulf %228, %229 : vector<8x8x1xf32>
    %231 = vector.shape_cast %230 : vector<8x8x1xf32> to vector<1x8x8x1xf32>
    %232 = vector.broadcast %231 : vector<1x8x8x1xf32> to vector<1x8x8x8xf32>
    %233 = arith.mulf %232, %226 : vector<1x8x8x8xf32>
    %234 = arith.addf %223, %233 : vector<1x8x8x8xf32>
    %cst_169 = arith.constant 0.000000e+00 : f32
    %235 = vector.broadcast %cst_169 : f32 to vector<1x8x8x8xf32>
    %236 = vector.extract_strided_slice %184 {offsets = [2, 0, 0, 0], sizes = [1, 8, 1, 1], strides = [1, 1, 1, 1]} : vector<4x8x1x1xf32> to vector<1x8x1x1xf32>
    %237 = vector.shape_cast %236 : vector<1x8x1x1xf32> to vector<8x1x1xf32>
    %238 = vector.extract_strided_slice %185 {offsets = [0, 0, 0], sizes = [1, 8, 1], strides = [1, 1, 1]} : vector<4x8x1xf32> to vector<1x8x1xf32>
    %239 = vector.shape_cast %238 : vector<1x8x1xf32> to vector<8x1xf32>
    %c0_170 = arith.constant 0 : index
    %c1_171 = arith.constant 1 : index
    %c1_172 = arith.constant 1 : index
    %c0_173 = arith.constant 0 : index
    %240 = vector.load %arg14[%c0_170, %c1_171, %c1_172, %c0_173] : memref<1x10x10x8xf32, #tpu.memory_space<vmem>>, vector<1x8x8x8xf32>
    %241 = vector.shape_cast %239 : vector<8x1xf32> to vector<1x8x1xf32>
    %242 = vector.broadcast %237 : vector<8x1x1xf32> to vector<8x8x1xf32>
    %243 = vector.broadcast %241 : vector<1x8x1xf32> to vector<8x8x1xf32>
    %244 = arith.mulf %242, %243 : vector<8x8x1xf32>
    %245 = vector.shape_cast %244 : vector<8x8x1xf32> to vector<1x8x8x1xf32>
    %246 = vector.broadcast %245 : vector<1x8x8x1xf32> to vector<1x8x8x8xf32>
    %247 = arith.mulf %246, %240 : vector<1x8x8x8xf32>
    %248 = arith.addf %235, %247 : vector<1x8x8x8xf32>
    %249 = vector.extract_strided_slice %185 {offsets = [1, 0, 0], sizes = [1, 8, 1], strides = [1, 1, 1]} : vector<4x8x1xf32> to vector<1x8x1xf32>
    %250 = vector.shape_cast %249 : vector<1x8x1xf32> to vector<8x1xf32>
    %c0_174 = arith.constant 0 : index
    %c1_175 = arith.constant 1 : index
    %c0_176 = arith.constant 0 : index
    %c0_177 = arith.constant 0 : index
    %251 = vector.load %arg14[%c0_174, %c1_175, %c0_176, %c0_177] : memref<1x10x10x8xf32, #tpu.memory_space<vmem>>, vector<1x8x8x8xf32>
    %252 = vector.shape_cast %250 : vector<8x1xf32> to vector<1x8x1xf32>
    %253 = vector.broadcast %237 : vector<8x1x1xf32> to vector<8x8x1xf32>
    %254 = vector.broadcast %252 : vector<1x8x1xf32> to vector<8x8x1xf32>
    %255 = arith.mulf %253, %254 : vector<8x8x1xf32>
    %256 = vector.shape_cast %255 : vector<8x8x1xf32> to vector<1x8x8x1xf32>
    %257 = vector.broadcast %256 : vector<1x8x8x1xf32> to vector<1x8x8x8xf32>
    %258 = arith.mulf %257, %251 : vector<1x8x8x8xf32>
    %259 = arith.addf %248, %258 : vector<1x8x8x8xf32>
    %260 = vector.extract_strided_slice %184 {offsets = [3, 0, 0, 0], sizes = [1, 8, 1, 1], strides = [1, 1, 1, 1]} : vector<4x8x1x1xf32> to vector<1x8x1x1xf32>
    %261 = vector.shape_cast %260 : vector<1x8x1x1xf32> to vector<8x1x1xf32>
    %262 = vector.extract_strided_slice %185 {offsets = [0, 0, 0], sizes = [1, 8, 1], strides = [1, 1, 1]} : vector<4x8x1xf32> to vector<1x8x1xf32>
    %263 = vector.shape_cast %262 : vector<1x8x1xf32> to vector<8x1xf32>
    %c0_178 = arith.constant 0 : index
    %c2_179 = arith.constant 2 : index
    %c1_180 = arith.constant 1 : index
    %c0_181 = arith.constant 0 : index
    %264 = vector.load %arg14[%c0_178, %c2_179, %c1_180, %c0_181] : memref<1x10x10x8xf32, #tpu.memory_space<vmem>>, vector<1x8x8x8xf32>
    %265 = vector.shape_cast %263 : vector<8x1xf32> to vector<1x8x1xf32>
    %266 = vector.broadcast %261 : vector<8x1x1xf32> to vector<8x8x1xf32>
    %267 = vector.broadcast %265 : vector<1x8x1xf32> to vector<8x8x1xf32>
    %268 = arith.mulf %266, %267 : vector<8x8x1xf32>
    %269 = vector.shape_cast %268 : vector<8x8x1xf32> to vector<1x8x8x1xf32>
    %270 = vector.broadcast %269 : vector<1x8x8x1xf32> to vector<1x8x8x8xf32>
    %271 = arith.mulf %270, %264 : vector<1x8x8x8xf32>
    %272 = arith.addf %259, %271 : vector<1x8x8x8xf32>
    %273 = vector.extract_strided_slice %185 {offsets = [1, 0, 0], sizes = [1, 8, 1], strides = [1, 1, 1]} : vector<4x8x1xf32> to vector<1x8x1xf32>
    %274 = vector.shape_cast %273 : vector<1x8x1xf32> to vector<8x1xf32>
    %c0_182 = arith.constant 0 : index
    %c2_183 = arith.constant 2 : index
    %c0_184 = arith.constant 0 : index
    %c0_185 = arith.constant 0 : index
    %275 = vector.load %arg14[%c0_182, %c2_183, %c0_184, %c0_185] : memref<1x10x10x8xf32, #tpu.memory_space<vmem>>, vector<1x8x8x8xf32>
    %276 = vector.shape_cast %274 : vector<8x1xf32> to vector<1x8x1xf32>
    %277 = vector.broadcast %261 : vector<8x1x1xf32> to vector<8x8x1xf32>
    %278 = vector.broadcast %276 : vector<1x8x1xf32> to vector<8x8x1xf32>
    %279 = arith.mulf %277, %278 : vector<8x8x1xf32>
    %280 = vector.shape_cast %279 : vector<8x8x1xf32> to vector<1x8x8x1xf32>
    %281 = vector.broadcast %280 : vector<1x8x8x1xf32> to vector<1x8x8x8xf32>
    %282 = arith.mulf %281, %275 : vector<1x8x8x8xf32>
    %283 = arith.addf %272, %282 : vector<1x8x8x8xf32>
    %cst_186 = arith.constant 0.000000e+00 : f32
    %284 = vector.broadcast %cst_186 : f32 to vector<1x8x8x8xf32>
    %285 = vector.extract_strided_slice %184 {offsets = [0, 0, 0, 0], sizes = [1, 8, 1, 1], strides = [1, 1, 1, 1]} : vector<4x8x1x1xf32> to vector<1x8x1x1xf32>
    %286 = vector.shape_cast %285 : vector<1x8x1x1xf32> to vector<8x1x1xf32>
    %287 = vector.extract_strided_slice %185 {offsets = [2, 0, 0], sizes = [1, 8, 1], strides = [1, 1, 1]} : vector<4x8x1xf32> to vector<1x8x1xf32>
    %288 = vector.shape_cast %287 : vector<1x8x1xf32> to vector<8x1xf32>
    %c0_187 = arith.constant 0 : index
    %c1_188 = arith.constant 1 : index
    %c1_189 = arith.constant 1 : index
    %c0_190 = arith.constant 0 : index
    %289 = vector.load %arg14[%c0_187, %c1_188, %c1_189, %c0_190] : memref<1x10x10x8xf32, #tpu.memory_space<vmem>>, vector<1x8x8x8xf32>
    %290 = vector.shape_cast %288 : vector<8x1xf32> to vector<1x8x1xf32>
    %291 = vector.broadcast %286 : vector<8x1x1xf32> to vector<8x8x1xf32>
    %292 = vector.broadcast %290 : vector<1x8x1xf32> to vector<8x8x1xf32>
    %293 = arith.mulf %291, %292 : vector<8x8x1xf32>
    %294 = vector.shape_cast %293 : vector<8x8x1xf32> to vector<1x8x8x1xf32>
    %295 = vector.broadcast %294 : vector<1x8x8x1xf32> to vector<1x8x8x8xf32>
    %296 = arith.mulf %295, %289 : vector<1x8x8x8xf32>
    %297 = arith.addf %284, %296 : vector<1x8x8x8xf32>
    %298 = vector.extract_strided_slice %185 {offsets = [3, 0, 0], sizes = [1, 8, 1], strides = [1, 1, 1]} : vector<4x8x1xf32> to vector<1x8x1xf32>
    %299 = vector.shape_cast %298 : vector<1x8x1xf32> to vector<8x1xf32>
    %c0_191 = arith.constant 0 : index
    %c1_192 = arith.constant 1 : index
    %c2_193 = arith.constant 2 : index
    %c0_194 = arith.constant 0 : index
    %300 = vector.load %arg14[%c0_191, %c1_192, %c2_193, %c0_194] : memref<1x10x10x8xf32, #tpu.memory_space<vmem>>, vector<1x8x8x8xf32>
    %301 = vector.shape_cast %299 : vector<8x1xf32> to vector<1x8x1xf32>
    %302 = vector.broadcast %286 : vector<8x1x1xf32> to vector<8x8x1xf32>
    %303 = vector.broadcast %301 : vector<1x8x1xf32> to vector<8x8x1xf32>
    %304 = arith.mulf %302, %303 : vector<8x8x1xf32>
    %305 = vector.shape_cast %304 : vector<8x8x1xf32> to vector<1x8x8x1xf32>
    %306 = vector.broadcast %305 : vector<1x8x8x1xf32> to vector<1x8x8x8xf32>
    %307 = arith.mulf %306, %300 : vector<1x8x8x8xf32>
    %308 = arith.addf %297, %307 : vector<1x8x8x8xf32>
    %309 = vector.extract_strided_slice %184 {offsets = [1, 0, 0, 0], sizes = [1, 8, 1, 1], strides = [1, 1, 1, 1]} : vector<4x8x1x1xf32> to vector<1x8x1x1xf32>
    %310 = vector.shape_cast %309 : vector<1x8x1x1xf32> to vector<8x1x1xf32>
    %311 = vector.extract_strided_slice %185 {offsets = [2, 0, 0], sizes = [1, 8, 1], strides = [1, 1, 1]} : vector<4x8x1xf32> to vector<1x8x1xf32>
    %312 = vector.shape_cast %311 : vector<1x8x1xf32> to vector<8x1xf32>
    %c0_195 = arith.constant 0 : index
    %c0_196 = arith.constant 0 : index
    %c1_197 = arith.constant 1 : index
    %c0_198 = arith.constant 0 : index
    %313 = vector.load %arg14[%c0_195, %c0_196, %c1_197, %c0_198] : memref<1x10x10x8xf32, #tpu.memory_space<vmem>>, vector<1x8x8x8xf32>
    %314 = vector.shape_cast %312 : vector<8x1xf32> to vector<1x8x1xf32>
    %315 = vector.broadcast %310 : vector<8x1x1xf32> to vector<8x8x1xf32>
    %316 = vector.broadcast %314 : vector<1x8x1xf32> to vector<8x8x1xf32>
    %317 = arith.mulf %315, %316 : vector<8x8x1xf32>
    %318 = vector.shape_cast %317 : vector<8x8x1xf32> to vector<1x8x8x1xf32>
    %319 = vector.broadcast %318 : vector<1x8x8x1xf32> to vector<1x8x8x8xf32>
    %320 = arith.mulf %319, %313 : vector<1x8x8x8xf32>
    %321 = arith.addf %308, %320 : vector<1x8x8x8xf32>
    %322 = vector.extract_strided_slice %185 {offsets = [3, 0, 0], sizes = [1, 8, 1], strides = [1, 1, 1]} : vector<4x8x1xf32> to vector<1x8x1xf32>
    %323 = vector.shape_cast %322 : vector<1x8x1xf32> to vector<8x1xf32>
    %c0_199 = arith.constant 0 : index
    %c0_200 = arith.constant 0 : index
    %c2_201 = arith.constant 2 : index
    %c0_202 = arith.constant 0 : index
    %324 = vector.load %arg14[%c0_199, %c0_200, %c2_201, %c0_202] : memref<1x10x10x8xf32, #tpu.memory_space<vmem>>, vector<1x8x8x8xf32>
    %325 = vector.shape_cast %323 : vector<8x1xf32> to vector<1x8x1xf32>
    %326 = vector.broadcast %310 : vector<8x1x1xf32> to vector<8x8x1xf32>
    %327 = vector.broadcast %325 : vector<1x8x1xf32> to vector<8x8x1xf32>
    %328 = arith.mulf %326, %327 : vector<8x8x1xf32>
    %329 = vector.shape_cast %328 : vector<8x8x1xf32> to vector<1x8x8x1xf32>
    %330 = vector.broadcast %329 : vector<1x8x8x1xf32> to vector<1x8x8x8xf32>
    %331 = arith.mulf %330, %324 : vector<1x8x8x8xf32>
    %332 = arith.addf %321, %331 : vector<1x8x8x8xf32>
    %cst_203 = arith.constant 0.000000e+00 : f32
    %333 = vector.broadcast %cst_203 : f32 to vector<1x8x8x8xf32>
    %334 = vector.extract_strided_slice %184 {offsets = [2, 0, 0, 0], sizes = [1, 8, 1, 1], strides = [1, 1, 1, 1]} : vector<4x8x1x1xf32> to vector<1x8x1x1xf32>
    %335 = vector.shape_cast %334 : vector<1x8x1x1xf32> to vector<8x1x1xf32>
    %336 = vector.extract_strided_slice %185 {offsets = [2, 0, 0], sizes = [1, 8, 1], strides = [1, 1, 1]} : vector<4x8x1xf32> to vector<1x8x1xf32>
    %337 = vector.shape_cast %336 : vector<1x8x1xf32> to vector<8x1xf32>
    %c0_204 = arith.constant 0 : index
    %c1_205 = arith.constant 1 : index
    %c1_206 = arith.constant 1 : index
    %c0_207 = arith.constant 0 : index
    %338 = vector.load %arg14[%c0_204, %c1_205, %c1_206, %c0_207] : memref<1x10x10x8xf32, #tpu.memory_space<vmem>>, vector<1x8x8x8xf32>
    %339 = vector.shape_cast %337 : vector<8x1xf32> to vector<1x8x1xf32>
    %340 = vector.broadcast %335 : vector<8x1x1xf32> to vector<8x8x1xf32>
    %341 = vector.broadcast %339 : vector<1x8x1xf32> to vector<8x8x1xf32>
    %342 = arith.mulf %340, %341 : vector<8x8x1xf32>
    %343 = vector.shape_cast %342 : vector<8x8x1xf32> to vector<1x8x8x1xf32>
    %344 = vector.broadcast %343 : vector<1x8x8x1xf32> to vector<1x8x8x8xf32>
    %345 = arith.mulf %344, %338 : vector<1x8x8x8xf32>
    %346 = arith.addf %333, %345 : vector<1x8x8x8xf32>
    %347 = vector.extract_strided_slice %185 {offsets = [3, 0, 0], sizes = [1, 8, 1], strides = [1, 1, 1]} : vector<4x8x1xf32> to vector<1x8x1xf32>
    %348 = vector.shape_cast %347 : vector<1x8x1xf32> to vector<8x1xf32>
    %c0_208 = arith.constant 0 : index
    %c1_209 = arith.constant 1 : index
    %c2_210 = arith.constant 2 : index
    %c0_211 = arith.constant 0 : index
    %349 = vector.load %arg14[%c0_208, %c1_209, %c2_210, %c0_211] : memref<1x10x10x8xf32, #tpu.memory_space<vmem>>, vector<1x8x8x8xf32>
    %350 = vector.shape_cast %348 : vector<8x1xf32> to vector<1x8x1xf32>
    %351 = vector.broadcast %335 : vector<8x1x1xf32> to vector<8x8x1xf32>
    %352 = vector.broadcast %350 : vector<1x8x1xf32> to vector<8x8x1xf32>
    %353 = arith.mulf %351, %352 : vector<8x8x1xf32>
    %354 = vector.shape_cast %353 : vector<8x8x1xf32> to vector<1x8x8x1xf32>
    %355 = vector.broadcast %354 : vector<1x8x8x1xf32> to vector<1x8x8x8xf32>
    %356 = arith.mulf %355, %349 : vector<1x8x8x8xf32>
    %357 = arith.addf %346, %356 : vector<1x8x8x8xf32>
    %358 = vector.extract_strided_slice %184 {offsets = [3, 0, 0, 0], sizes = [1, 8, 1, 1], strides = [1, 1, 1, 1]} : vector<4x8x1x1xf32> to vector<1x8x1x1xf32>
    %359 = vector.shape_cast %358 : vector<1x8x1x1xf32> to vector<8x1x1xf32>
    %360 = vector.extract_strided_slice %185 {offsets = [2, 0, 0], sizes = [1, 8, 1], strides = [1, 1, 1]} : vector<4x8x1xf32> to vector<1x8x1xf32>
    %361 = vector.shape_cast %360 : vector<1x8x1xf32> to vector<8x1xf32>
    %c0_212 = arith.constant 0 : index
    %c2_213 = arith.constant 2 : index
    %c1_214 = arith.constant 1 : index
    %c0_215 = arith.constant 0 : index
    %362 = vector.load %arg14[%c0_212, %c2_213, %c1_214, %c0_215] : memref<1x10x10x8xf32, #tpu.memory_space<vmem>>, vector<1x8x8x8xf32>
    %363 = vector.shape_cast %361 : vector<8x1xf32> to vector<1x8x1xf32>
    %364 = vector.broadcast %359 : vector<8x1x1xf32> to vector<8x8x1xf32>
    %365 = vector.broadcast %363 : vector<1x8x1xf32> to vector<8x8x1xf32>
    %366 = arith.mulf %364, %365 : vector<8x8x1xf32>
    %367 = vector.shape_cast %366 : vector<8x8x1xf32> to vector<1x8x8x1xf32>
    %368 = vector.broadcast %367 : vector<1x8x8x1xf32> to vector<1x8x8x8xf32>
    %369 = arith.mulf %368, %362 : vector<1x8x8x8xf32>
    %370 = arith.addf %357, %369 : vector<1x8x8x8xf32>
    %371 = vector.extract_strided_slice %185 {offsets = [3, 0, 0], sizes = [1, 8, 1], strides = [1, 1, 1]} : vector<4x8x1xf32> to vector<1x8x1xf32>
    %372 = vector.shape_cast %371 : vector<1x8x1xf32> to vector<8x1xf32>
    %c0_216 = arith.constant 0 : index
    %c2_217 = arith.constant 2 : index
    %c2_218 = arith.constant 2 : index
    %c0_219 = arith.constant 0 : index
    %373 = vector.load %arg14[%c0_216, %c2_217, %c2_218, %c0_219] : memref<1x10x10x8xf32, #tpu.memory_space<vmem>>, vector<1x8x8x8xf32>
    %374 = vector.shape_cast %372 : vector<8x1xf32> to vector<1x8x1xf32>
    %375 = vector.broadcast %359 : vector<8x1x1xf32> to vector<8x8x1xf32>
    %376 = vector.broadcast %374 : vector<1x8x1xf32> to vector<8x8x1xf32>
    %377 = arith.mulf %375, %376 : vector<8x8x1xf32>
    %378 = vector.shape_cast %377 : vector<8x8x1xf32> to vector<1x8x8x1xf32>
    %379 = vector.broadcast %378 : vector<1x8x8x1xf32> to vector<1x8x8x8xf32>
    %380 = arith.mulf %379, %373 : vector<1x8x8x8xf32>
    %381 = arith.addf %370, %380 : vector<1x8x8x8xf32>
    %c0_220 = arith.constant 0 : index
    %c0_221 = arith.constant 0 : index
    %c0_222 = arith.constant 0 : index
    %c0_223 = arith.constant 0 : index
    %382 = vector.load %arg1[%c0_220, %c0_221, %c0_222, %c0_223] : memref<1x8x8x32xf32, #tpu.memory_space<vmem>>, vector<1x8x8x32xf32>
    %383 = tpu.concatenate %234, %283, %332, %381 in 3 : vector<1x8x8x8xf32>, vector<1x8x8x8xf32>, vector<1x8x8x8xf32>, vector<1x8x8x8xf32> -> vector<1x8x8x32xf32>
    %384 = arith.mulf %382, %383 : vector<1x8x8x32xf32>
    %c0_224 = arith.constant 0 : index
    %c0_225 = arith.constant 0 : index
    %c0_226 = arith.constant 0 : index
    %c0_227 = arith.constant 0 : index
    %385 = vector.load %arg12[%c0_224, %c0_225, %c0_226, %c0_227] : memref<1x8x8x32xf32, #tpu.memory_space<vmem>>, vector<1x8x8x32xf32>
    tpu.vector_store %arg12[%c0_224, %c0_225, %c0_226, %c0_227], %384 {strides = array<i32>} : memref<1x8x8x32xf32, #tpu.memory_space<vmem>>, vector<1x8x8x32xf32>,
    return
  }
  func.func @transform_0(%arg0: i32) -> (i32, i32, i32, i32) {
    %c0_i32 = arith.constant 0 : i32
    %c0_i32_0 = arith.constant 0 : i32
    %c0_i32_1 = arith.constant 0 : i32
    %c0_i32_2 = arith.constant 0 : i32
    return %arg0, %c0_i32, %c0_i32_0, %c0_i32_1 : i32, i32, i32, i32
  }
  func.func @transform_1(%arg0: i32) -> (i32, i32, i32) {
    %c0_i32 = arith.constant 0 : i32
    %c0_i32_0 = arith.constant 0 : i32
    %c0_i32_1 = arith.constant 0 : i32
    %c0_i32_2 = arith.constant 0 : i32
    return %c0_i32, %c0_i32_0, %c0_i32_1 : i32, i32, i32
  }
  func.func @transform_2(%arg0: i32) -> (i32, i32) {
    %c0_i32 = arith.constant 0 : i32
    %c0_i32_0 = arith.constant 0 : i32
    %c0_i32_1 = arith.constant 0 : i32
    return %c0_i32, %c0_i32_0 : i32, i32
  }
  func.func @transform_3(%arg0: i32) -> (i32, i32) {
    %c0_i32 = arith.constant 0 : i32
    %c0_i32_0 = arith.constant 0 : i32
    %c0_i32_1 = arith.constant 0 : i32
    return %c0_i32, %c0_i32_0 : i32, i32
  }
  func.func @transform_4(%arg0: i32) -> (i32, i32, i32) {
    %c0_i32 = arith.constant 0 : i32
    %c0_i32_0 = arith.constant 0 : i32
    %c0_i32_1 = arith.constant 0 : i32
    %c0_i32_2 = arith.constant 0 : i32
    return %c0_i32, %c0_i32_0, %c0_i32_1 : i32, i32, i32
  }
  func.func @transform_5(%arg0: i32) -> (i32, i32) {
    %c0_i32 = arith.constant 0 : i32
    %c0_i32_0 = arith.constant 0 : i32
    %c0_i32_1 = arith.constant 0 : i32
    return %c0_i32, %c0_i32_0 : i32, i32
  }
  func.func @transform_6(%arg0: i32) -> (i32, i32) {
    %c0_i32 = arith.constant 0 : i32
    %c0_i32_0 = arith.constant 0 : i32
    %c0_i32_1 = arith.constant 0 : i32
    return %c0_i32, %c0_i32_0 : i32, i32
  }
  func.func @transform_7(%arg0: i32) -> (i32, i32) {
    %c0_i32 = arith.constant 0 : i32
    %c0_i32_0 = arith.constant 0 : i32
    %c0_i32_1 = arith.constant 0 : i32
    return %c0_i32, %c0_i32_0 : i32, i32
  }
  func.func @transform_8(%arg0: i32) -> (i32, i32) {
    %c0_i32 = arith.constant 0 : i32
    %c0_i32_0 = arith.constant 0 : i32
    %c0_i32_1 = arith.constant 0 : i32
    return %c0_i32, %c0_i32_0 : i32, i32
  }
  func.func @transform_9(%arg0: i32) -> (i32, i32, i32, i32) {
    %c0_i32 = arith.constant 0 : i32
    %c0_i32_0 = arith.constant 0 : i32
    %c0_i32_1 = arith.constant 0 : i32
    %c0_i32_2 = arith.constant 0 : i32
    %c0_i32_3 = arith.constant 0 : i32
    return %c0_i32, %c0_i32_0, %c0_i32_1, %c0_i32_2 : i32, i32, i32, i32
  }
  func.func @transform_10(%arg0: i32) -> (i32, i32, i32) {
    %c0_i32 = arith.constant 0 : i32
    %c0_i32_0 = arith.constant 0 : i32
    %c0_i32_1 = arith.constant 0 : i32
    %c0_i32_2 = arith.constant 0 : i32
    return %c0_i32, %c0_i32_0, %c0_i32_1 : i32, i32, i32
  }
  func.func @transform_11(%arg0: i32) -> (i32, i32, i32, i32) {
    %c0_i32 = arith.constant 0 : i32
    %c0_i32_0 = arith.constant 0 : i32
    %c0_i32_1 = arith.constant 0 : i32
    %c0_i32_2 = arith.constant 0 : i32
    return %arg0, %c0_i32, %c0_i32_0, %c0_i32_1 : i32, i32, i32, i32
  }
}

</mosaic_0001>

<llo_original>
// kernel: mcsa_layer.1
$region0: #{mcsa_layer.1}
  #allocation0 [shape = 'u32[]', space=smem, size = 0x4, offset = 0x4, fixed_abs, tag = 'smem constant byte address 0x4 - core index']
  #allocation1 [shape = 'u32[144,128]{1,0:T(1,128)}', space=vmem, size = 0x12000, scoped, tag = 'internal scratch']
  #allocation2 [shape = 'f32[1,10,10,32]{3,2,1,0:T(8,128)}', space=vmem, size = 0x14000, scoped, tag = 'scratch operand']
  #allocation3 [shape = 'f32[1,10,10,8]{3,2,1,0:T(8,128)}', space=vmem, size = 0x14000, scoped, tag = 'scratch operand']
  %s0 = inlined_call_operand.hbm [shape: f32[2,8,8,32], index: 0, kind: input, shape index: {}]
  %s1 = inlined_call_operand.hbm [shape: f32[3,3,32], index: 1, kind: input, shape index: {}]
  %s2 = inlined_call_operand.hbm [shape: f32[1,32], index: 2, kind: input, shape index: {}]
  %s3 = inlined_call_operand.hbm [shape: f32[32,32], index: 3, kind: input, shape index: {}]
  %s4 = inlined_call_operand.hbm [shape: f32[3,3,32], index: 4, kind: input, shape index: {}]
  %s5 = inlined_call_operand.hbm [shape: f32[1,32], index: 5, kind: input, shape index: {}]
  %s6 = inlined_call_operand.hbm [shape: f32[32,32], index: 6, kind: input, shape index: {}]
  %s7 = inlined_call_operand.hbm [shape: f32[32,8], index: 7, kind: input, shape index: {}]
  %s8 = inlined_call_operand.hbm [shape: f32[1,8], index: 8, kind: input, shape index: {}]
  %s9 = inlined_call_operand.hbm [shape: f32[4,8,1,1], index: 9, kind: input, shape index: {}]
  %s10 = inlined_call_operand.hbm [shape: f32[4,8,1], index: 10, kind: input, shape index: {}]
  %s11 = inlined_call_operand.hbm [shape: f32[2,8,8,32], index: 11, kind: output, shape index: {}]
  %s12 = sld [smem:[#allocation0]]
  $region121: #{mcsa_layer.1} parent=0
    _
  %s14 = ssub.s32 1, %s12
  %s15 = scalar_select 0, %s14, %s12
  $region1: #{mcsa_layer.1} parent=0
    #allocation4 [shape = 'u8[65536]{0}', space=vmem, size = 0x10000, scoped, tag = 'input window, operand 0']
    #allocation5 [shape = 's32[2]{0}', space=sflag, size = 0x8, scoped, tag = 'scoped memory for mcsa_layer.1']
    #allocation6 [shape = 's32[2]{0}', space=sflag, size = 0x8, scoped, tag = 'scoped memory for mcsa_layer.1']
    #allocation7 [shape = 'u8[6144]{0}', space=vmem, size = 0x1800, scoped, tag = 'input window, operand 1, single buffered']
    #allocation8 [shape = 's32[1]{0}', space=sflag, size = 0x4, scoped, tag = 'scoped memory for mcsa_layer.1']
    #allocation9 [shape = 'u8[512]{0}', space=vmem, size = 0x400, scoped, tag = 'input window, operand 2, single buffered']
    #allocation10 [shape = 'u8[16384]{0}', space=vmem, size = 0x4000, scoped, tag = 'input window, operand 3, single buffered']
    #allocation11 [shape = 's32[1]{0}', space=sflag, size = 0x4, scoped, tag = 'scoped memory for mcsa_layer.1']
    #allocation12 [shape = 'u8[6144]{0}', space=vmem, size = 0x1800, scoped, tag = 'input window, operand 4, single buffered']
    #allocation13 [shape = 'u8[512]{0}', space=vmem, size = 0x400, scoped, tag = 'input window, operand 5, single buffered']
    #allocation14 [shape = 's32[1]{0}', space=sflag, size = 0x4, scoped, tag = 'scoped memory for mcsa_layer.1']
    #allocation15 [shape = 'u8[16384]{0}', space=vmem, size = 0x4000, scoped, tag = 'input window, operand 6, single buffered']
    #allocation16 [shape = 'u8[16384]{0}', space=vmem, size = 0x4000, scoped, tag = 'input window, operand 7, single buffered']
    #allocation17 [shape = 's32[1]{0}', space=sflag, size = 0x4, scoped, tag = 'scoped memory for mcsa_layer.1']
    #allocation18 [shape = 'u8[512]{0}', space=vmem, size = 0x400, scoped, tag = 'input window, operand 8, single buffered']
    #allocation19 [shape = 'u8[16384]{0}', space=vmem, size = 0x4000, scoped, tag = 'input window, operand 9, single buffered']
    #allocation20 [shape = 's32[1]{0}', space=sflag, size = 0x4, scoped, tag = 'scoped memory for mcsa_layer.1']
    #allocation21 [shape = 'u8[16384]{0}', space=vmem, size = 0x4000, scoped, tag = 'input window, operand 10, single buffered']
    #allocation22 [shape = 'u8[65536]{0}', space=vmem, size = 0x10000, scoped, tag = 'output window, operand 0']
    %16 = vsyncpa [#allocation5], 0
    %s17 = scalar_lea.sflag [#allocation5], 1
    %18 = vsyncpa %s17, 0
    %19 = vsyncpa [#allocation8], 0
    %20 = vsyncpa [#allocation11], 0
    %21 = vsyncpa [#allocation14], 0
    %22 = vsyncpa [#allocation17], 0
    %23 = vsyncpa [#allocation20], 0
    %24 = vsyncpa [#allocation6], 0
    %s25 = scalar_lea.sflag [#allocation6], 1
    %26 = vsyncpa %s25, 0
    loop: start=0, step=1, limit=4
    $region2: #{mcsa_layer.1} parent=1 // loop_pre_header
      _
    $region3: #{mcsa_layer.1} parent=1 // loop_header
      %s28 = sphi 0, %s32
      %p29 = scmp.ge.s32.totalorder %s28, 4
      %s38 = sphi 0, %s40
      %s41 = sphi 0, %s38
      %s42 = sphi 0, %s41
      %s58 = sphi 0, %s42
      %s62 = sphi 0, %s62
      %s64 = sphi 0, %s62
      %s65 = sphi 0, %s64
      %s79 = sphi 0, %s65
      %s83 = sphi 0, %s83
      %s85 = sphi 0, %s83
      %s86 = sphi 0, %s85
      %s100 = sphi 0, %s86
      %s104 = sphi 0, %s104
      %s106 = sphi 0, %s104
      %s107 = sphi 0, %s106
      %s121 = sphi 0, %s107
      %s125 = sphi 0, %s125
      %s127 = sphi 0, %s125
      %s128 = sphi 0, %s127
      %s142 = sphi 0, %s128
      %s146 = sphi 0, %s146
      %s148 = sphi 0, %s146
      %s149 = sphi 0, %s148
      %s163 = sphi 0, %s149
      %s167 = sphi 0, %s167
      %s169 = sphi 0, %s167
      %s170 = sphi 0, %s169
      %s184 = sphi 0, %s170
      %s188 = sphi 0, %s188
      %s190 = sphi 0, %s188
      %s191 = sphi 0, %s190
      %s205 = sphi 0, %s191
      %s209 = sphi 0, %s209
      %s211 = sphi 0, %s209
      %s212 = sphi 0, %s211
      %s226 = sphi 0, %s212
      %s230 = sphi 0, %s230
      %s232 = sphi 0, %s230
      %s233 = sphi 0, %s232
      %s247 = sphi 0, %s233
      %s251 = sphi 0, %s251
      %s253 = sphi 0, %s251
      %s254 = sphi 0, %s253
      %s268 = sphi 0, %s254
      %s274 = sphi 0, %s276
      %s277 = sphi 0, %s274
      %s278 = sphi 0, %s277
      %s294 = sphi 0, %s278
    $region4: #{mcsa_layer.1} parent=1 // loop_header_branch
      %31 = sbr.rel (%p29) target = $region8
    $region5: #{mcsa_layer.1} parent=1 // loop_body
      %s33 = ssub.s32 %s28, 1
      %s34 = ssub.s32 %s28, 2
      %s35 = sadd.s32 %s28, 1
      %s36 = ssub.s32 %s28, %s35
      %p37 = scmp.eq.s32.totalorder %s36, 0
      %s39 = sadd.s32 %s38, 1
      %s40 = scalar_select %p37, %s38, %s39
      %p43 = pneg %p37
      %p44 = scmp.eq.s32.totalorder %s28, 1
      %p45 = por %p43, %p44
      %p46 = scmp.ne.s32.totalorder %s38, %s41
      %p47 = scmp.eq.s32.totalorder %s28, 0
      %p48 = por %p46, %p47
      %p49 = scmp.ne.s32.totalorder %s38, %s41
      %p50 = scmp.eq.s32.totalorder %s33, 1
      %p51 = por %p49, %p50
      %p52 = scmp.ne.s32.totalorder %s41, %s42
      %p53 = scmp.eq.s32.totalorder %s33, 0
      %p54 = por %p52, %p53
      %p55 = scmp.ne.s32.totalorder %s41, %s42
      %p56 = scmp.eq.s32.totalorder %s34, 1
      %p57 = por %p55, %p56
      %p59 = scmp.ne.s32.totalorder %s42, %s58
      %p60 = scmp.eq.s32.totalorder %s34, 0
      %p61 = por %p59, %p60
      %s63 = sadd.s32 %s62, 1
      %p66 = scmp.eq.s32.totalorder %s28, 1
      %p67 = scmp.ne.s32.totalorder %s62, %s64
      %p68 = scmp.eq.s32.totalorder %s28, 0
      %p69 = por %p67, %p68
      %p70 = scmp.ne.s32.totalorder %s62, %s64
      %p71 = scmp.eq.s32.totalorder %s33, 1
      %p72 = por %p70, %p71
      %p73 = scmp.ne.s32.totalorder %s64, %s65
      %p74 = scmp.eq.s32.totalorder %s33, 0
      %p75 = por %p73, %p74
      %p76 = scmp.ne.s32.totalorder %s64, %s65
      %p77 = scmp.eq.s32.totalorder %s34, 1
      %p78 = por %p76, %p77
      %p80 = scmp.ne.s32.totalorder %s65, %s79
      %p81 = scmp.eq.s32.totalorder %s34, 0
      %p82 = por %p80, %p81
      %s84 = sadd.s32 %s83, 1
      %p87 = scmp.eq.s32.totalorder %s28, 1
      %p88 = scmp.ne.s32.totalorder %s83, %s85
      %p89 = scmp.eq.s32.totalorder %s28, 0
      %p90 = por %p88, %p89
      %p91 = scmp.ne.s32.totalorder %s83, %s85
      %p92 = scmp.eq.s32.totalorder %s33, 1
      %p93 = por %p91, %p92
      %p94 = scmp.ne.s32.totalorder %s85, %s86
      %p95 = scmp.eq.s32.totalorder %s33, 0
      %p96 = por %p94, %p95
      %p97 = scmp.ne.s32.totalorder %s85, %s86
      %p98 = scmp.eq.s32.totalorder %s34, 1
      %p99 = por %p97, %p98
      %p101 = scmp.ne.s32.totalorder %s86, %s100
      %p102 = scmp.eq.s32.totalorder %s34, 0
      %p103 = por %p101, %p102
      %s105 = sadd.s32 %s104, 1
      %p108 = scmp.eq.s32.totalorder %s28, 1
      %p109 = scmp.ne.s32.totalorder %s104, %s106
      %p110 = scmp.eq.s32.totalorder %s28, 0
      %p111 = por %p109, %p110
      %p112 = scmp.ne.s32.totalorder %s104, %s106
      %p113 = scmp.eq.s32.totalorder %s33, 1
      %p114 = por %p112, %p113
      %p115 = scmp.ne.s32.totalorder %s106, %s107
      %p116 = scmp.eq.s32.totalorder %s33, 0
      %p117 = por %p115, %p116
      %p118 = scmp.ne.s32.totalorder %s106, %s107
      %p119 = scmp.eq.s32.totalorder %s34, 1
      %p120 = por %p118, %p119
      %p122 = scmp.ne.s32.totalorder %s107, %s121
      %p123 = scmp.eq.s32.totalorder %s34, 0
      %p124 = por %p122, %p123
      %s126 = sadd.s32 %s125, 1
      %p129 = scmp.eq.s32.totalorder %s28, 1
      %p130 = scmp.ne.s32.totalorder %s125, %s127
      %p131 = scmp.eq.s32.totalorder %s28, 0
      %p132 = por %p130, %p131
      %p133 = scmp.ne.s32.totalorder %s125, %s127
      %p134 = scmp.eq.s32.totalorder %s33, 1
      %p135 = por %p133, %p134
      %p136 = scmp.ne.s32.totalorder %s127, %s128
      %p137 = scmp.eq.s32.totalorder %s33, 0
      %p138 = por %p136, %p137
      %p139 = scmp.ne.s32.totalorder %s127, %s128
      %p140 = scmp.eq.s32.totalorder %s34, 1
      %p141 = por %p139, %p140
      %p143 = scmp.ne.s32.totalorder %s128, %s142
      %p144 = scmp.eq.s32.totalorder %s34, 0
      %p145 = por %p143, %p144
      %s147 = sadd.s32 %s146, 1
      %p150 = scmp.eq.s32.totalorder %s28, 1
      %p151 = scmp.ne.s32.totalorder %s146, %s148
      %p152 = scmp.eq.s32.totalorder %s28, 0
      %p153 = por %p151, %p152
      %p154 = scmp.ne.s32.totalorder %s146, %s148
      %p155 = scmp.eq.s32.totalorder %s33, 1
      %p156 = por %p154, %p155
      %p157 = scmp.ne.s32.totalorder %s148, %s149
      %p158 = scmp.eq.s32.totalorder %s33, 0
      %p159 = por %p157, %p158
      %p160 = scmp.ne.s32.totalorder %s148, %s149
      %p161 = scmp.eq.s32.totalorder %s34, 1
      %p162 = por %p160, %p161
      %p164 = scmp.ne.s32.totalorder %s149, %s163
      %p165 = scmp.eq.s32.totalorder %s34, 0
      %p166 = por %p164, %p165
      %s168 = sadd.s32 %s167, 1
      %p171 = scmp.eq.s32.totalorder %s28, 1
      %p172 = scmp.ne.s32.totalorder %s167, %s169
      %p173 = scmp.eq.s32.totalorder %s28, 0
      %p174 = por %p172, %p173
      %p175 = scmp.ne.s32.totalorder %s167, %s169
      %p176 = scmp.eq.s32.totalorder %s33, 1
      %p177 = por %p175, %p176
      %p178 = scmp.ne.s32.totalorder %s169, %s170
      %p179 = scmp.eq.s32.totalorder %s33, 0
      %p180 = por %p178, %p179
      %p181 = scmp.ne.s32.totalorder %s169, %s170
      %p182 = scmp.eq.s32.totalorder %s34, 1
      %p183 = por %p181, %p182
      %p185 = scmp.ne.s32.totalorder %s170, %s184
      %p186 = scmp.eq.s32.totalorder %s34, 0
      %p187 = por %p185, %p186
      %s189 = sadd.s32 %s188, 1
      %p192 = scmp.eq.s32.totalorder %s28, 1
      %p193 = scmp.ne.s32.totalorder %s188, %s190
      %p194 = scmp.eq.s32.totalorder %s28, 0
      %p195 = por %p193, %p194
      %p196 = scmp.ne.s32.totalorder %s188, %s190
      %p197 = scmp.eq.s32.totalorder %s33, 1
      %p198 = por %p196, %p197
      %p199 = scmp.ne.s32.totalorder %s190, %s191
      %p200 = scmp.eq.s32.totalorder %s33, 0
      %p201 = por %p199, %p200
      %p202 = scmp.ne.s32.totalorder %s190, %s191
      %p203 = scmp.eq.s32.totalorder %s34, 1
      %p204 = por %p202, %p203
      %p206 = scmp.ne.s32.totalorder %s191, %s205
      %p207 = scmp.eq.s32.totalorder %s34, 0
      %p208 = por %p206, %p207
      %s210 = sadd.s32 %s209, 1
      %p213 = scmp.eq.s32.totalorder %s28, 1
      %p214 = scmp.ne.s32.totalorder %s209, %s211
      %p215 = scmp.eq.s32.totalorder %s28, 0
      %p216 = por %p214, %p215
      %p217 = scmp.ne.s32.totalorder %s209, %s211
      %p218 = scmp.eq.s32.totalorder %s33, 1
      %p219 = por %p217, %p218
      %p220 = scmp.ne.s32.totalorder %s211, %s212
      %p221 = scmp.eq.s32.totalorder %s33, 0
      %p222 = por %p220, %p221
      %p223 = scmp.ne.s32.totalorder %s211, %s212
      %p224 = scmp.eq.s32.totalorder %s34, 1
      %p225 = por %p223, %p224
      %p227 = scmp.ne.s32.totalorder %s212, %s226
      %p228 = scmp.eq.s32.totalorder %s34, 0
      %p229 = por %p227, %p228
      %s231 = sadd.s32 %s230, 1
      %p234 = scmp.eq.s32.totalorder %s28, 1
      %p235 = scmp.ne.s32.totalorder %s230, %s232
      %p236 = scmp.eq.s32.totalorder %s28, 0
      %p237 = por %p235, %p236
      %p238 = scmp.ne.s32.totalorder %s230, %s232
      %p239 = scmp.eq.s32.totalorder %s33, 1
      %p240 = por %p238, %p239
      %p241 = scmp.ne.s32.totalorder %s232, %s233
      %p242 = scmp.eq.s32.totalorder %s33, 0
      %p243 = por %p241, %p242
      %p244 = scmp.ne.s32.totalorder %s232, %s233
      %p245 = scmp.eq.s32.totalorder %s34, 1
      %p246 = por %p244, %p245
      %p248 = scmp.ne.s32.totalorder %s233, %s247
      %p249 = scmp.eq.s32.totalorder %s34, 0
      %p250 = por %p248, %p249
      %s252 = sadd.s32 %s251, 1
      %p255 = scmp.eq.s32.totalorder %s28, 1
      %p256 = scmp.ne.s32.totalorder %s251, %s253
      %p257 = scmp.eq.s32.totalorder %s28, 0
      %p258 = por %p256, %p257
      %p259 = scmp.ne.s32.totalorder %s251, %s253
      %p260 = scmp.eq.s32.totalorder %s33, 1
      %p261 = por %p259, %p260
      %p262 = scmp.ne.s32.totalorder %s253, %s254
      %p263 = scmp.eq.s32.totalorder %s33, 0
      %p264 = por %p262, %p263
      %p265 = scmp.ne.s32.totalorder %s253, %s254
      %p266 = scmp.eq.s32.totalorder %s34, 1
      %p267 = por %p265, %p266
      %p269 = scmp.ne.s32.totalorder %s254, %s268
      %p270 = scmp.eq.s32.totalorder %s34, 0
      %p271 = por %p269, %p270
      %s272 = ssub.s32 %s28, %s35
      %p273 = scmp.eq.s32.totalorder %s272, 0
      %s275 = sadd.s32 %s274, 1
      %s276 = scalar_select %p273, %s274, %s275
      %p279 = pneg %p273
      %p280 = scmp.eq.s32.totalorder %s28, 1
      %p281 = por %p279, %p280
      %p282 = scmp.ne.s32.totalorder %s274, %s277
      %p283 = scmp.eq.s32.totalorder %s28, 0
      %p284 = por %p282, %p283
      %p285 = scmp.ne.s32.totalorder %s274, %s277
      %p286 = scmp.eq.s32.totalorder %s33, 1
      %p287 = por %p285, %p286
      %p288 = scmp.ne.s32.totalorder %s277, %s278
      %p289 = scmp.eq.s32.totalorder %s33, 0
      %p290 = por %p288, %p289
      %p291 = scmp.ne.s32.totalorder %s277, %s278
      %p292 = scmp.eq.s32.totalorder %s34, 1
      %p293 = por %p291, %p292
      %p295 = scmp.ne.s32.totalorder %s278, %s294
      %p296 = scmp.eq.s32.totalorder %s34, 0
      %p297 = por %p295, %p296
      %p298 = scmp.le.s32.totalorder 1, %s28
      %p299 = scmp.lt.s32.totalorder %s28, 3
      %p300 = pnand %p298, %p299
      %p301 = pneg %p300
      // Predicated region
      $region9: #{mcsa_layer.1} parent=5 // pred_check
        _
      $region10: #{mcsa_layer.1} parent=5 // pred_check_branch
        %303 = sbr.rel (%p300) target = $region12
      $region11: #{mcsa_layer.1} parent=5 // pred_region
        %s304 = ssub.s32 %s28, 1
        // Predicated region
        $region13: #{mcsa_layer.1} parent=11 // pred_check
          %p305 = pneg %p75
        $region14: #{mcsa_layer.1} parent=11 // pred_check_branch
          %307 = sbr.rel (%p305) target = $region16
        $region15: #{mcsa_layer.1} parent=11 // pred_region
          %s309 = ssub.s32 192, 192
          %310 = vsyncadd [#allocation8], %s309
          %s311 = sshll.u32 [#allocation7], 4
          %s312 = int_to_ptr.vmem [resolvable:$true] %s311
          %317 = dma.hbm_to_vmem [thread:$0]  %s1, 192, %s312, [#allocation8], 64, 64, 4
        $region16: #{mcsa_layer.1} parent=11 // pred_fallthru
          _
        // Predicated region
        $region17: #{mcsa_layer.1} parent=11 // pred_check
          %p318 = pneg %p96
        $region18: #{mcsa_layer.1} parent=11 // pred_check_branch
          %320 = sbr.rel (%p318) target = $region20
        $region19: #{mcsa_layer.1} parent=11 // pred_region
          %s322 = ssub.s32 16, 16
          %323 = vsyncadd [#allocation8], %s322
          %s325 = sshll.u32 [#allocation9], 4
          %s326 = int_to_ptr.vmem [resolvable:$true] %s325
          %328 = dma.hbm_to_vmem [thread:$0]  %s2, 16, %s326, [#allocation8]
        $region20: #{mcsa_layer.1} parent=11 // pred_fallthru
          _
        // Predicated region
        $region21: #{mcsa_layer.1} parent=11 // pred_check
          %p329 = pneg %p117
        $region22: #{mcsa_layer.1} parent=11 // pred_check_branch
          %331 = sbr.rel (%p329) target = $region24
        $region23: #{mcsa_layer.1} parent=11 // pred_region
          %s333 = ssub.s32 512, 512
          %334 = vsyncadd [#allocation11], %s333
          %s335 = sshll.u32 [#allocation10], 4
          %s336 = int_to_ptr.vmem [resolvable:$true] %s335
          %341 = dma.hbm_to_vmem [thread:$0]  %s3, 512, %s336, [#allocation11], 128, 128, 8
        $region24: #{mcsa_layer.1} parent=11 // pred_fallthru
          _
        // Predicated region
        $region25: #{mcsa_layer.1} parent=11 // pred_check
          %p342 = pneg %p138
        $region26: #{mcsa_layer.1} parent=11 // pred_check_branch
          %344 = sbr.rel (%p342) target = $region28
        $region27: #{mcsa_layer.1} parent=11 // pred_region
          %s346 = ssub.s32 192, 192
          %347 = vsyncadd [#allocation11], %s346
          %s348 = sshll.u32 [#allocation12], 4
          %s349 = int_to_ptr.vmem [resolvable:$true] %s348
          %354 = dma.hbm_to_vmem [thread:$0]  %s4, 192, %s349, [#allocation11], 64, 64, 4
        $region28: #{mcsa_layer.1} parent=11 // pred_fallthru
          _
        // Predicated region
        $region29: #{mcsa_layer.1} parent=11 // pred_check
          %p355 = pneg %p159
        $region30: #{mcsa_layer.1} parent=11 // pred_check_branch
          %357 = sbr.rel (%p355) target = $region32
        $region31: #{mcsa_layer.1} parent=11 // pred_region
          %s359 = ssub.s32 16, 16
          %360 = vsyncadd [#allocation14], %s359
          %s362 = sshll.u32 [#allocation13], 4
          %s363 = int_to_ptr.vmem [resolvable:$true] %s362
          %365 = dma.hbm_to_vmem [thread:$0]  %s5, 16, %s363, [#allocation14]
        $region32: #{mcsa_layer.1} parent=11 // pred_fallthru
          _
        // Predicated region
        $region33: #{mcsa_layer.1} parent=11 // pred_check
          %p366 = pneg %p180
        $region34: #{mcsa_layer.1} parent=11 // pred_check_branch
          %368 = sbr.rel (%p366) target = $region36
        $region35: #{mcsa_layer.1} parent=11 // pred_region
          %s370 = ssub.s32 512, 512
          %371 = vsyncadd [#allocation14], %s370
          %s372 = sshll.u32 [#allocation15], 4
          %s373 = int_to_ptr.vmem [resolvable:$true] %s372
          %378 = dma.hbm_to_vmem [thread:$0]  %s6, 512, %s373, [#allocation14], 128, 128, 8
        $region36: #{mcsa_layer.1} parent=11 // pred_fallthru
          _
        // Predicated region
        $region37: #{mcsa_layer.1} parent=11 // pred_check
          %p379 = pneg %p201
        $region38: #{mcsa_layer.1} parent=11 // pred_check_branch
          %381 = sbr.rel (%p379) target = $region40
        $region39: #{mcsa_layer.1} parent=11 // pred_region
          %s383 = ssub.s32 512, 512
          %384 = vsyncadd [#allocation17], %s383
          %s385 = sshll.u32 [#allocation16], 4
          %s386 = int_to_ptr.vmem [resolvable:$true] %s385
          %391 = dma.hbm_to_vmem [thread:$0]  %s7, 512, %s386, [#allocation17], 128, 128, 8
        $region40: #{mcsa_layer.1} parent=11 // pred_fallthru
          _
        // Predicated region
        $region41: #{mcsa_layer.1} parent=11 // pred_check
          %p392 = pneg %p222
        $region42: #{mcsa_layer.1} parent=11 // pred_check_branch
          %394 = sbr.rel (%p392) target = $region44
        $region43: #{mcsa_layer.1} parent=11 // pred_region
          %s396 = ssub.s32 16, 16
          %397 = vsyncadd [#allocation17], %s396
          %s399 = sshll.u32 [#allocation18], 4
          %s400 = int_to_ptr.vmem [resolvable:$true] %s399
          %402 = dma.hbm_to_vmem [thread:$0]  %s8, 16, %s400, [#allocation17]
        $region44: #{mcsa_layer.1} parent=11 // pred_fallthru
          _
        // Predicated region
        $region45: #{mcsa_layer.1} parent=11 // pred_check
          %p403 = pneg %p243
        $region46: #{mcsa_layer.1} parent=11 // pred_check_branch
          %405 = sbr.rel (%p403) target = $region48
        $region47: #{mcsa_layer.1} parent=11 // pred_region
          %s407 = ssub.s32 512, 512
          %408 = vsyncadd [#allocation20], %s407
          %s409 = sshll.u32 [#allocation19], 4
          %s410 = int_to_ptr.vmem [resolvable:$true] %s409
          %415 = dma.hbm_to_vmem [thread:$0]  %s9, 512, %s410, [#allocation20], 16, 16, 1
        $region48: #{mcsa_layer.1} parent=11 // pred_fallthru
          _
        // Predicated region
        $region49: #{mcsa_layer.1} parent=11 // pred_check
          %p416 = pneg %p264
        $region50: #{mcsa_layer.1} parent=11 // pred_check_branch
          %418 = sbr.rel (%p416) target = $region52
        $region51: #{mcsa_layer.1} parent=11 // pred_region
          %s420 = ssub.s32 512, 512
          %421 = vsyncadd [#allocation20], %s420
          %s422 = sshll.u32 [#allocation21], 4
          %s423 = int_to_ptr.vmem [resolvable:$true] %s422
          %428 = dma.hbm_to_vmem [thread:$0]  %s10, 512, %s423, [#allocation20], 128, 128, 8
        $region52: #{mcsa_layer.1} parent=11 // pred_fallthru
          _
      $region12: #{mcsa_layer.1} parent=5 // pred_fallthru
        _
      %p429 = scmp.lt.s32.totalorder %s28, 2
      // Predicated region
      $region53: #{mcsa_layer.1} parent=5 // pred_check
        %p430 = pneg %p429
      $region54: #{mcsa_layer.1} parent=5 // pred_check_branch
        %432 = sbr.rel (%p430) target = $region56
      $region55: #{mcsa_layer.1} parent=5 // pred_region
        // Predicated region
        $region57: #{mcsa_layer.1} parent=55 // pred_check
          %p433 = pneg %p48
        $region58: #{mcsa_layer.1} parent=55 // pred_check_branch
          %435 = sbr.rel (%p433) target = $region60
        $region59: #{mcsa_layer.1} parent=55 // pred_region
          %s436 = sand.u32 %s38, 1
          %s437 = scalar_lea.sflag [#allocation5], %s436
          %s438 = sand.u32 %s38, 1
          %s439 = smul.addr %s438, 64
          %s440 = scalar_lea.vmem [#allocation4], %s439
          %s442 = ssub.s32 1024, 1024
          %443 = vsyncadd %s437, %s442
          %s444 = smul.addr %s28, 8
          %s445 = smul.addr %s444, 128
          %s446 = scalar_lea.hbm %s0, %s445
          %s447 = sshll.u32 %s440, 4
          %s448 = int_to_ptr.vmem [resolvable:$true] %s447
          %453 = dma.hbm_to_vmem [thread:$0]  %s446, 1024, %s448, %s437, 128, 128, 8
        $region60: #{mcsa_layer.1} parent=55 // pred_fallthru
          _
      $region56: #{mcsa_layer.1} parent=5 // pred_fallthru
        _
      %p454 = scmp.le.s32.totalorder 1, %s28
      %p455 = scmp.lt.s32.totalorder %s28, 3
      %p456 = pnand %p454, %p455
      %p457 = pneg %p456
      // Predicated region
      $region61: #{mcsa_layer.1} parent=5 // pred_check
        _
      $region62: #{mcsa_layer.1} parent=5 // pred_check_branch
        %459 = sbr.rel (%p456) target = $region64
      $region63: #{mcsa_layer.1} parent=5 // pred_region
        %s460 = ssub.s32 %s28, 1
        %s461 = sand.u32 %s41, 1
        %s462 = scalar_lea.sflag [#allocation5], %s461
        %s463 = sand.u32 %s41, 1
        %s464 = smul.addr %s463, 64
        %s465 = scalar_lea.vmem [#allocation4], %s464
        // Predicated region
        $region65: #{mcsa_layer.1} parent=63 // pred_check
          %p466 = pneg %p54
        $region66: #{mcsa_layer.1} parent=63 // pred_check_branch
          %468 = sbr.rel (%p466) target = $region68
        $region67: #{mcsa_layer.1} parent=63 // pred_region
          %469 = dma.done %s462, 1024
        $region68: #{mcsa_layer.1} parent=63 // pred_fallthru
          _
        // Predicated region
        $region69: #{mcsa_layer.1} parent=63 // pred_check
          %p470 = pneg %p75
        $region70: #{mcsa_layer.1} parent=63 // pred_check_branch
          %472 = sbr.rel (%p470) target = $region72
        $region71: #{mcsa_layer.1} parent=63 // pred_region
          %473 = dma.done [#allocation8], 192
        $region72: #{mcsa_layer.1} parent=63 // pred_fallthru
          _
        // Predicated region
        $region73: #{mcsa_layer.1} parent=63 // pred_check
          %p474 = pneg %p96
        $region74: #{mcsa_layer.1} parent=63 // pred_check_branch
          %476 = sbr.rel (%p474) target = $region76
        $region75: #{mcsa_layer.1} parent=63 // pred_region
          %477 = dma.done [#allocation8], 16
        $region76: #{mcsa_layer.1} parent=63 // pred_fallthru
          _
        // Predicated region
        $region77: #{mcsa_layer.1} parent=63 // pred_check
          %p478 = pneg %p117
        $region78: #{mcsa_layer.1} parent=63 // pred_check_branch
          %480 = sbr.rel (%p478) target = $region80
        $region79: #{mcsa_layer.1} parent=63 // pred_region
          %481 = dma.done [#allocation11], 512
        $region80: #{mcsa_layer.1} parent=63 // pred_fallthru
          _
        // Predicated region
        $region81: #{mcsa_layer.1} parent=63 // pred_check
          %p482 = pneg %p138
        $region82: #{mcsa_layer.1} parent=63 // pred_check_branch
          %484 = sbr.rel (%p482) target = $region84
        $region83: #{mcsa_layer.1} parent=63 // pred_region
          %485 = dma.done [#allocation11], 192
        $region84: #{mcsa_layer.1} parent=63 // pred_fallthru
          _
        // Predicated region
        $region85: #{mcsa_layer.1} parent=63 // pred_check
          %p486 = pneg %p159
        $region86: #{mcsa_layer.1} parent=63 // pred_check_branch
          %488 = sbr.rel (%p486) target = $region88
        $region87: #{mcsa_layer.1} parent=63 // pred_region
          %489 = dma.done [#allocation14], 16
        $region88: #{mcsa_layer.1} parent=63 // pred_fallthru
          _
        // Predicated region
        $region89: #{mcsa_layer.1} parent=63 // pred_check
          %p490 = pneg %p180
        $region90: #{mcsa_layer.1} parent=63 // pred_check_branch
          %492 = sbr.rel (%p490) target = $region92
        $region91: #{mcsa_layer.1} parent=63 // pred_region
          %493 = dma.done [#allocation14], 512
        $region92: #{mcsa_layer.1} parent=63 // pred_fallthru
          _
        // Predicated region
        $region93: #{mcsa_layer.1} parent=63 // pred_check
          %p494 = pneg %p201
        $region94: #{mcsa_layer.1} parent=63 // pred_check_branch
          %496 = sbr.rel (%p494) target = $region96
        $region95: #{mcsa_layer.1} parent=63 // pred_region
          %497 = dma.done [#allocation17], 512
        $region96: #{mcsa_layer.1} parent=63 // pred_fallthru
          _
        // Predicated region
        $region97: #{mcsa_layer.1} parent=63 // pred_check
          %p498 = pneg %p222
        $region98: #{mcsa_layer.1} parent=63 // pred_check_branch
          %500 = sbr.rel (%p498) target = $region100
        $region99: #{mcsa_layer.1} parent=63 // pred_region
          %501 = dma.done [#allocation17], 16
        $region100: #{mcsa_layer.1} parent=63 // pred_fallthru
          _
        // Predicated region
        $region101: #{mcsa_layer.1} parent=63 // pred_check
          %p502 = pneg %p243
        $region102: #{mcsa_layer.1} parent=63 // pred_check_branch
          %504 = sbr.rel (%p502) target = $region104
        $region103: #{mcsa_layer.1} parent=63 // pred_region
          %505 = dma.done [#allocation20], 512
        $region104: #{mcsa_layer.1} parent=63 // pred_fallthru
          _
        // Predicated region
        $region105: #{mcsa_layer.1} parent=63 // pred_check
          %p506 = pneg %p264
        $region106: #{mcsa_layer.1} parent=63 // pred_check_branch
          %508 = sbr.rel (%p506) target = $region108
        $region107: #{mcsa_layer.1} parent=63 // pred_region
          %509 = dma.done [#allocation20], 512
        $region108: #{mcsa_layer.1} parent=63 // pred_fallthru
          _
        %s510 = sand.u32 %s41, 1
        %s511 = scalar_lea.sflag [#allocation5], %s510
        %s512 = sand.u32 %s41, 1
        %s513 = smul.addr %s512, 64
        %s514 = scalar_lea.vmem [#allocation4], %s513
        %p515 = pneg %p54
        %p516 = pneg %p51
        %p517 = pneg %p75
        %p518 = pneg %p72
        %p519 = pneg %p96
        %p520 = pneg %p93
        %p521 = pneg %p117
        %p522 = pneg %p114
        %p523 = pneg %p138
        %p524 = pneg %p135
        %p525 = pneg %p159
        %p526 = pneg %p156
        %p527 = pneg %p180
        %p528 = pneg %p177
        %p529 = pneg %p201
        %p530 = pneg %p198
        %p531 = pneg %p222
        %p532 = pneg %p219
        %p533 = pneg %p243
        %p534 = pneg %p240
        %p535 = pneg %p264
        %p536 = pneg %p261
        %p537 = pneg %p290
        %p538 = pneg %p287
        %s539 = sand.u32 %s277, 1
        %s540 = scalar_lea.sflag [#allocation6], %s539
        %s541 = sand.u32 %s277, 1
        %s542 = smul.addr %s541, 64
        %s543 = scalar_lea.vmem [#allocation22], %s542
        %vm545 = vcmask 261120
        %546 = vst.msk [vmem:[#allocation2] sm:$0xff] %vm545, 0.0
        %vm547 = vcmask 254976
        %548 = vst.msk [vmem:[#allocation2 + $0x8] sm:$0x3] %vm547, 0.0
        %s549 = scalar_lea.vmem [#allocation2], 144
        %550 = vst.msk [vmem:[%s549] sm:$0xff] %vm545, 0.0
        %551 = vst.msk [vmem:[%s549 + $0x8] sm:$0x3] %vm547, 0.0
        %s552 = scalar_lea.vmem [#allocation2], 16
        %vm553 = vcmask 253952
        %554 = vst.msk [vmem:[%s552] sm:$0x1] %vm553, 0.0
        %555 = vst.msk [vmem:[%s552 + $0x10] sm:$0x1] %vm553, 0.0
        %556 = vst.msk [vmem:[%s552 + $0x20] sm:$0x1] %vm553, 0.0
        %557 = vst.msk [vmem:[%s552 + $0x30] sm:$0x1] %vm553, 0.0
        %558 = vst.msk [vmem:[%s552 + $0x40] sm:$0x1] %vm553, 0.0
        %559 = vst.msk [vmem:[%s552 + $0x50] sm:$0x1] %vm553, 0.0
        %560 = vst.msk [vmem:[%s552 + $0x60] sm:$0x1] %vm553, 0.0
        %561 = vst.msk [vmem:[%s552 + $0x70] sm:$0x1] %vm553, 0.0
        %562 = vst.msk [vmem:[%s552 + $0x9] sm:$0x1] %vm553, 0.0
        %563 = vst.msk [vmem:[%s552 + $0x19] sm:$0x1] %vm553, 0.0
        %564 = vst.msk [vmem:[%s552 + $0x29] sm:$0x1] %vm553, 0.0
        %565 = vst.msk [vmem:[%s552 + $0x39] sm:$0x1] %vm553, 0.0
        %566 = vst.msk [vmem:[%s552 + $0x49] sm:$0x1] %vm553, 0.0
        %567 = vst.msk [vmem:[%s552 + $0x59] sm:$0x1] %vm553, 0.0
        %568 = vst.msk [vmem:[%s552 + $0x69] sm:$0x1] %vm553, 0.0
        %569 = vst.msk [vmem:[%s552 + $0x79] sm:$0x1] %vm553, 0.0
        %vm570 = vcmask 64512
        %571 = vst.msk [vmem:[#allocation3] sm:$0xff] %vm570, 0.0
        %vm572 = vcmask 58368
        %573 = vst.msk [vmem:[#allocation3 + $0x8] sm:$0x3] %vm572, 0.0
        %s574 = scalar_lea.vmem [#allocation3], 144
        %575 = vst.msk [vmem:[%s574] sm:$0xff] %vm570, 0.0
        %576 = vst.msk [vmem:[%s574 + $0x8] sm:$0x3] %vm572, 0.0
        %s577 = scalar_lea.vmem [#allocation3], 16
        %vm578 = vcmask 57344
        %579 = vst.msk [vmem:[%s577] sm:$0x1] %vm578, 0.0
        %580 = vst.msk [vmem:[%s577 + $0x10] sm:$0x1] %vm578, 0.0
        %581 = vst.msk [vmem:[%s577 + $0x20] sm:$0x1] %vm578, 0.0
        %582 = vst.msk [vmem:[%s577 + $0x30] sm:$0x1] %vm578, 0.0
        %583 = vst.msk [vmem:[%s577 + $0x40] sm:$0x1] %vm578, 0.0
        %584 = vst.msk [vmem:[%s577 + $0x50] sm:$0x1] %vm578, 0.0
        %585 = vst.msk [vmem:[%s577 + $0x60] sm:$0x1] %vm578, 0.0
        %586 = vst.msk [vmem:[%s577 + $0x70] sm:$0x1] %vm578, 0.0
        %587 = vst.msk [vmem:[%s577 + $0x9] sm:$0x1] %vm578, 0.0
        %588 = vst.msk [vmem:[%s577 + $0x19] sm:$0x1] %vm578, 0.0
        %589 = vst.msk [vmem:[%s577 + $0x29] sm:$0x1] %vm578, 0.0
        %590 = vst.msk [vmem:[%s577 + $0x39] sm:$0x1] %vm578, 0.0
        %591 = vst.msk [vmem:[%s577 + $0x49] sm:$0x1] %vm578, 0.0
        %592 = vst.msk [vmem:[%s577 + $0x59] sm:$0x1] %vm578, 0.0
        %593 = vst.msk [vmem:[%s577 + $0x69] sm:$0x1] %vm578, 0.0
        %594 = vst.msk [vmem:[%s577 + $0x79] sm:$0x1] %vm578, 0.0
        %v595 = vld [vmem:[%s465] sm:$0xff]
        %v596 = vld [vmem:[%s465 + $0x8] sm:$0xff]
        %v597 = vld [vmem:[%s465 + $0x10] sm:$0xff]
        %v598 = vld [vmem:[%s465 + $0x18] sm:$0xff]
        %v599 = vld [vmem:[%s465 + $0x20] sm:$0xff]
        %v600 = vld [vmem:[%s465 + $0x28] sm:$0xff]
        %v601 = vld [vmem:[%s465 + $0x30] sm:$0xff]
        %v602 = vld [vmem:[%s465 + $0x38] sm:$0xff]
        %v603 = vld [vmem:[#allocation7] sm:$0x7]
        %v604 = vld [vmem:[#allocation7 + $0x4] sm:$0x7]
        %v605 = vld [vmem:[#allocation7 + $0x8] sm:$0x7]
        %v606 = vld [vmem:[#allocation9] sm:$0x1]
        %607 = vst.msk [vmem:[%s552 + $0x1] sm:$0xff] %vm545, %v595
        %608 = vst.msk [vmem:[%s552 + $0x11] sm:$0xff] %vm545, %v596
        %609 = vst.msk [vmem:[%s552 + $0x21] sm:$0xff] %vm545, %v597
        %610 = vst.msk [vmem:[%s552 + $0x31] sm:$0xff] %vm545, %v598
        %611 = vst.msk [vmem:[%s552 + $0x41] sm:$0xff] %vm545, %v599
        %612 = vst.msk [vmem:[%s552 + $0x51] sm:$0xff] %vm545, %v600
        %613 = vst.msk [vmem:[%s552 + $0x61] sm:$0xff] %vm545, %v601
        %614 = vst.msk [vmem:[%s552 + $0x71] sm:$0xff] %vm545, %v602
        %v615 = vld [vmem:[#allocation2] sm:$0xff]
        %v616 = vld [vmem:[#allocation2 + $0x10] sm:$0xff]
        %v617 = vld [vmem:[#allocation2 + $0x20] sm:$0xff]
        %v618 = vld [vmem:[#allocation2 + $0x30] sm:$0xff]
        %v619 = vld [vmem:[#allocation2 + $0x40] sm:$0xff]
        %v620 = vld [vmem:[#allocation2 + $0x50] sm:$0xff]
        %v621 = vld [vmem:[#allocation2 + $0x60] sm:$0xff]
        %v622 = vld [vmem:[#allocation2 + $0x70] sm:$0xff]
        %v623 = vlaneseq
        %v624 = vshrl.u32 %v623, 7
        %v625 = vsub.s32 0, %v624
        %v626 = vrot.slane %v603, %v625
        %v627 = vmul.f32 %v615, %v626
        %v628 = vmul.f32 %v616, %v626
        %v629 = vmul.f32 %v617, %v626
        %v630 = vmul.f32 %v618, %v626
        %v631 = vmul.f32 %v619, %v626
        %v632 = vmul.f32 %v620, %v626
        %v633 = vmul.f32 %v621, %v626
        %v634 = vmul.f32 %v622, %v626
        %v635 = vadd.f32 %v627, 0.0
        %v636 = vadd.f32 %v628, 0.0
        %v637 = vadd.f32 %v629, 0.0
        %v638 = vadd.f32 %v630, 0.0
        %v639 = vadd.f32 %v631, 0.0
        %v640 = vadd.f32 %v632, 0.0
        %v641 = vadd.f32 %v633, 0.0
        %v642 = vadd.f32 %v634, 0.0
        %v643 = vld [vmem:[#allocation2 + $0x1] sm:$0xff]
        %v644 = vld [vmem:[#allocation2 + $0x11] sm:$0xff]
        %v645 = vld [vmem:[#allocation2 + $0x21] sm:$0xff]
        %v646 = vld [vmem:[#allocation2 + $0x31] sm:$0xff]
        %v647 = vld [vmem:[#allocation2 + $0x41] sm:$0xff]
        %v648 = vld [vmem:[#allocation2 + $0x51] sm:$0xff]
        %v649 = vld [vmem:[#allocation2 + $0x61] sm:$0xff]
        %v650 = vld [vmem:[#allocation2 + $0x71] sm:$0xff]
        %v651 = vlaneseq
        %v652 = vshrl.u32 %v651, 7
        %v653 = vsub.s32 1, %v652
        %v654 = vrot.slane %v603, %v653
        %v655 = vmul.f32 %v643, %v654
        %v656 = vmul.f32 %v644, %v654
        %v657 = vmul.f32 %v645, %v654
        %v658 = vmul.f32 %v646, %v654
        %v659 = vmul.f32 %v647, %v654
        %v660 = vmul.f32 %v648, %v654
        %v661 = vmul.f32 %v649, %v654
        %v662 = vmul.f32 %v650, %v654
        %v663 = vadd.f32 %v635, %v655
        %v664 = vadd.f32 %v636, %v656
        %v665 = vadd.f32 %v637, %v657
        %v666 = vadd.f32 %v638, %v658
        %v667 = vadd.f32 %v639, %v659
        %v668 = vadd.f32 %v640, %v660
        %v669 = vadd.f32 %v641, %v661
        %v670 = vadd.f32 %v642, %v662
        %v671 = vld [vmem:[#allocation2 + $0x2] sm:$0xff]
        %v672 = vld [vmem:[#allocation2 + $0x12] sm:$0xff]
        %v673 = vld [vmem:[#allocation2 + $0x22] sm:$0xff]
        %v674 = vld [vmem:[#allocation2 + $0x32] sm:$0xff]
        %v675 = vld [vmem:[#allocation2 + $0x42] sm:$0xff]
        %v676 = vld [vmem:[#allocation2 + $0x52] sm:$0xff]
        %v677 = vld [vmem:[#allocation2 + $0x62] sm:$0xff]
        %v678 = vld [vmem:[#allocation2 + $0x72] sm:$0xff]
        %v679 = vlaneseq
        %v680 = vshrl.u32 %v679, 7
        %v681 = vsub.s32 2, %v680
        %v682 = vrot.slane %v603, %v681
        %v683 = vmul.f32 %v671, %v682
        %v684 = vmul.f32 %v672, %v682
        %v685 = vmul.f32 %v673, %v682
        %v686 = vmul.f32 %v674, %v682
        %v687 = vmul.f32 %v675, %v682
        %v688 = vmul.f32 %v676, %v682
        %v689 = vmul.f32 %v677, %v682
        %v690 = vmul.f32 %v678, %v682
        %v691 = vadd.f32 %v663, %v683
        %v692 = vadd.f32 %v664, %v684
        %v693 = vadd.f32 %v665, %v685
        %v694 = vadd.f32 %v666, %v686
        %v695 = vadd.f32 %v667, %v687
        %v696 = vadd.f32 %v668, %v688
        %v697 = vadd.f32 %v669, %v689
        %v698 = vadd.f32 %v670, %v690
        %v699 = vld [vmem:[%s552] sm:$0xff]
        %v700 = vld [vmem:[%s552 + $0x10] sm:$0xff]
        %v701 = vld [vmem:[%s552 + $0x20] sm:$0xff]
        %v702 = vld [vmem:[%s552 + $0x30] sm:$0xff]
        %v703 = vld [vmem:[%s552 + $0x40] sm:$0xff]
        %v704 = vld [vmem:[%s552 + $0x50] sm:$0xff]
        %v705 = vld [vmem:[%s552 + $0x60] sm:$0xff]
        %v706 = vld [vmem:[%s552 + $0x70] sm:$0xff]
        %v707 = vlaneseq
        %v708 = vshrl.u32 %v707, 7
        %v709 = vsub.s32 0, %v708
        %v710 = vrot.slane %v604, %v709
        %v711 = vmul.f32 %v699, %v710
        %v712 = vmul.f32 %v700, %v710
        %v713 = vmul.f32 %v701, %v710
        %v714 = vmul.f32 %v702, %v710
        %v715 = vmul.f32 %v703, %v710
        %v716 = vmul.f32 %v704, %v710
        %v717 = vmul.f32 %v705, %v710
        %v718 = vmul.f32 %v706, %v710
        %v719 = vadd.f32 %v691, %v711
        %v720 = vadd.f32 %v692, %v712
        %v721 = vadd.f32 %v693, %v713
        %v722 = vadd.f32 %v694, %v714
        %v723 = vadd.f32 %v695, %v715
        %v724 = vadd.f32 %v696, %v716
        %v725 = vadd.f32 %v697, %v717
        %v726 = vadd.f32 %v698, %v718
        %v727 = vld [vmem:[%s552 + $0x1] sm:$0xff]
        %v728 = vld [vmem:[%s552 + $0x11] sm:$0xff]
        %v729 = vld [vmem:[%s552 + $0x21] sm:$0xff]
        %v730 = vld [vmem:[%s552 + $0x31] sm:$0xff]
        %v731 = vld [vmem:[%s552 + $0x41] sm:$0xff]
        %v732 = vld [vmem:[%s552 + $0x51] sm:$0xff]
        %v733 = vld [vmem:[%s552 + $0x61] sm:$0xff]
        %v734 = vld [vmem:[%s552 + $0x71] sm:$0xff]
        %v735 = vlaneseq
        %v736 = vshrl.u32 %v735, 7
        %v737 = vsub.s32 1, %v736
        %v738 = vrot.slane %v604, %v737
        %v739 = vmul.f32 %v727, %v738
        %v740 = vmul.f32 %v728, %v738
        %v741 = vmul.f32 %v729, %v738
        %v742 = vmul.f32 %v730, %v738
        %v743 = vmul.f32 %v731, %v738
        %v744 = vmul.f32 %v732, %v738
        %v745 = vmul.f32 %v733, %v738
        %v746 = vmul.f32 %v734, %v738
        %v747 = vadd.f32 %v719, %v739
        %v748 = vadd.f32 %v720, %v740
        %v749 = vadd.f32 %v721, %v741
        %v750 = vadd.f32 %v722, %v742
        %v751 = vadd.f32 %v723, %v743
        %v752 = vadd.f32 %v724, %v744
        %v753 = vadd.f32 %v725, %v745
        %v754 = vadd.f32 %v726, %v746
        %v755 = vld [vmem:[%s552 + $0x2] sm:$0xff]
        %v756 = vld [vmem:[%s552 + $0x12] sm:$0xff]
        %v757 = vld [vmem:[%s552 + $0x22] sm:$0xff]
        %v758 = vld [vmem:[%s552 + $0x32] sm:$0xff]
        %v759 = vld [vmem:[%s552 + $0x42] sm:$0xff]
        %v760 = vld [vmem:[%s552 + $0x52] sm:$0xff]
        %v761 = vld [vmem:[%s552 + $0x62] sm:$0xff]
        %v762 = vld [vmem:[%s552 + $0x72] sm:$0xff]
        %v763 = vlaneseq
        %v764 = vshrl.u32 %v763, 7
        %v765 = vsub.s32 2, %v764
        %v766 = vrot.slane %v604, %v765
        %v767 = vmul.f32 %v755, %v766
        %v768 = vmul.f32 %v756, %v766
        %v769 = vmul.f32 %v757, %v766
        %v770 = vmul.f32 %v758, %v766
        %v771 = vmul.f32 %v759, %v766
        %v772 = vmul.f32 %v760, %v766
        %v773 = vmul.f32 %v761, %v766
        %v774 = vmul.f32 %v762, %v766
        %v775 = vadd.f32 %v747, %v767
        %v776 = vadd.f32 %v748, %v768
        %v777 = vadd.f32 %v749, %v769
        %v778 = vadd.f32 %v750, %v770
        %v779 = vadd.f32 %v751, %v771
        %v780 = vadd.f32 %v752, %v772
        %v781 = vadd.f32 %v753, %v773
        %v782 = vadd.f32 %v754, %v774
        %s783 = scalar_lea.vmem [#allocation2], 32
        %v784 = vld [vmem:[%s783] sm:$0xff]
        %v785 = vld [vmem:[%s783 + $0x10] sm:$0xff]
        %v786 = vld [vmem:[%s783 + $0x20] sm:$0xff]
        %v787 = vld [vmem:[%s783 + $0x30] sm:$0xff]
        %v788 = vld [vmem:[%s783 + $0x40] sm:$0xff]
        %v789 = vld [vmem:[%s783 + $0x50] sm:$0xff]
        %v790 = vld [vmem:[%s783 + $0x60] sm:$0xff]
        %v791 = vld [vmem:[%s783 + $0x70] sm:$0xff]
        %v792 = vlaneseq
        %v793 = vshrl.u32 %v792, 7
        %v794 = vsub.s32 0, %v793
        %v795 = vrot.slane %v605, %v794
        %v796 = vmul.f32 %v784, %v795
        %v797 = vmul.f32 %v785, %v795
        %v798 = vmul.f32 %v786, %v795
        %v799 = vmul.f32 %v787, %v795
        %v800 = vmul.f32 %v788, %v795
        %v801 = vmul.f32 %v789, %v795
        %v802 = vmul.f32 %v790, %v795
        %v803 = vmul.f32 %v791, %v795
        %v804 = vadd.f32 %v775, %v796
        %v805 = vadd.f32 %v776, %v797
        %v806 = vadd.f32 %v777, %v798
        %v807 = vadd.f32 %v778, %v799
        %v808 = vadd.f32 %v779, %v800
        %v809 = vadd.f32 %v780, %v801
        %v810 = vadd.f32 %v781, %v802
        %v811 = vadd.f32 %v782, %v803
        %v812 = vld [vmem:[%s783 + $0x1] sm:$0xff]
        %v813 = vld [vmem:[%s783 + $0x11] sm:$0xff]
        %v814 = vld [vmem:[%s783 + $0x21] sm:$0xff]
        %v815 = vld [vmem:[%s783 + $0x31] sm:$0xff]
        %v816 = vld [vmem:[%s783 + $0x41] sm:$0xff]
        %v817 = vld [vmem:[%s783 + $0x51] sm:$0xff]
        %v818 = vld [vmem:[%s783 + $0x61] sm:$0xff]
        %v819 = vld [vmem:[%s783 + $0x71] sm:$0xff]
        %v820 = vlaneseq
        %v821 = vshrl.u32 %v820, 7
        %v822 = vsub.s32 1, %v821
        %v823 = vrot.slane %v605, %v822
        %v824 = vmul.f32 %v812, %v823
        %v825 = vmul.f32 %v813, %v823
        %v826 = vmul.f32 %v814, %v823
        %v827 = vmul.f32 %v815, %v823
        %v828 = vmul.f32 %v816, %v823
        %v829 = vmul.f32 %v817, %v823
        %v830 = vmul.f32 %v818, %v823
        %v831 = vmul.f32 %v819, %v823
        %v832 = vadd.f32 %v804, %v824
        %v833 = vadd.f32 %v805, %v825
        %v834 = vadd.f32 %v806, %v826
        %v835 = vadd.f32 %v807, %v827
        %v836 = vadd.f32 %v808, %v828
        %v837 = vadd.f32 %v809, %v829
        %v838 = vadd.f32 %v810, %v830
        %v839 = vadd.f32 %v811, %v831
        %v840 = vld [vmem:[%s783 + $0x2] sm:$0xff]
        %v841 = vld [vmem:[%s783 + $0x12] sm:$0xff]
        %v842 = vld [vmem:[%s783 + $0x22] sm:$0xff]
        %v843 = vld [vmem:[%s783 + $0x32] sm:$0xff]
        %v844 = vld [vmem:[%s783 + $0x42] sm:$0xff]
        %v845 = vld [vmem:[%s783 + $0x52] sm:$0xff]
        %v846 = vld [vmem:[%s783 + $0x62] sm:$0xff]
        %v847 = vld [vmem:[%s783 + $0x72] sm:$0xff]
        %v848 = vlaneseq
        %v849 = vshrl.u32 %v848, 7
        %v850 = vsub.s32 2, %v849
        %v851 = vrot.slane %v605, %v850
        %v852 = vmul.f32 %v840, %v851
        %v853 = vmul.f32 %v841, %v851
        %v854 = vmul.f32 %v842, %v851
        %v855 = vmul.f32 %v843, %v851
        %v856 = vmul.f32 %v844, %v851
        %v857 = vmul.f32 %v845, %v851
        %v858 = vmul.f32 %v846, %v851
        %v859 = vmul.f32 %v847, %v851
        %v860 = vadd.f32 %v832, %v852
        %v861 = vadd.f32 %v833, %v853
        %v862 = vadd.f32 %v834, %v854
        %v863 = vadd.f32 %v835, %v855
        %v864 = vadd.f32 %v836, %v856
        %v865 = vadd.f32 %v837, %v857
        %v866 = vadd.f32 %v838, %v858
        %v867 = vadd.f32 %v839, %v859
        %v869 = vlaneseq
        %v870 = vshrl.u32 %v869, 7
        %v871 = vsub.s32 0, %v870
        %v872 = vrot.slane %v606, %v871
        %v874 = vadd.f32 %v860, %v872
        %v875 = vadd.f32 %v861, %v872
        %v876 = vadd.f32 %v862, %v872
        %v877 = vadd.f32 %v863, %v872
        %v878 = vadd.f32 %v864, %v872
        %v879 = vadd.f32 %v865, %v872
        %v880 = vadd.f32 %v866, %v872
        %v881 = vadd.f32 %v867, %v872
        %v882 = vpack.c.bf16 %v875, %v874
        %v883 = vpack.c.bf16 %v877, %v876
        %v884 = vpack.c.bf16 %v879, %v878
        %v885 = vpack.c.bf16 %v881, %v880
        %v886 = vld [vmem:[#allocation10] sm:$0xff]
        %v887 = vld [vmem:[#allocation10 + $0x8] sm:$0xff]
        %v888 = vld [vmem:[#allocation10 + $0x10] sm:$0xff]
        %v889 = vld [vmem:[#allocation10 + $0x18] sm:$0xff]
        %v890 = vpack.c.bf16 %v887, %v886
        %v891 = vpack.c.bf16 %v889, %v888
        %v893 = vsel %vm545, %v882, 0
        %v896 = vsel %vm545, %v883, 0
        %v899 = vsel %vm545, %v884, 0
        %v902 = vsel %vm545, %v885, 0
        %904 = vmatprep.subr.bf16.mxu0 0
        %905 = vmatpush1.bf16.msra.mxu0 %v890
        %906 = vmatprep.subr.bf16.mxu0 0
        %907 = vmatpush1.bf16.msra.mxu0 %v891
        %908 = vmatprep.subr.bf16.mxu0 0
        %909 = vmatpush1.bf16.msra.mxu0 0
        %910 = vmatprep.subr.bf16.mxu0 0
        %911 = vmatpush1.bf16.msra.mxu0 0
        %912 = vmatprep.subr.bf16.mxu0 0
        %913 = vmatpush1.bf16.msra.mxu0 0
        %914 = vmatprep.subr.bf16.mxu0 0
        %915 = vmatpush1.bf16.msra.mxu0 0
        %916 = vmatprep.subr.bf16.mxu0 0
        %917 = vmatpush1.bf16.msra.mxu0 0
        %918 = vmatprep.subr.bf16.mxu0 0
        %919 = vmatpush1.bf16.msra.mxu0 0
        %920 = vmatprep.subr.bf16.mxu0 0
        %921 = vmatpush1.bf16.msra.mxu0 0
        %922 = vmatprep.subr.bf16.mxu0 0
        %923 = vmatpush1.bf16.msra.mxu0 0
        %924 = vmatprep.subr.bf16.mxu0 0
        %925 = vmatpush1.bf16.msra.mxu0 0
        %926 = vmatprep.subr.bf16.mxu0 0
        %927 = vmatpush1.bf16.msra.mxu0 0
        %928 = vmatprep.subr.bf16.mxu0 0
        %929 = vmatpush1.bf16.msra.mxu0 0
        %930 = vmatprep.subr.bf16.mxu0 0
        %931 = vmatpush1.bf16.msra.mxu0 0
        %932 = vmatprep.subr.bf16.mxu0 0
        %933 = vmatpush1.bf16.msra.mxu0 0
        %934 = vmatprep.subr.bf16.mxu0 0
        %935 = vmatpush1.bf16.msra.mxu0 0
        %936 = vmatprep.mubr.bf16.mxu0 0
        %937 = vmatmul.mubr.bf16.gmra.mrb[0].mxu0 %v893
        %v938 = vpop.f32.mrb[0].mxu0
        %v939 = vadd.f32 0.0, %v938
        %v940 = vpop.f32.mrb[0].mxu0
        %v941 = vpop.f32.mrb[0].mxu0
        %v942 = vadd.f32 0.0, %v941
        %v943 = vpop.f32.mrb[0].mxu0
        %944 = vmatprep.mubr.bf16.mxu0 0
        %945 = vmatmul.mubr.bf16.gmra.mrb[0].mxu0 %v896
        %v946 = vpop.f32.mrb[0].mxu0
        %v947 = vadd.f32 0.0, %v946
        %v948 = vpop.f32.mrb[0].mxu0
        %v949 = vpop.f32.mrb[0].mxu0
        %v950 = vadd.f32 0.0, %v949
        %v951 = vpop.f32.mrb[0].mxu0
        %952 = vmatprep.mubr.bf16.mxu0 0
        %953 = vmatmul.mubr.bf16.gmra.mrb[0].mxu0 %v899
        %v954 = vpop.f32.mrb[0].mxu0
        %v955 = vadd.f32 0.0, %v954
        %v956 = vpop.f32.mrb[0].mxu0
        %v957 = vpop.f32.mrb[0].mxu0
        %v958 = vadd.f32 0.0, %v957
        %v959 = vpop.f32.mrb[0].mxu0
        %960 = vmatprep.mubr.bf16.mxu0 0
        %961 = vmatmul.mubr.bf16.gmra.mrb[0].mxu0 %v902
        %v962 = vpop.f32.mrb[0].mxu0
        %v963 = vadd.f32 0.0, %v962
        %v964 = vpop.f32.mrb[0].mxu0
        %v965 = vpop.f32.mrb[0].mxu0
        %v966 = vadd.f32 0.0, %v965
        %v967 = vpop.f32.mrb[0].mxu0
        %968 = vdwg.mxu0
        %v969 = vmax.f32 %v939, 0.0
        %v970 = vmax.f32 %v942, 0.0
        %v971 = vmax.f32 %v947, 0.0
        %v972 = vmax.f32 %v950, 0.0
        %v973 = vmax.f32 %v955, 0.0
        %v974 = vmax.f32 %v958, 0.0
        %v975 = vmax.f32 %v963, 0.0
        %v976 = vmax.f32 %v966, 0.0
        %v977 = vld [vmem:[#allocation12] sm:$0x7]
        %v978 = vld [vmem:[#allocation12 + $0x4] sm:$0x7]
        %v979 = vld [vmem:[#allocation12 + $0x8] sm:$0x7]
        %v980 = vld [vmem:[#allocation13] sm:$0x1]
        %981 = vst.msk [vmem:[%s552 + $0x1] sm:$0xff] %vm545, %v969
        %982 = vst.msk [vmem:[%s552 + $0x11] sm:$0xff] %vm545, %v970
        %983 = vst.msk [vmem:[%s552 + $0x21] sm:$0xff] %vm545, %v971
        %984 = vst.msk [vmem:[%s552 + $0x31] sm:$0xff] %vm545, %v972
        %985 = vst.msk [vmem:[%s552 + $0x41] sm:$0xff] %vm545, %v973
        %986 = vst.msk [vmem:[%s552 + $0x51] sm:$0xff] %vm545, %v974
        %987 = vst.msk [vmem:[%s552 + $0x61] sm:$0xff] %vm545, %v975
        %988 = vst.msk [vmem:[%s552 + $0x71] sm:$0xff] %vm545, %v976
        %v989 = vld [vmem:[#allocation2] sm:$0xff]
        %v990 = vld [vmem:[#allocation2 + $0x10] sm:$0xff]
        %v991 = vld [vmem:[#allocation2 + $0x20] sm:$0xff]
        %v992 = vld [vmem:[#allocation2 + $0x30] sm:$0xff]
        %v993 = vld [vmem:[#allocation2 + $0x40] sm:$0xff]
        %v994 = vld [vmem:[#allocation2 + $0x50] sm:$0xff]
        %v995 = vld [vmem:[#allocation2 + $0x60] sm:$0xff]
        %v996 = vld [vmem:[#allocation2 + $0x70] sm:$0xff]
        %v997 = vlaneseq
        %v998 = vshrl.u32 %v997, 7
        %v999 = vsub.s32 0, %v998
        %v1000 = vrot.slane %v977, %v999
        %v1001 = vmul.f32 %v989, %v1000
        %v1002 = vmul.f32 %v990, %v1000
        %v1003 = vmul.f32 %v991, %v1000
        %v1004 = vmul.f32 %v992, %v1000
        %v1005 = vmul.f32 %v993, %v1000
        %v1006 = vmul.f32 %v994, %v1000
        %v1007 = vmul.f32 %v995, %v1000
        %v1008 = vmul.f32 %v996, %v1000
        %v1009 = vadd.f32 %v1001, 0.0
        %v1010 = vadd.f32 %v1002, 0.0
        %v1011 = vadd.f32 %v1003, 0.0
        %v1012 = vadd.f32 %v1004, 0.0
        %v1013 = vadd.f32 %v1005, 0.0
        %v1014 = vadd.f32 %v1006, 0.0
        %v1015 = vadd.f32 %v1007, 0.0
        %v1016 = vadd.f32 %v1008, 0.0
        %v1017 = vld [vmem:[#allocation2 + $0x1] sm:$0xff]
        %v1018 = vld [vmem:[#allocation2 + $0x11] sm:$0xff]
        %v1019 = vld [vmem:[#allocation2 + $0x21] sm:$0xff]
        %v1020 = vld [vmem:[#allocation2 + $0x31] sm:$0xff]
        %v1021 = vld [vmem:[#allocation2 + $0x41] sm:$0xff]
        %v1022 = vld [vmem:[#allocation2 + $0x51] sm:$0xff]
        %v1023 = vld [vmem:[#allocation2 + $0x61] sm:$0xff]
        %v1024 = vld [vmem:[#allocation2 + $0x71] sm:$0xff]
        %v1025 = vlaneseq
        %v1026 = vshrl.u32 %v1025, 7
        %v1027 = vsub.s32 1, %v1026
        %v1028 = vrot.slane %v977, %v1027
        %v1029 = vmul.f32 %v1017, %v1028
        %v1030 = vmul.f32 %v1018, %v1028
        %v1031 = vmul.f32 %v1019, %v1028
        %v1032 = vmul.f32 %v1020, %v1028
        %v1033 = vmul.f32 %v1021, %v1028
        %v1034 = vmul.f32 %v1022, %v1028
        %v1035 = vmul.f32 %v1023, %v1028
        %v1036 = vmul.f32 %v1024, %v1028
        %v1037 = vadd.f32 %v1009, %v1029
        %v1038 = vadd.f32 %v1010, %v1030
        %v1039 = vadd.f32 %v1011, %v1031
        %v1040 = vadd.f32 %v1012, %v1032
        %v1041 = vadd.f32 %v1013, %v1033
        %v1042 = vadd.f32 %v1014, %v1034
        %v1043 = vadd.f32 %v1015, %v1035
        %v1044 = vadd.f32 %v1016, %v1036
        %v1045 = vld [vmem:[#allocation2 + $0x2] sm:$0xff]
        %v1046 = vld [vmem:[#allocation2 + $0x12] sm:$0xff]
        %v1047 = vld [vmem:[#allocation2 + $0x22] sm:$0xff]
        %v1048 = vld [vmem:[#allocation2 + $0x32] sm:$0xff]
        %v1049 = vld [vmem:[#allocation2 + $0x42] sm:$0xff]
        %v1050 = vld [vmem:[#allocation2 + $0x52] sm:$0xff]
        %v1051 = vld [vmem:[#allocation2 + $0x62] sm:$0xff]
        %v1052 = vld [vmem:[#allocation2 + $0x72] sm:$0xff]
        %v1053 = vlaneseq
        %v1054 = vshrl.u32 %v1053, 7
        %v1055 = vsub.s32 2, %v1054
        %v1056 = vrot.slane %v977, %v1055
        %v1057 = vmul.f32 %v1045, %v1056
        %v1058 = vmul.f32 %v1046, %v1056
        %v1059 = vmul.f32 %v1047, %v1056
        %v1060 = vmul.f32 %v1048, %v1056
        %v1061 = vmul.f32 %v1049, %v1056
        %v1062 = vmul.f32 %v1050, %v1056
        %v1063 = vmul.f32 %v1051, %v1056
        %v1064 = vmul.f32 %v1052, %v1056
        %v1065 = vadd.f32 %v1037, %v1057
        %v1066 = vadd.f32 %v1038, %v1058
        %v1067 = vadd.f32 %v1039, %v1059
        %v1068 = vadd.f32 %v1040, %v1060
        %v1069 = vadd.f32 %v1041, %v1061
        %v1070 = vadd.f32 %v1042, %v1062
        %v1071 = vadd.f32 %v1043, %v1063
        %v1072 = vadd.f32 %v1044, %v1064
        %v1073 = vld [vmem:[%s552] sm:$0xff]
        %v1074 = vld [vmem:[%s552 + $0x10] sm:$0xff]
        %v1075 = vld [vmem:[%s552 + $0x20] sm:$0xff]
        %v1076 = vld [vmem:[%s552 + $0x30] sm:$0xff]
        %v1077 = vld [vmem:[%s552 + $0x40] sm:$0xff]
        %v1078 = vld [vmem:[%s552 + $0x50] sm:$0xff]
        %v1079 = vld [vmem:[%s552 + $0x60] sm:$0xff]
        %v1080 = vld [vmem:[%s552 + $0x70] sm:$0xff]
        %v1081 = vlaneseq
        %v1082 = vshrl.u32 %v1081, 7
        %v1083 = vsub.s32 0, %v1082
        %v1084 = vrot.slane %v978, %v1083
        %v1085 = vmul.f32 %v1073, %v1084
        %v1086 = vmul.f32 %v1074, %v1084
        %v1087 = vmul.f32 %v1075, %v1084
        %v1088 = vmul.f32 %v1076, %v1084
        %v1089 = vmul.f32 %v1077, %v1084
        %v1090 = vmul.f32 %v1078, %v1084
        %v1091 = vmul.f32 %v1079, %v1084
        %v1092 = vmul.f32 %v1080, %v1084
        %v1093 = vadd.f32 %v1065, %v1085
        %v1094 = vadd.f32 %v1066, %v1086
        %v1095 = vadd.f32 %v1067, %v1087
        %v1096 = vadd.f32 %v1068, %v1088
        %v1097 = vadd.f32 %v1069, %v1089
        %v1098 = vadd.f32 %v1070, %v1090
        %v1099 = vadd.f32 %v1071, %v1091
        %v1100 = vadd.f32 %v1072, %v1092
        %v1101 = vld [vmem:[%s552 + $0x1] sm:$0xff]
        %v1102 = vld [vmem:[%s552 + $0x11] sm:$0xff]
        %v1103 = vld [vmem:[%s552 + $0x21] sm:$0xff]
        %v1104 = vld [vmem:[%s552 + $0x31] sm:$0xff]
        %v1105 = vld [vmem:[%s552 + $0x41] sm:$0xff]
        %v1106 = vld [vmem:[%s552 + $0x51] sm:$0xff]
        %v1107 = vld [vmem:[%s552 + $0x61] sm:$0xff]
        %v1108 = vld [vmem:[%s552 + $0x71] sm:$0xff]
        %v1109 = vlaneseq
        %v1110 = vshrl.u32 %v1109, 7
        %v1111 = vsub.s32 1, %v1110
        %v1112 = vrot.slane %v978, %v1111
        %v1113 = vmul.f32 %v1101, %v1112
        %v1114 = vmul.f32 %v1102, %v1112
        %v1115 = vmul.f32 %v1103, %v1112
        %v1116 = vmul.f32 %v1104, %v1112
        %v1117 = vmul.f32 %v1105, %v1112
        %v1118 = vmul.f32 %v1106, %v1112
        %v1119 = vmul.f32 %v1107, %v1112
        %v1120 = vmul.f32 %v1108, %v1112
        %v1121 = vadd.f32 %v1093, %v1113
        %v1122 = vadd.f32 %v1094, %v1114
        %v1123 = vadd.f32 %v1095, %v1115
        %v1124 = vadd.f32 %v1096, %v1116
        %v1125 = vadd.f32 %v1097, %v1117
        %v1126 = vadd.f32 %v1098, %v1118
        %v1127 = vadd.f32 %v1099, %v1119
        %v1128 = vadd.f32 %v1100, %v1120
        %v1129 = vld [vmem:[%s552 + $0x2] sm:$0xff]
        %v1130 = vld [vmem:[%s552 + $0x12] sm:$0xff]
        %v1131 = vld [vmem:[%s552 + $0x22] sm:$0xff]
        %v1132 = vld [vmem:[%s552 + $0x32] sm:$0xff]
        %v1133 = vld [vmem:[%s552 + $0x42] sm:$0xff]
        %v1134 = vld [vmem:[%s552 + $0x52] sm:$0xff]
        %v1135 = vld [vmem:[%s552 + $0x62] sm:$0xff]
        %v1136 = vld [vmem:[%s552 + $0x72] sm:$0xff]
        %v1137 = vlaneseq
        %v1138 = vshrl.u32 %v1137, 7
        %v1139 = vsub.s32 2, %v1138
        %v1140 = vrot.slane %v978, %v1139
        %v1141 = vmul.f32 %v1129, %v1140
        %v1142 = vmul.f32 %v1130, %v1140
        %v1143 = vmul.f32 %v1131, %v1140
        %v1144 = vmul.f32 %v1132, %v1140
        %v1145 = vmul.f32 %v1133, %v1140
        %v1146 = vmul.f32 %v1134, %v1140
        %v1147 = vmul.f32 %v1135, %v1140
        %v1148 = vmul.f32 %v1136, %v1140
        %v1149 = vadd.f32 %v1121, %v1141
        %v1150 = vadd.f32 %v1122, %v1142
        %v1151 = vadd.f32 %v1123, %v1143
        %v1152 = vadd.f32 %v1124, %v1144
        %v1153 = vadd.f32 %v1125, %v1145
        %v1154 = vadd.f32 %v1126, %v1146
        %v1155 = vadd.f32 %v1127, %v1147
        %v1156 = vadd.f32 %v1128, %v1148
        %v1157 = vld [vmem:[%s783] sm:$0xff]
        %v1158 = vld [vmem:[%s783 + $0x10] sm:$0xff]
        %v1159 = vld [vmem:[%s783 + $0x20] sm:$0xff]
        %v1160 = vld [vmem:[%s783 + $0x30] sm:$0xff]
        %v1161 = vld [vmem:[%s783 + $0x40] sm:$0xff]
        %v1162 = vld [vmem:[%s783 + $0x50] sm:$0xff]
        %v1163 = vld [vmem:[%s783 + $0x60] sm:$0xff]
        %v1164 = vld [vmem:[%s783 + $0x70] sm:$0xff]
        %v1165 = vlaneseq
        %v1166 = vshrl.u32 %v1165, 7
        %v1167 = vsub.s32 0, %v1166
        %v1168 = vrot.slane %v979, %v1167
        %v1169 = vmul.f32 %v1157, %v1168
        %v1170 = vmul.f32 %v1158, %v1168
        %v1171 = vmul.f32 %v1159, %v1168
        %v1172 = vmul.f32 %v1160, %v1168
        %v1173 = vmul.f32 %v1161, %v1168
        %v1174 = vmul.f32 %v1162, %v1168
        %v1175 = vmul.f32 %v1163, %v1168
        %v1176 = vmul.f32 %v1164, %v1168
        %v1177 = vadd.f32 %v1149, %v1169
        %v1178 = vadd.f32 %v1150, %v1170
        %v1179 = vadd.f32 %v1151, %v1171
        %v1180 = vadd.f32 %v1152, %v1172
        %v1181 = vadd.f32 %v1153, %v1173
        %v1182 = vadd.f32 %v1154, %v1174
        %v1183 = vadd.f32 %v1155, %v1175
        %v1184 = vadd.f32 %v1156, %v1176
        %v1185 = vld [vmem:[%s783 + $0x1] sm:$0xff]
        %v1186 = vld [vmem:[%s783 + $0x11] sm:$0xff]
        %v1187 = vld [vmem:[%s783 + $0x21] sm:$0xff]
        %v1188 = vld [vmem:[%s783 + $0x31] sm:$0xff]
        %v1189 = vld [vmem:[%s783 + $0x41] sm:$0xff]
        %v1190 = vld [vmem:[%s783 + $0x51] sm:$0xff]
        %v1191 = vld [vmem:[%s783 + $0x61] sm:$0xff]
        %v1192 = vld [vmem:[%s783 + $0x71] sm:$0xff]
        %v1193 = vlaneseq
        %v1194 = vshrl.u32 %v1193, 7
        %v1195 = vsub.s32 1, %v1194
        %v1196 = vrot.slane %v979, %v1195
        %v1197 = vmul.f32 %v1185, %v1196
        %v1198 = vmul.f32 %v1186, %v1196
        %v1199 = vmul.f32 %v1187, %v1196
        %v1200 = vmul.f32 %v1188, %v1196
        %v1201 = vmul.f32 %v1189, %v1196
        %v1202 = vmul.f32 %v1190, %v1196
        %v1203 = vmul.f32 %v1191, %v1196
        %v1204 = vmul.f32 %v1192, %v1196
        %v1205 = vadd.f32 %v1177, %v1197
        %v1206 = vadd.f32 %v1178, %v1198
        %v1207 = vadd.f32 %v1179, %v1199
        %v1208 = vadd.f32 %v1180, %v1200
        %v1209 = vadd.f32 %v1181, %v1201
        %v1210 = vadd.f32 %v1182, %v1202
        %v1211 = vadd.f32 %v1183, %v1203
        %v1212 = vadd.f32 %v1184, %v1204
        %v1213 = vld [vmem:[%s783 + $0x2] sm:$0xff]
        %v1214 = vld [vmem:[%s783 + $0x12] sm:$0xff]
        %v1215 = vld [vmem:[%s783 + $0x22] sm:$0xff]
        %v1216 = vld [vmem:[%s783 + $0x32] sm:$0xff]
        %v1217 = vld [vmem:[%s783 + $0x42] sm:$0xff]
        %v1218 = vld [vmem:[%s783 + $0x52] sm:$0xff]
        %v1219 = vld [vmem:[%s783 + $0x62] sm:$0xff]
        %v1220 = vld [vmem:[%s783 + $0x72] sm:$0xff]
        %v1221 = vlaneseq
        %v1222 = vshrl.u32 %v1221, 7
        %v1223 = vsub.s32 2, %v1222
        %v1224 = vrot.slane %v979, %v1223
        %v1225 = vmul.f32 %v1213, %v1224
        %v1226 = vmul.f32 %v1214, %v1224
        %v1227 = vmul.f32 %v1215, %v1224
        %v1228 = vmul.f32 %v1216, %v1224
        %v1229 = vmul.f32 %v1217, %v1224
        %v1230 = vmul.f32 %v1218, %v1224
        %v1231 = vmul.f32 %v1219, %v1224
        %v1232 = vmul.f32 %v1220, %v1224
        %v1233 = vadd.f32 %v1205, %v1225
        %v1234 = vadd.f32 %v1206, %v1226
        %v1235 = vadd.f32 %v1207, %v1227
        %v1236 = vadd.f32 %v1208, %v1228
        %v1237 = vadd.f32 %v1209, %v1229
        %v1238 = vadd.f32 %v1210, %v1230
        %v1239 = vadd.f32 %v1211, %v1231
        %v1240 = vadd.f32 %v1212, %v1232
        %v1242 = vlaneseq
        %v1243 = vshrl.u32 %v1242, 7
        %v1244 = vsub.s32 0, %v1243
        %v1245 = vrot.slane %v980, %v1244
        %v1247 = vadd.f32 %v1233, %v1245
        %v1248 = vadd.f32 %v1234, %v1245
        %v1249 = vadd.f32 %v1235, %v1245
        %v1250 = vadd.f32 %v1236, %v1245
        %v1251 = vadd.f32 %v1237, %v1245
        %v1252 = vadd.f32 %v1238, %v1245
        %v1253 = vadd.f32 %v1239, %v1245
        %v1254 = vadd.f32 %v1240, %v1245
        %v1255 = vpack.c.bf16 %v1248, %v1247
        %v1256 = vpack.c.bf16 %v1250, %v1249
        %v1257 = vpack.c.bf16 %v1252, %v1251
        %v1258 = vpack.c.bf16 %v1254, %v1253
        %v1259 = vld [vmem:[#allocation15] sm:$0xff]
        %v1260 = vld [vmem:[#allocation15 + $0x8] sm:$0xff]
        %v1261 = vld [vmem:[#allocation15 + $0x10] sm:$0xff]
        %v1262 = vld [vmem:[#allocation15 + $0x18] sm:$0xff]
        %v1263 = vpack.c.bf16 %v1260, %v1259
        %v1264 = vpack.c.bf16 %v1262, %v1261
        %v1266 = vsel %vm545, %v1255, 0
        %v1269 = vsel %vm545, %v1256, 0
        %v1272 = vsel %vm545, %v1257, 0
        %v1275 = vsel %vm545, %v1258, 0
        %1277 = vmatprep.subr.bf16.mxu0 0
        %1278 = vmatpush1.bf16.msra.mxu0 %v1263
        %1279 = vmatprep.subr.bf16.mxu0 0
        %1280 = vmatpush1.bf16.msra.mxu0 %v1264
        %1281 = vmatprep.subr.bf16.mxu0 0
        %1282 = vmatpush1.bf16.msra.mxu0 0
        %1283 = vmatprep.subr.bf16.mxu0 0
        %1284 = vmatpush1.bf16.msra.mxu0 0
        %1285 = vmatprep.subr.bf16.mxu0 0
        %1286 = vmatpush1.bf16.msra.mxu0 0
        %1287 = vmatprep.subr.bf16.mxu0 0
        %1288 = vmatpush1.bf16.msra.mxu0 0
        %1289 = vmatprep.subr.bf16.mxu0 0
        %1290 = vmatpush1.bf16.msra.mxu0 0
        %1291 = vmatprep.subr.bf16.mxu0 0
        %1292 = vmatpush1.bf16.msra.mxu0 0
        %1293 = vmatprep.subr.bf16.mxu0 0
        %1294 = vmatpush1.bf16.msra.mxu0 0
        %1295 = vmatprep.subr.bf16.mxu0 0
        %1296 = vmatpush1.bf16.msra.mxu0 0
        %1297 = vmatprep.subr.bf16.mxu0 0
        %1298 = vmatpush1.bf16.msra.mxu0 0
        %1299 = vmatprep.subr.bf16.mxu0 0
        %1300 = vmatpush1.bf16.msra.mxu0 0
        %1301 = vmatprep.subr.bf16.mxu0 0
        %1302 = vmatpush1.bf16.msra.mxu0 0
        %1303 = vmatprep.subr.bf16.mxu0 0
        %1304 = vmatpush1.bf16.msra.mxu0 0
        %1305 = vmatprep.subr.bf16.mxu0 0
        %1306 = vmatpush1.bf16.msra.mxu0 0
        %1307 = vmatprep.subr.bf16.mxu0 0
        %1308 = vmatpush1.bf16.msra.mxu0 0
        %1309 = vmatprep.mubr.bf16.mxu0 0
        %1310 = vmatmul.mubr.bf16.gmra.mrb[0].mxu0 %v1266
        %v1311 = vpop.f32.mrb[0].mxu0
        %v1312 = vadd.f32 0.0, %v1311
        %v1313 = vpop.f32.mrb[0].mxu0
        %v1314 = vpop.f32.mrb[0].mxu0
        %v1315 = vadd.f32 0.0, %v1314
        %v1316 = vpop.f32.mrb[0].mxu0
        %1317 = vmatprep.mubr.bf16.mxu0 0
        %1318 = vmatmul.mubr.bf16.gmra.mrb[0].mxu0 %v1269
        %v1319 = vpop.f32.mrb[0].mxu0
        %v1320 = vadd.f32 0.0, %v1319
        %v1321 = vpop.f32.mrb[0].mxu0
        %v1322 = vpop.f32.mrb[0].mxu0
        %v1323 = vadd.f32 0.0, %v1322
        %v1324 = vpop.f32.mrb[0].mxu0
        %1325 = vmatprep.mubr.bf16.mxu0 0
        %1326 = vmatmul.mubr.bf16.gmra.mrb[0].mxu0 %v1272
        %v1327 = vpop.f32.mrb[0].mxu0
        %v1328 = vadd.f32 0.0, %v1327
        %v1329 = vpop.f32.mrb[0].mxu0
        %v1330 = vpop.f32.mrb[0].mxu0
        %v1331 = vadd.f32 0.0, %v1330
        %v1332 = vpop.f32.mrb[0].mxu0
        %1333 = vmatprep.mubr.bf16.mxu0 0
        %1334 = vmatmul.mubr.bf16.gmra.mrb[0].mxu0 %v1275
        %v1335 = vpop.f32.mrb[0].mxu0
        %v1336 = vadd.f32 0.0, %v1335
        %v1337 = vpop.f32.mrb[0].mxu0
        %v1338 = vpop.f32.mrb[0].mxu0
        %v1339 = vadd.f32 0.0, %v1338
        %v1340 = vpop.f32.mrb[0].mxu0
        %1341 = vdwg.mxu0
        %v1342 = vmax.f32 %v1312, 0.0
        %v1343 = vmax.f32 %v1315, 0.0
        %v1344 = vmax.f32 %v1320, 0.0
        %v1345 = vmax.f32 %v1323, 0.0
        %v1346 = vmax.f32 %v1328, 0.0
        %v1347 = vmax.f32 %v1331, 0.0
        %v1348 = vmax.f32 %v1336, 0.0
        %v1349 = vmax.f32 %v1339, 0.0
        %v1350 = vpack.c.bf16 %v1343, %v1342
        %v1351 = vpack.c.bf16 %v1345, %v1344
        %v1352 = vpack.c.bf16 %v1347, %v1346
        %v1353 = vpack.c.bf16 %v1349, %v1348
        %v1354 = vld [vmem:[#allocation16] sm:$0xff]
        %v1355 = vld [vmem:[#allocation16 + $0x8] sm:$0xff]
        %v1356 = vld [vmem:[#allocation16 + $0x10] sm:$0xff]
        %v1357 = vld [vmem:[#allocation16 + $0x18] sm:$0xff]
        %v1358 = vpack.c.bf16 %v1355, %v1354
        %v1359 = vpack.c.bf16 %v1357, %v1356
        %v1360 = vld [vmem:[#allocation18] sm:$0x1]
        %v1362 = vlaneseq
        %v1363 = vshrl.u32 %v1362, 7
        %v1364 = vsub.s32 0, %v1363
        %v1365 = vrot.slane %v1360, %v1364
        %v1368 = vsel %vm545, %v1350, 0
        %v1371 = vsel %vm545, %v1351, 0
        %v1374 = vsel %vm545, %v1352, 0
        %v1377 = vsel %vm545, %v1353, 0
        %1379 = vmatprep.subr.bf16.mxu0 0
        %1380 = vmatpush1.bf16.msra.mxu0 %v1358
        %1381 = vmatprep.subr.bf16.mxu0 0
        %1382 = vmatpush1.bf16.msra.mxu0 %v1359
        %1383 = vmatprep.subr.bf16.mxu0 0
        %1384 = vmatpush1.bf16.msra.mxu0 0
        %1385 = vmatprep.subr.bf16.mxu0 0
        %1386 = vmatpush1.bf16.msra.mxu0 0
        %1387 = vmatprep.subr.bf16.mxu0 0
        %1388 = vmatpush1.bf16.msra.mxu0 0
        %1389 = vmatprep.subr.bf16.mxu0 0
        %1390 = vmatpush1.bf16.msra.mxu0 0
        %1391 = vmatprep.subr.bf16.mxu0 0
        %1392 = vmatpush1.bf16.msra.mxu0 0
        %1393 = vmatprep.subr.bf16.mxu0 0
        %1394 = vmatpush1.bf16.msra.mxu0 0
        %1395 = vmatprep.subr.bf16.mxu0 0
        %1396 = vmatpush1.bf16.msra.mxu0 0
        %1397 = vmatprep.subr.bf16.mxu0 0
        %1398 = vmatpush1.bf16.msra.mxu0 0
        %1399 = vmatprep.subr.bf16.mxu0 0
        %1400 = vmatpush1.bf16.msra.mxu0 0
        %1401 = vmatprep.subr.bf16.mxu0 0
        %1402 = vmatpush1.bf16.msra.mxu0 0
        %1403 = vmatprep.subr.bf16.mxu0 0
        %1404 = vmatpush1.bf16.msra.mxu0 0
        %1405 = vmatprep.subr.bf16.mxu0 0
        %1406 = vmatpush1.bf16.msra.mxu0 0
        %1407 = vmatprep.subr.bf16.mxu0 0
        %1408 = vmatpush1.bf16.msra.mxu0 0
        %1409 = vmatprep.subr.bf16.mxu0 0
        %1410 = vmatpush1.bf16.msra.mxu0 0
        %1411 = vmatprep.mubr.bf16.mxu0 0
        %1412 = vmatmul.mubr.bf16.gmra.mrb[0].mxu0 %v1368
        %v1413 = vpop.f32.mrb[0].mxu0
        %v1414 = vadd.f32 %v1365, %v1413
        %v1415 = vpop.f32.mrb[0].mxu0
        %v1416 = vpop.f32.mrb[0].mxu0
        %v1417 = vadd.f32 %v1365, %v1416
        %v1418 = vpop.f32.mrb[0].mxu0
        %1419 = vmatprep.mubr.bf16.mxu0 0
        %1420 = vmatmul.mubr.bf16.gmra.mrb[0].mxu0 %v1371
        %v1421 = vpop.f32.mrb[0].mxu0
        %v1422 = vadd.f32 %v1365, %v1421
        %v1423 = vpop.f32.mrb[0].mxu0
        %v1424 = vpop.f32.mrb[0].mxu0
        %v1425 = vadd.f32 %v1365, %v1424
        %v1426 = vpop.f32.mrb[0].mxu0
        %1427 = vmatprep.mubr.bf16.mxu0 0
        %1428 = vmatmul.mubr.bf16.gmra.mrb[0].mxu0 %v1374
        %v1429 = vpop.f32.mrb[0].mxu0
        %v1430 = vadd.f32 %v1365, %v1429
        %v1431 = vpop.f32.mrb[0].mxu0
        %v1432 = vpop.f32.mrb[0].mxu0
        %v1433 = vadd.f32 %v1365, %v1432
        %v1434 = vpop.f32.mrb[0].mxu0
        %1435 = vmatprep.mubr.bf16.mxu0 0
        %1436 = vmatmul.mubr.bf16.gmra.mrb[0].mxu0 %v1377
        %v1437 = vpop.f32.mrb[0].mxu0
        %v1438 = vadd.f32 %v1365, %v1437
        %v1439 = vpop.f32.mrb[0].mxu0
        %v1440 = vpop.f32.mrb[0].mxu0
        %v1441 = vadd.f32 %v1365, %v1440
        %v1442 = vpop.f32.mrb[0].mxu0
        %1443 = vdwg.mxu0
        %v1444 = vxor.u32 %v1414, 2147483648
        %v1445 = vxor.u32 %v1417, 2147483648
        %v1446 = vxor.u32 %v1422, 2147483648
        %v1447 = vxor.u32 %v1425, 2147483648
        %v1448 = vxor.u32 %v1430, 2147483648
        %v1449 = vxor.u32 %v1433, 2147483648
        %v1450 = vxor.u32 %v1438, 2147483648
        %v1451 = vxor.u32 %v1441, 2147483648
        %v1452 = vmul.f32 %v1444, 1.442695
        %v1453 = vpow.pop %v1452
        %v1454 = vmul.f32 %v1445, 1.442695
        %v1455 = vpow.pop %v1454
        %v1456 = vmul.f32 %v1446, 1.442695
        %v1457 = vpow.pop %v1456
        %v1458 = vmul.f32 %v1447, 1.442695
        %v1459 = vpow.pop %v1458
        %v1460 = vmul.f32 %v1448, 1.442695
        %v1461 = vpow.pop %v1460
        %v1462 = vmul.f32 %v1449, 1.442695
        %v1463 = vpow.pop %v1462
        %v1464 = vmul.f32 %v1450, 1.442695
        %v1465 = vpow.pop %v1464
        %v1466 = vmul.f32 %v1451, 1.442695
        %v1467 = vpow.pop %v1466
        %v1468 = vadd.f32 %v1453, 1.0
        %v1469 = vadd.f32 %v1455, 1.0
        %v1470 = vadd.f32 %v1457, 1.0
        %v1471 = vadd.f32 %v1459, 1.0
        %v1472 = vadd.f32 %v1461, 1.0
        %v1473 = vadd.f32 %v1463, 1.0
        %v1474 = vadd.f32 %v1465, 1.0
        %v1475 = vadd.f32 %v1467, 1.0
        %v1476 = vrcp.pop %v1468
        %v1477 = vmul.f32 1.0, %v1476
        %v1478 = vrcp.pop %v1469
        %v1479 = vmul.f32 1.0, %v1478
        %v1480 = vrcp.pop %v1470
        %v1481 = vmul.f32 1.0, %v1480
        %v1482 = vrcp.pop %v1471
        %v1483 = vmul.f32 1.0, %v1482
        %v1484 = vrcp.pop %v1472
        %v1485 = vmul.f32 1.0, %v1484
        %v1486 = vrcp.pop %v1473
        %v1487 = vmul.f32 1.0, %v1486
        %v1488 = vrcp.pop %v1474
        %v1489 = vmul.f32 1.0, %v1488
        %v1490 = vrcp.pop %v1475
        %v1491 = vmul.f32 1.0, %v1490
        %1492 = vst.msk [vmem:[%s577 + $0x1] sm:$0xff] %vm570, %v1477
        %1493 = vst.msk [vmem:[%s577 + $0x11] sm:$0xff] %vm570, %v1479
        %1494 = vst.msk [vmem:[%s577 + $0x21] sm:$0xff] %vm570, %v1481
        %1495 = vst.msk [vmem:[%s577 + $0x31] sm:$0xff] %vm570, %v1483
        %1496 = vst.msk [vmem:[%s577 + $0x41] sm:$0xff] %vm570, %v1485
        %1497 = vst.msk [vmem:[%s577 + $0x51] sm:$0xff] %vm570, %v1487
        %1498 = vst.msk [vmem:[%s577 + $0x61] sm:$0xff] %vm570, %v1489
        %1499 = vst.msk [vmem:[%s577 + $0x71] sm:$0xff] %vm570, %v1491
        %v1500 = vld [vmem:[#allocation19] sm:$0x1]
        %v1501 = vld [vmem:[#allocation19 + $0x1] sm:$0x1]
        %v1502 = vld [vmem:[#allocation19 + $0x2] sm:$0x1]
        %v1503 = vld [vmem:[#allocation19 + $0x3] sm:$0x1]
        %v1504 = vld [vmem:[#allocation19 + $0x4] sm:$0x1]
        %v1505 = vld [vmem:[#allocation19 + $0x5] sm:$0x1]
        %v1506 = vld [vmem:[#allocation19 + $0x6] sm:$0x1]
        %v1507 = vld [vmem:[#allocation19 + $0x7] sm:$0x1]
        %v1508 = vld [vmem:[#allocation19 + $0x8] sm:$0x1]
        %v1509 = vld [vmem:[#allocation19 + $0x9] sm:$0x1]
        %v1510 = vld [vmem:[#allocation19 + $0xa] sm:$0x1]
        %v1511 = vld [vmem:[#allocation19 + $0xb] sm:$0x1]
        %v1512 = vld [vmem:[#allocation19 + $0xc] sm:$0x1]
        %v1513 = vld [vmem:[#allocation19 + $0xd] sm:$0x1]
        %v1514 = vld [vmem:[#allocation19 + $0xe] sm:$0x1]
        %v1515 = vld [vmem:[#allocation19 + $0xf] sm:$0x1]
        %v1516 = vld [vmem:[#allocation19 + $0x10] sm:$0x1]
        %v1517 = vld [vmem:[#allocation19 + $0x11] sm:$0x1]
        %v1518 = vld [vmem:[#allocation19 + $0x12] sm:$0x1]
        %v1519 = vld [vmem:[#allocation19 + $0x13] sm:$0x1]
        %v1520 = vld [vmem:[#allocation19 + $0x14] sm:$0x1]
        %v1521 = vld [vmem:[#allocation19 + $0x15] sm:$0x1]
        %v1522 = vld [vmem:[#allocation19 + $0x16] sm:$0x1]
        %v1523 = vld [vmem:[#allocation19 + $0x17] sm:$0x1]
        %v1524 = vld [vmem:[#allocation19 + $0x18] sm:$0x1]
        %v1525 = vld [vmem:[#allocation19 + $0x19] sm:$0x1]
        %v1526 = vld [vmem:[#allocation19 + $0x1a] sm:$0x1]
        %v1527 = vld [vmem:[#allocation19 + $0x1b] sm:$0x1]
        %v1528 = vld [vmem:[#allocation19 + $0x1c] sm:$0x1]
        %v1529 = vld [vmem:[#allocation19 + $0x1d] sm:$0x1]
        %v1530 = vld [vmem:[#allocation19 + $0x1e] sm:$0x1]
        %v1531 = vld [vmem:[#allocation19 + $0x1f] sm:$0x1]
        %v1532 = vld [vmem:[#allocation21] sm:$0xff]
        %v1533 = vld [vmem:[#allocation21 + $0x8] sm:$0xff]
        %v1534 = vld [vmem:[#allocation21 + $0x10] sm:$0xff]
        %v1535 = vld [vmem:[#allocation21 + $0x18] sm:$0xff]
        %v1536 = vld [vmem:[%s577 + $0x1] sm:$0xff]
        %v1537 = vld [vmem:[%s577 + $0x11] sm:$0xff]
        %v1538 = vld [vmem:[%s577 + $0x21] sm:$0xff]
        %v1539 = vld [vmem:[%s577 + $0x31] sm:$0xff]
        %v1540 = vld [vmem:[%s577 + $0x41] sm:$0xff]
        %v1541 = vld [vmem:[%s577 + $0x51] sm:$0xff]
        %v1542 = vld [vmem:[%s577 + $0x61] sm:$0xff]
        %v1543 = vld [vmem:[%s577 + $0x71] sm:$0xff]
        %v1552 = vlaneseq
        %v1553 = vshrl.u32 %v1552, 7
        %v1554 = vsub.s32 0, %v1553
        %v1555 = vrot.slane %v1500, %v1554
        %v1556 = vlaneseq
        %v1557 = vshrl.u32 %v1556, 7
        %v1558 = vsub.s32 0, %v1557
        %v1559 = vrot.slane %v1501, %v1558
        %v1560 = vlaneseq
        %v1561 = vshrl.u32 %v1560, 7
        %v1562 = vsub.s32 0, %v1561
        %v1563 = vrot.slane %v1502, %v1562
        %v1564 = vlaneseq
        %v1565 = vshrl.u32 %v1564, 7
        %v1566 = vsub.s32 0, %v1565
        %v1567 = vrot.slane %v1503, %v1566
        %v1568 = vlaneseq
        %v1569 = vshrl.u32 %v1568, 7
        %v1570 = vsub.s32 0, %v1569
        %v1571 = vrot.slane %v1504, %v1570
        %v1572 = vlaneseq
        %v1573 = vshrl.u32 %v1572, 7
        %v1574 = vsub.s32 0, %v1573
        %v1575 = vrot.slane %v1505, %v1574
        %v1576 = vlaneseq
        %v1577 = vshrl.u32 %v1576, 7
        %v1578 = vsub.s32 0, %v1577
        %v1579 = vrot.slane %v1506, %v1578
        %v1580 = vlaneseq
        %v1581 = vshrl.u32 %v1580, 7
        %v1582 = vsub.s32 0, %v1581
        %v1583 = vrot.slane %v1507, %v1582
        %v1592 = vmul.f32 %v1555, %v1532
        %v1593 = vmul.f32 %v1559, %v1532
        %v1594 = vmul.f32 %v1563, %v1532
        %v1595 = vmul.f32 %v1567, %v1532
        %v1596 = vmul.f32 %v1571, %v1532
        %v1597 = vmul.f32 %v1575, %v1532
        %v1598 = vmul.f32 %v1579, %v1532
        %v1599 = vmul.f32 %v1583, %v1532
        %1601 = vset.pattern.permute.xlu0 0
        %1602 = vperm.xlu0 %1601, %v1592
        %v1603 = vpop.permute.xlu0 %1602
        %1606 = vset.pattern.permute.xlu0 0
        %1607 = vperm.xlu0 %1606, %v1593
        %v1608 = vpop.permute.xlu0 %1607
        %1611 = vset.pattern.permute.xlu0 0
        %1612 = vperm.xlu0 %1611, %v1594
        %v1613 = vpop.permute.xlu0 %1612
        %1616 = vset.pattern.permute.xlu0 0
        %1617 = vperm.xlu0 %1616, %v1595
        %v1618 = vpop.permute.xlu0 %1617
        %1621 = vset.pattern.permute.xlu0 0
        %1622 = vperm.xlu0 %1621, %v1596
        %v1623 = vpop.permute.xlu0 %1622
        %1626 = vset.pattern.permute.xlu0 0
        %1627 = vperm.xlu0 %1626, %v1597
        %v1628 = vpop.permute.xlu0 %1627
        %1631 = vset.pattern.permute.xlu0 0
        %1632 = vperm.xlu0 %1631, %v1598
        %v1633 = vpop.permute.xlu0 %1632
        %1636 = vset.pattern.permute.xlu0 0
        %1637 = vperm.xlu0 %1636, %v1599
        %v1638 = vpop.permute.xlu0 %1637
        %v1640 = vmul.f32 %v1603, %v1536
        %v1641 = vmul.f32 %v1608, %v1537
        %v1642 = vmul.f32 %v1613, %v1538
        %v1643 = vmul.f32 %v1618, %v1539
        %v1644 = vmul.f32 %v1623, %v1540
        %v1645 = vmul.f32 %v1628, %v1541
        %v1646 = vmul.f32 %v1633, %v1542
        %v1647 = vmul.f32 %v1638, %v1543
        %v1648 = vadd.f32 %v1640, 0.0
        %v1649 = vadd.f32 %v1641, 0.0
        %v1650 = vadd.f32 %v1642, 0.0
        %v1651 = vadd.f32 %v1643, 0.0
        %v1652 = vadd.f32 %v1644, 0.0
        %v1653 = vadd.f32 %v1645, 0.0
        %v1654 = vadd.f32 %v1646, 0.0
        %v1655 = vadd.f32 %v1647, 0.0
        %v1656 = vld [vmem:[%s577] sm:$0xff]
        %v1657 = vld [vmem:[%s577 + $0x10] sm:$0xff]
        %v1658 = vld [vmem:[%s577 + $0x20] sm:$0xff]
        %v1659 = vld [vmem:[%s577 + $0x30] sm:$0xff]
        %v1660 = vld [vmem:[%s577 + $0x40] sm:$0xff]
        %v1661 = vld [vmem:[%s577 + $0x50] sm:$0xff]
        %v1662 = vld [vmem:[%s577 + $0x60] sm:$0xff]
        %v1663 = vld [vmem:[%s577 + $0x70] sm:$0xff]
        %v1664 = vmul.f32 %v1555, %v1533
        %v1665 = vmul.f32 %v1559, %v1533
        %v1666 = vmul.f32 %v1563, %v1533
        %v1667 = vmul.f32 %v1567, %v1533
        %v1668 = vmul.f32 %v1571, %v1533
        %v1669 = vmul.f32 %v1575, %v1533
        %v1670 = vmul.f32 %v1579, %v1533
        %v1671 = vmul.f32 %v1583, %v1533
        %1673 = vset.pattern.permute.xlu0 0
        %1674 = vperm.xlu0 %1673, %v1664
        %v1675 = vpop.permute.xlu0 %1674
        %1678 = vset.pattern.permute.xlu0 0
        %1679 = vperm.xlu0 %1678, %v1665
        %v1680 = vpop.permute.xlu0 %1679
        %1683 = vset.pattern.permute.xlu0 0
        %1684 = vperm.xlu0 %1683, %v1666
        %v1685 = vpop.permute.xlu0 %1684
        %1688 = vset.pattern.permute.xlu0 0
        %1689 = vperm.xlu0 %1688, %v1667
        %v1690 = vpop.permute.xlu0 %1689
        %1693 = vset.pattern.permute.xlu0 0
        %1694 = vperm.xlu0 %1693, %v1668
        %v1695 = vpop.permute.xlu0 %1694
        %1698 = vset.pattern.permute.xlu0 0
        %1699 = vperm.xlu0 %1698, %v1669
        %v1700 = vpop.permute.xlu0 %1699
        %1703 = vset.pattern.permute.xlu0 0
        %1704 = vperm.xlu0 %1703, %v1670
        %v1705 = vpop.permute.xlu0 %1704
        %1708 = vset.pattern.permute.xlu0 0
        %1709 = vperm.xlu0 %1708, %v1671
        %v1710 = vpop.permute.xlu0 %1709
        %v1712 = vmul.f32 %v1675, %v1656
        %v1713 = vmul.f32 %v1680, %v1657
        %v1714 = vmul.f32 %v1685, %v1658
        %v1715 = vmul.f32 %v1690, %v1659
        %v1716 = vmul.f32 %v1695, %v1660
        %v1717 = vmul.f32 %v1700, %v1661
        %v1718 = vmul.f32 %v1705, %v1662
        %v1719 = vmul.f32 %v1710, %v1663
        %v1720 = vadd.f32 %v1648, %v1712
        %v1721 = vadd.f32 %v1649, %v1713
        %v1722 = vadd.f32 %v1650, %v1714
        %v1723 = vadd.f32 %v1651, %v1715
        %v1724 = vadd.f32 %v1652, %v1716
        %v1725 = vadd.f32 %v1653, %v1717
        %v1726 = vadd.f32 %v1654, %v1718
        %v1727 = vadd.f32 %v1655, %v1719
        %v1728 = vld [vmem:[#allocation3 + $0x1] sm:$0xff]
        %v1729 = vld [vmem:[#allocation3 + $0x11] sm:$0xff]
        %v1730 = vld [vmem:[#allocation3 + $0x21] sm:$0xff]
        %v1731 = vld [vmem:[#allocation3 + $0x31] sm:$0xff]
        %v1732 = vld [vmem:[#allocation3 + $0x41] sm:$0xff]
        %v1733 = vld [vmem:[#allocation3 + $0x51] sm:$0xff]
        %v1734 = vld [vmem:[#allocation3 + $0x61] sm:$0xff]
        %v1735 = vld [vmem:[#allocation3 + $0x71] sm:$0xff]
        %v1744 = vlaneseq
        %v1745 = vshrl.u32 %v1744, 7
        %v1746 = vsub.s32 0, %v1745
        %v1747 = vrot.slane %v1508, %v1746
        %v1748 = vlaneseq
        %v1749 = vshrl.u32 %v1748, 7
        %v1750 = vsub.s32 0, %v1749
        %v1751 = vrot.slane %v1509, %v1750
        %v1752 = vlaneseq
        %v1753 = vshrl.u32 %v1752, 7
        %v1754 = vsub.s32 0, %v1753
        %v1755 = vrot.slane %v1510, %v1754
        %v1756 = vlaneseq
        %v1757 = vshrl.u32 %v1756, 7
        %v1758 = vsub.s32 0, %v1757
        %v1759 = vrot.slane %v1511, %v1758
        %v1760 = vlaneseq
        %v1761 = vshrl.u32 %v1760, 7
        %v1762 = vsub.s32 0, %v1761
        %v1763 = vrot.slane %v1512, %v1762
        %v1764 = vlaneseq
        %v1765 = vshrl.u32 %v1764, 7
        %v1766 = vsub.s32 0, %v1765
        %v1767 = vrot.slane %v1513, %v1766
        %v1768 = vlaneseq
        %v1769 = vshrl.u32 %v1768, 7
        %v1770 = vsub.s32 0, %v1769
        %v1771 = vrot.slane %v1514, %v1770
        %v1772 = vlaneseq
        %v1773 = vshrl.u32 %v1772, 7
        %v1774 = vsub.s32 0, %v1773
        %v1775 = vrot.slane %v1515, %v1774
        %v1784 = vmul.f32 %v1747, %v1532
        %v1785 = vmul.f32 %v1751, %v1532
        %v1786 = vmul.f32 %v1755, %v1532
        %v1787 = vmul.f32 %v1759, %v1532
        %v1788 = vmul.f32 %v1763, %v1532
        %v1789 = vmul.f32 %v1767, %v1532
        %v1790 = vmul.f32 %v1771, %v1532
        %v1791 = vmul.f32 %v1775, %v1532
        %1793 = vset.pattern.permute.xlu0 0
        %1794 = vperm.xlu0 %1793, %v1784
        %v1795 = vpop.permute.xlu0 %1794
        %1798 = vset.pattern.permute.xlu0 0
        %1799 = vperm.xlu0 %1798, %v1785
        %v1800 = vpop.permute.xlu0 %1799
        %1803 = vset.pattern.permute.xlu0 0
        %1804 = vperm.xlu0 %1803, %v1786
        %v1805 = vpop.permute.xlu0 %1804
        %1808 = vset.pattern.permute.xlu0 0
        %1809 = vperm.xlu0 %1808, %v1787
        %v1810 = vpop.permute.xlu0 %1809
        %1813 = vset.pattern.permute.xlu0 0
        %1814 = vperm.xlu0 %1813, %v1788
        %v1815 = vpop.permute.xlu0 %1814
        %1818 = vset.pattern.permute.xlu0 0
        %1819 = vperm.xlu0 %1818, %v1789
        %v1820 = vpop.permute.xlu0 %1819
        %1823 = vset.pattern.permute.xlu0 0
        %1824 = vperm.xlu0 %1823, %v1790
        %v1825 = vpop.permute.xlu0 %1824
        %1828 = vset.pattern.permute.xlu0 0
        %1829 = vperm.xlu0 %1828, %v1791
        %v1830 = vpop.permute.xlu0 %1829
        %v1832 = vmul.f32 %v1795, %v1728
        %v1833 = vmul.f32 %v1800, %v1729
        %v1834 = vmul.f32 %v1805, %v1730
        %v1835 = vmul.f32 %v1810, %v1731
        %v1836 = vmul.f32 %v1815, %v1732
        %v1837 = vmul.f32 %v1820, %v1733
        %v1838 = vmul.f32 %v1825, %v1734
        %v1839 = vmul.f32 %v1830, %v1735
        %v1840 = vadd.f32 %v1720, %v1832
        %v1841 = vadd.f32 %v1721, %v1833
        %v1842 = vadd.f32 %v1722, %v1834
        %v1843 = vadd.f32 %v1723, %v1835
        %v1844 = vadd.f32 %v1724, %v1836
        %v1845 = vadd.f32 %v1725, %v1837
        %v1846 = vadd.f32 %v1726, %v1838
        %v1847 = vadd.f32 %v1727, %v1839
        %v1848 = vld [vmem:[#allocation3] sm:$0xff]
        %v1849 = vld [vmem:[#allocation3 + $0x10] sm:$0xff]
        %v1850 = vld [vmem:[#allocation3 + $0x20] sm:$0xff]
        %v1851 = vld [vmem:[#allocation3 + $0x30] sm:$0xff]
        %v1852 = vld [vmem:[#allocation3 + $0x40] sm:$0xff]
        %v1853 = vld [vmem:[#allocation3 + $0x50] sm:$0xff]
        %v1854 = vld [vmem:[#allocation3 + $0x60] sm:$0xff]
        %v1855 = vld [vmem:[#allocation3 + $0x70] sm:$0xff]
        %v1856 = vmul.f32 %v1747, %v1533
        %v1857 = vmul.f32 %v1751, %v1533
        %v1858 = vmul.f32 %v1755, %v1533
        %v1859 = vmul.f32 %v1759, %v1533
        %v1860 = vmul.f32 %v1763, %v1533
        %v1861 = vmul.f32 %v1767, %v1533
        %v1862 = vmul.f32 %v1771, %v1533
        %v1863 = vmul.f32 %v1775, %v1533
        %1865 = vset.pattern.permute.xlu0 0
        %1866 = vperm.xlu0 %1865, %v1856
        %v1867 = vpop.permute.xlu0 %1866
        %1870 = vset.pattern.permute.xlu0 0
        %1871 = vperm.xlu0 %1870, %v1857
        %v1872 = vpop.permute.xlu0 %1871
        %1875 = vset.pattern.permute.xlu0 0
        %1876 = vperm.xlu0 %1875, %v1858
        %v1877 = vpop.permute.xlu0 %1876
        %1880 = vset.pattern.permute.xlu0 0
        %1881 = vperm.xlu0 %1880, %v1859
        %v1882 = vpop.permute.xlu0 %1881
        %1885 = vset.pattern.permute.xlu0 0
        %1886 = vperm.xlu0 %1885, %v1860
        %v1887 = vpop.permute.xlu0 %1886
        %1890 = vset.pattern.permute.xlu0 0
        %1891 = vperm.xlu0 %1890, %v1861
        %v1892 = vpop.permute.xlu0 %1891
        %1895 = vset.pattern.permute.xlu0 0
        %1896 = vperm.xlu0 %1895, %v1862
        %v1897 = vpop.permute.xlu0 %1896
        %1900 = vset.pattern.permute.xlu0 0
        %1901 = vperm.xlu0 %1900, %v1863
        %v1902 = vpop.permute.xlu0 %1901
        %v1904 = vmul.f32 %v1867, %v1848
        %v1905 = vmul.f32 %v1872, %v1849
        %v1906 = vmul.f32 %v1877, %v1850
        %v1907 = vmul.f32 %v1882, %v1851
        %v1908 = vmul.f32 %v1887, %v1852
        %v1909 = vmul.f32 %v1892, %v1853
        %v1910 = vmul.f32 %v1897, %v1854
        %v1911 = vmul.f32 %v1902, %v1855
        %v1912 = vadd.f32 %v1840, %v1904
        %v1913 = vadd.f32 %v1841, %v1905
        %v1914 = vadd.f32 %v1842, %v1906
        %v1915 = vadd.f32 %v1843, %v1907
        %v1916 = vadd.f32 %v1844, %v1908
        %v1917 = vadd.f32 %v1845, %v1909
        %v1918 = vadd.f32 %v1846, %v1910
        %v1919 = vadd.f32 %v1847, %v1911
        %v1928 = vlaneseq
        %v1929 = vshrl.u32 %v1928, 7
        %v1930 = vsub.s32 0, %v1929
        %v1931 = vrot.slane %v1516, %v1930
        %v1932 = vlaneseq
        %v1933 = vshrl.u32 %v1932, 7
        %v1934 = vsub.s32 0, %v1933
        %v1935 = vrot.slane %v1517, %v1934
        %v1936 = vlaneseq
        %v1937 = vshrl.u32 %v1936, 7
        %v1938 = vsub.s32 0, %v1937
        %v1939 = vrot.slane %v1518, %v1938
        %v1940 = vlaneseq
        %v1941 = vshrl.u32 %v1940, 7
        %v1942 = vsub.s32 0, %v1941
        %v1943 = vrot.slane %v1519, %v1942
        %v1944 = vlaneseq
        %v1945 = vshrl.u32 %v1944, 7
        %v1946 = vsub.s32 0, %v1945
        %v1947 = vrot.slane %v1520, %v1946
        %v1948 = vlaneseq
        %v1949 = vshrl.u32 %v1948, 7
        %v1950 = vsub.s32 0, %v1949
        %v1951 = vrot.slane %v1521, %v1950
        %v1952 = vlaneseq
        %v1953 = vshrl.u32 %v1952, 7
        %v1954 = vsub.s32 0, %v1953
        %v1955 = vrot.slane %v1522, %v1954
        %v1956 = vlaneseq
        %v1957 = vshrl.u32 %v1956, 7
        %v1958 = vsub.s32 0, %v1957
        %v1959 = vrot.slane %v1523, %v1958
        %v1968 = vmul.f32 %v1931, %v1532
        %v1969 = vmul.f32 %v1935, %v1532
        %v1970 = vmul.f32 %v1939, %v1532
        %v1971 = vmul.f32 %v1943, %v1532
        %v1972 = vmul.f32 %v1947, %v1532
        %v1973 = vmul.f32 %v1951, %v1532
        %v1974 = vmul.f32 %v1955, %v1532
        %v1975 = vmul.f32 %v1959, %v1532
        %1977 = vset.pattern.permute.xlu0 0
        %1978 = vperm.xlu0 %1977, %v1968
        %v1979 = vpop.permute.xlu0 %1978
        %1982 = vset.pattern.permute.xlu0 0
        %1983 = vperm.xlu0 %1982, %v1969
        %v1984 = vpop.permute.xlu0 %1983
        %1987 = vset.pattern.permute.xlu0 0
        %1988 = vperm.xlu0 %1987, %v1970
        %v1989 = vpop.permute.xlu0 %1988
        %1992 = vset.pattern.permute.xlu0 0
        %1993 = vperm.xlu0 %1992, %v1971
        %v1994 = vpop.permute.xlu0 %1993
        %1997 = vset.pattern.permute.xlu0 0
        %1998 = vperm.xlu0 %1997, %v1972
        %v1999 = vpop.permute.xlu0 %1998
        %2002 = vset.pattern.permute.xlu0 0
        %2003 = vperm.xlu0 %2002, %v1973
        %v2004 = vpop.permute.xlu0 %2003
        %2007 = vset.pattern.permute.xlu0 0
        %2008 = vperm.xlu0 %2007, %v1974
        %v2009 = vpop.permute.xlu0 %2008
        %2012 = vset.pattern.permute.xlu0 0
        %2013 = vperm.xlu0 %2012, %v1975
        %v2014 = vpop.permute.xlu0 %2013
        %v2016 = vmul.f32 %v1979, %v1536
        %v2017 = vmul.f32 %v1984, %v1537
        %v2018 = vmul.f32 %v1989, %v1538
        %v2019 = vmul.f32 %v1994, %v1539
        %v2020 = vmul.f32 %v1999, %v1540
        %v2021 = vmul.f32 %v2004, %v1541
        %v2022 = vmul.f32 %v2009, %v1542
        %v2023 = vmul.f32 %v2014, %v1543
        %v2024 = vadd.f32 %v2016, 0.0
        %v2025 = vadd.f32 %v2017, 0.0
        %v2026 = vadd.f32 %v2018, 0.0
        %v2027 = vadd.f32 %v2019, 0.0
        %v2028 = vadd.f32 %v2020, 0.0
        %v2029 = vadd.f32 %v2021, 0.0
        %v2030 = vadd.f32 %v2022, 0.0
        %v2031 = vadd.f32 %v2023, 0.0
        %v2032 = vmul.f32 %v1931, %v1533
        %v2033 = vmul.f32 %v1935, %v1533
        %v2034 = vmul.f32 %v1939, %v1533
        %v2035 = vmul.f32 %v1943, %v1533
        %v2036 = vmul.f32 %v1947, %v1533
        %v2037 = vmul.f32 %v1951, %v1533
        %v2038 = vmul.f32 %v1955, %v1533
        %v2039 = vmul.f32 %v1959, %v1533
        %2041 = vset.pattern.permute.xlu0 0
        %2042 = vperm.xlu0 %2041, %v2032
        %v2043 = vpop.permute.xlu0 %2042
        %2046 = vset.pattern.permute.xlu0 0
        %2047 = vperm.xlu0 %2046, %v2033
        %v2048 = vpop.permute.xlu0 %2047
        %2051 = vset.pattern.permute.xlu0 0
        %2052 = vperm.xlu0 %2051, %v2034
        %v2053 = vpop.permute.xlu0 %2052
        %2056 = vset.pattern.permute.xlu0 0
        %2057 = vperm.xlu0 %2056, %v2035
        %v2058 = vpop.permute.xlu0 %2057
        %2061 = vset.pattern.permute.xlu0 0
        %2062 = vperm.xlu0 %2061, %v2036
        %v2063 = vpop.permute.xlu0 %2062
        %2066 = vset.pattern.permute.xlu0 0
        %2067 = vperm.xlu0 %2066, %v2037
        %v2068 = vpop.permute.xlu0 %2067
        %2071 = vset.pattern.permute.xlu0 0
        %2072 = vperm.xlu0 %2071, %v2038
        %v2073 = vpop.permute.xlu0 %2072
        %2076 = vset.pattern.permute.xlu0 0
        %2077 = vperm.xlu0 %2076, %v2039
        %v2078 = vpop.permute.xlu0 %2077
        %v2080 = vmul.f32 %v2043, %v1656
        %v2081 = vmul.f32 %v2048, %v1657
        %v2082 = vmul.f32 %v2053, %v1658
        %v2083 = vmul.f32 %v2058, %v1659
        %v2084 = vmul.f32 %v2063, %v1660
        %v2085 = vmul.f32 %v2068, %v1661
        %v2086 = vmul.f32 %v2073, %v1662
        %v2087 = vmul.f32 %v2078, %v1663
        %v2088 = vadd.f32 %v2024, %v2080
        %v2089 = vadd.f32 %v2025, %v2081
        %v2090 = vadd.f32 %v2026, %v2082
        %v2091 = vadd.f32 %v2027, %v2083
        %v2092 = vadd.f32 %v2028, %v2084
        %v2093 = vadd.f32 %v2029, %v2085
        %v2094 = vadd.f32 %v2030, %v2086
        %v2095 = vadd.f32 %v2031, %v2087
        %s2096 = scalar_lea.vmem [#allocation3], 32
        %v2097 = vld [vmem:[%s2096 + $0x1] sm:$0xff]
        %v2098 = vld [vmem:[%s2096 + $0x11] sm:$0xff]
        %v2099 = vld [vmem:[%s2096 + $0x21] sm:$0xff]
        %v2100 = vld [vmem:[%s2096 + $0x31] sm:$0xff]
        %v2101 = vld [vmem:[%s2096 + $0x41] sm:$0xff]
        %v2102 = vld [vmem:[%s2096 + $0x51] sm:$0xff]
        %v2103 = vld [vmem:[%s2096 + $0x61] sm:$0xff]
        %v2104 = vld [vmem:[%s2096 + $0x71] sm:$0xff]
        %v2113 = vlaneseq
        %v2114 = vshrl.u32 %v2113, 7
        %v2115 = vsub.s32 0, %v2114
        %v2116 = vrot.slane %v1524, %v2115
        %v2117 = vlaneseq
        %v2118 = vshrl.u32 %v2117, 7
        %v2119 = vsub.s32 0, %v2118
        %v2120 = vrot.slane %v1525, %v2119
        %v2121 = vlaneseq
        %v2122 = vshrl.u32 %v2121, 7
        %v2123 = vsub.s32 0, %v2122
        %v2124 = vrot.slane %v1526, %v2123
        %v2125 = vlaneseq
        %v2126 = vshrl.u32 %v2125, 7
        %v2127 = vsub.s32 0, %v2126
        %v2128 = vrot.slane %v1527, %v2127
        %v2129 = vlaneseq
        %v2130 = vshrl.u32 %v2129, 7
        %v2131 = vsub.s32 0, %v2130
        %v2132 = vrot.slane %v1528, %v2131
        %v2133 = vlaneseq
        %v2134 = vshrl.u32 %v2133, 7
        %v2135 = vsub.s32 0, %v2134
        %v2136 = vrot.slane %v1529, %v2135
        %v2137 = vlaneseq
        %v2138 = vshrl.u32 %v2137, 7
        %v2139 = vsub.s32 0, %v2138
        %v2140 = vrot.slane %v1530, %v2139
        %v2141 = vlaneseq
        %v2142 = vshrl.u32 %v2141, 7
        %v2143 = vsub.s32 0, %v2142
        %v2144 = vrot.slane %v1531, %v2143
        %v2153 = vmul.f32 %v2116, %v1532
        %v2154 = vmul.f32 %v2120, %v1532
        %v2155 = vmul.f32 %v2124, %v1532
        %v2156 = vmul.f32 %v2128, %v1532
        %v2157 = vmul.f32 %v2132, %v1532
        %v2158 = vmul.f32 %v2136, %v1532
        %v2159 = vmul.f32 %v2140, %v1532
        %v2160 = vmul.f32 %v2144, %v1532
        %2162 = vset.pattern.permute.xlu0 0
        %2163 = vperm.xlu0 %2162, %v2153
        %v2164 = vpop.permute.xlu0 %2163
        %2167 = vset.pattern.permute.xlu0 0
        %2168 = vperm.xlu0 %2167, %v2154
        %v2169 = vpop.permute.xlu0 %2168
        %2172 = vset.pattern.permute.xlu0 0
        %2173 = vperm.xlu0 %2172, %v2155
        %v2174 = vpop.permute.xlu0 %2173
        %2177 = vset.pattern.permute.xlu0 0
        %2178 = vperm.xlu0 %2177, %v2156
        %v2179 = vpop.permute.xlu0 %2178
        %2182 = vset.pattern.permute.xlu0 0
        %2183 = vperm.xlu0 %2182, %v2157
        %v2184 = vpop.permute.xlu0 %2183
        %2187 = vset.pattern.permute.xlu0 0
        %2188 = vperm.xlu0 %2187, %v2158
        %v2189 = vpop.permute.xlu0 %2188
        %2192 = vset.pattern.permute.xlu0 0
        %2193 = vperm.xlu0 %2192, %v2159
        %v2194 = vpop.permute.xlu0 %2193
        %2197 = vset.pattern.permute.xlu0 0
        %2198 = vperm.xlu0 %2197, %v2160
        %v2199 = vpop.permute.xlu0 %2198
        %v2201 = vmul.f32 %v2164, %v2097
        %v2202 = vmul.f32 %v2169, %v2098
        %v2203 = vmul.f32 %v2174, %v2099
        %v2204 = vmul.f32 %v2179, %v2100
        %v2205 = vmul.f32 %v2184, %v2101
        %v2206 = vmul.f32 %v2189, %v2102
        %v2207 = vmul.f32 %v2194, %v2103
        %v2208 = vmul.f32 %v2199, %v2104
        %v2209 = vadd.f32 %v2088, %v2201
        %v2210 = vadd.f32 %v2089, %v2202
        %v2211 = vadd.f32 %v2090, %v2203
        %v2212 = vadd.f32 %v2091, %v2204
        %v2213 = vadd.f32 %v2092, %v2205
        %v2214 = vadd.f32 %v2093, %v2206
        %v2215 = vadd.f32 %v2094, %v2207
        %v2216 = vadd.f32 %v2095, %v2208
        %v2217 = vld [vmem:[%s2096] sm:$0xff]
        %v2218 = vld [vmem:[%s2096 + $0x10] sm:$0xff]
        %v2219 = vld [vmem:[%s2096 + $0x20] sm:$0xff]
        %v2220 = vld [vmem:[%s2096 + $0x30] sm:$0xff]
        %v2221 = vld [vmem:[%s2096 + $0x40] sm:$0xff]
        %v2222 = vld [vmem:[%s2096 + $0x50] sm:$0xff]
        %v2223 = vld [vmem:[%s2096 + $0x60] sm:$0xff]
        %v2224 = vld [vmem:[%s2096 + $0x70] sm:$0xff]
        %v2225 = vmul.f32 %v2116, %v1533
        %v2226 = vmul.f32 %v2120, %v1533
        %v2227 = vmul.f32 %v2124, %v1533
        %v2228 = vmul.f32 %v2128, %v1533
        %v2229 = vmul.f32 %v2132, %v1533
        %v2230 = vmul.f32 %v2136, %v1533
        %v2231 = vmul.f32 %v2140, %v1533
        %v2232 = vmul.f32 %v2144, %v1533
        %2234 = vset.pattern.permute.xlu0 0
        %2235 = vperm.xlu0 %2234, %v2225
        %v2236 = vpop.permute.xlu0 %2235
        %2239 = vset.pattern.permute.xlu0 0
        %2240 = vperm.xlu0 %2239, %v2226
        %v2241 = vpop.permute.xlu0 %2240
        %2244 = vset.pattern.permute.xlu0 0
        %2245 = vperm.xlu0 %2244, %v2227
        %v2246 = vpop.permute.xlu0 %2245
        %2249 = vset.pattern.permute.xlu0 0
        %2250 = vperm.xlu0 %2249, %v2228
        %v2251 = vpop.permute.xlu0 %2250
        %2254 = vset.pattern.permute.xlu0 0
        %2255 = vperm.xlu0 %2254, %v2229
        %v2256 = vpop.permute.xlu0 %2255
        %2259 = vset.pattern.permute.xlu0 0
        %2260 = vperm.xlu0 %2259, %v2230
        %v2261 = vpop.permute.xlu0 %2260
        %2264 = vset.pattern.permute.xlu0 0
        %2265 = vperm.xlu0 %2264, %v2231
        %v2266 = vpop.permute.xlu0 %2265
        %2269 = vset.pattern.permute.xlu0 0
        %2270 = vperm.xlu0 %2269, %v2232
        %v2271 = vpop.permute.xlu0 %2270
        %v2273 = vmul.f32 %v2236, %v2217
        %v2274 = vmul.f32 %v2241, %v2218
        %v2275 = vmul.f32 %v2246, %v2219
        %v2276 = vmul.f32 %v2251, %v2220
        %v2277 = vmul.f32 %v2256, %v2221
        %v2278 = vmul.f32 %v2261, %v2222
        %v2279 = vmul.f32 %v2266, %v2223
        %v2280 = vmul.f32 %v2271, %v2224
        %v2281 = vadd.f32 %v2209, %v2273
        %v2282 = vadd.f32 %v2210, %v2274
        %v2283 = vadd.f32 %v2211, %v2275
        %v2284 = vadd.f32 %v2212, %v2276
        %v2285 = vadd.f32 %v2213, %v2277
        %v2286 = vadd.f32 %v2214, %v2278
        %v2287 = vadd.f32 %v2215, %v2279
        %v2288 = vadd.f32 %v2216, %v2280
        %v2289 = vmul.f32 %v1555, %v1534
        %v2290 = vmul.f32 %v1559, %v1534
        %v2291 = vmul.f32 %v1563, %v1534
        %v2292 = vmul.f32 %v1567, %v1534
        %v2293 = vmul.f32 %v1571, %v1534
        %v2294 = vmul.f32 %v1575, %v1534
        %v2295 = vmul.f32 %v1579, %v1534
        %v2296 = vmul.f32 %v1583, %v1534
        %2298 = vset.pattern.permute.xlu0 0
        %2299 = vperm.xlu0 %2298, %v2289
        %v2300 = vpop.permute.xlu0 %2299
        %2303 = vset.pattern.permute.xlu0 0
        %2304 = vperm.xlu0 %2303, %v2290
        %v2305 = vpop.permute.xlu0 %2304
        %2308 = vset.pattern.permute.xlu0 0
        %2309 = vperm.xlu0 %2308, %v2291
        %v2310 = vpop.permute.xlu0 %2309
        %2313 = vset.pattern.permute.xlu0 0
        %2314 = vperm.xlu0 %2313, %v2292
        %v2315 = vpop.permute.xlu0 %2314
        %2318 = vset.pattern.permute.xlu0 0
        %2319 = vperm.xlu0 %2318, %v2293
        %v2320 = vpop.permute.xlu0 %2319
        %2323 = vset.pattern.permute.xlu0 0
        %2324 = vperm.xlu0 %2323, %v2294
        %v2325 = vpop.permute.xlu0 %2324
        %2328 = vset.pattern.permute.xlu0 0
        %2329 = vperm.xlu0 %2328, %v2295
        %v2330 = vpop.permute.xlu0 %2329
        %2333 = vset.pattern.permute.xlu0 0
        %2334 = vperm.xlu0 %2333, %v2296
        %v2335 = vpop.permute.xlu0 %2334
        %v2337 = vmul.f32 %v2300, %v1536
        %v2338 = vmul.f32 %v2305, %v1537
        %v2339 = vmul.f32 %v2310, %v1538
        %v2340 = vmul.f32 %v2315, %v1539
        %v2341 = vmul.f32 %v2320, %v1540
        %v2342 = vmul.f32 %v2325, %v1541
        %v2343 = vmul.f32 %v2330, %v1542
        %v2344 = vmul.f32 %v2335, %v1543
        %v2345 = vadd.f32 %v2337, 0.0
        %v2346 = vadd.f32 %v2338, 0.0
        %v2347 = vadd.f32 %v2339, 0.0
        %v2348 = vadd.f32 %v2340, 0.0
        %v2349 = vadd.f32 %v2341, 0.0
        %v2350 = vadd.f32 %v2342, 0.0
        %v2351 = vadd.f32 %v2343, 0.0
        %v2352 = vadd.f32 %v2344, 0.0
        %v2353 = vld [vmem:[%s577 + $0x2] sm:$0xff]
        %v2354 = vld [vmem:[%s577 + $0x12] sm:$0xff]
        %v2355 = vld [vmem:[%s577 + $0x22] sm:$0xff]
        %v2356 = vld [vmem:[%s577 + $0x32] sm:$0xff]
        %v2357 = vld [vmem:[%s577 + $0x42] sm:$0xff]
        %v2358 = vld [vmem:[%s577 + $0x52] sm:$0xff]
        %v2359 = vld [vmem:[%s577 + $0x62] sm:$0xff]
        %v2360 = vld [vmem:[%s577 + $0x72] sm:$0xff]
        %v2361 = vmul.f32 %v1555, %v1535
        %v2362 = vmul.f32 %v1559, %v1535
        %v2363 = vmul.f32 %v1563, %v1535
        %v2364 = vmul.f32 %v1567, %v1535
        %v2365 = vmul.f32 %v1571, %v1535
        %v2366 = vmul.f32 %v1575, %v1535
        %v2367 = vmul.f32 %v1579, %v1535
        %v2368 = vmul.f32 %v1583, %v1535
        %2370 = vset.pattern.permute.xlu0 0
        %2371 = vperm.xlu0 %2370, %v2361
        %v2372 = vpop.permute.xlu0 %2371
        %2375 = vset.pattern.permute.xlu0 0
        %2376 = vperm.xlu0 %2375, %v2362
        %v2377 = vpop.permute.xlu0 %2376
        %2380 = vset.pattern.permute.xlu0 0
        %2381 = vperm.xlu0 %2380, %v2363
        %v2382 = vpop.permute.xlu0 %2381
        %2385 = vset.pattern.permute.xlu0 0
        %2386 = vperm.xlu0 %2385, %v2364
        %v2387 = vpop.permute.xlu0 %2386
        %2390 = vset.pattern.permute.xlu0 0
        %2391 = vperm.xlu0 %2390, %v2365
        %v2392 = vpop.permute.xlu0 %2391
        %2395 = vset.pattern.permute.xlu0 0
        %2396 = vperm.xlu0 %2395, %v2366
        %v2397 = vpop.permute.xlu0 %2396
        %2400 = vset.pattern.permute.xlu0 0
        %2401 = vperm.xlu0 %2400, %v2367
        %v2402 = vpop.permute.xlu0 %2401
        %2405 = vset.pattern.permute.xlu0 0
        %2406 = vperm.xlu0 %2405, %v2368
        %v2407 = vpop.permute.xlu0 %2406
        %v2409 = vmul.f32 %v2372, %v2353
        %v2410 = vmul.f32 %v2377, %v2354
        %v2411 = vmul.f32 %v2382, %v2355
        %v2412 = vmul.f32 %v2387, %v2356
        %v2413 = vmul.f32 %v2392, %v2357
        %v2414 = vmul.f32 %v2397, %v2358
        %v2415 = vmul.f32 %v2402, %v2359
        %v2416 = vmul.f32 %v2407, %v2360
        %v2417 = vadd.f32 %v2345, %v2409
        %v2418 = vadd.f32 %v2346, %v2410
        %v2419 = vadd.f32 %v2347, %v2411
        %v2420 = vadd.f32 %v2348, %v2412
        %v2421 = vadd.f32 %v2349, %v2413
        %v2422 = vadd.f32 %v2350, %v2414
        %v2423 = vadd.f32 %v2351, %v2415
        %v2424 = vadd.f32 %v2352, %v2416
        %v2425 = vmul.f32 %v1747, %v1534
        %v2426 = vmul.f32 %v1751, %v1534
        %v2427 = vmul.f32 %v1755, %v1534
        %v2428 = vmul.f32 %v1759, %v1534
        %v2429 = vmul.f32 %v1763, %v1534
        %v2430 = vmul.f32 %v1767, %v1534
        %v2431 = vmul.f32 %v1771, %v1534
        %v2432 = vmul.f32 %v1775, %v1534
        %2434 = vset.pattern.permute.xlu0 0
        %2435 = vperm.xlu0 %2434, %v2425
        %v2436 = vpop.permute.xlu0 %2435
        %2439 = vset.pattern.permute.xlu0 0
        %2440 = vperm.xlu0 %2439, %v2426
        %v2441 = vpop.permute.xlu0 %2440
        %2444 = vset.pattern.permute.xlu0 0
        %2445 = vperm.xlu0 %2444, %v2427
        %v2446 = vpop.permute.xlu0 %2445
        %2449 = vset.pattern.permute.xlu0 0
        %2450 = vperm.xlu0 %2449, %v2428
        %v2451 = vpop.permute.xlu0 %2450
        %2454 = vset.pattern.permute.xlu0 0
        %2455 = vperm.xlu0 %2454, %v2429
        %v2456 = vpop.permute.xlu0 %2455
        %2459 = vset.pattern.permute.xlu0 0
        %2460 = vperm.xlu0 %2459, %v2430
        %v2461 = vpop.permute.xlu0 %2460
        %2464 = vset.pattern.permute.xlu0 0
        %2465 = vperm.xlu0 %2464, %v2431
        %v2466 = vpop.permute.xlu0 %2465
        %2469 = vset.pattern.permute.xlu0 0
        %2470 = vperm.xlu0 %2469, %v2432
        %v2471 = vpop.permute.xlu0 %2470
        %v2473 = vmul.f32 %v2436, %v1728
        %v2474 = vmul.f32 %v2441, %v1729
        %v2475 = vmul.f32 %v2446, %v1730
        %v2476 = vmul.f32 %v2451, %v1731
        %v2477 = vmul.f32 %v2456, %v1732
        %v2478 = vmul.f32 %v2461, %v1733
        %v2479 = vmul.f32 %v2466, %v1734
        %v2480 = vmul.f32 %v2471, %v1735
        %v2481 = vadd.f32 %v2417, %v2473
        %v2482 = vadd.f32 %v2418, %v2474
        %v2483 = vadd.f32 %v2419, %v2475
        %v2484 = vadd.f32 %v2420, %v2476
        %v2485 = vadd.f32 %v2421, %v2477
        %v2486 = vadd.f32 %v2422, %v2478
        %v2487 = vadd.f32 %v2423, %v2479
        %v2488 = vadd.f32 %v2424, %v2480
        %v2489 = vld [vmem:[#allocation3 + $0x2] sm:$0xff]
        %v2490 = vld [vmem:[#allocation3 + $0x12] sm:$0xff]
        %v2491 = vld [vmem:[#allocation3 + $0x22] sm:$0xff]
        %v2492 = vld [vmem:[#allocation3 + $0x32] sm:$0xff]
        %v2493 = vld [vmem:[#allocation3 + $0x42] sm:$0xff]
        %v2494 = vld [vmem:[#allocation3 + $0x52] sm:$0xff]
        %v2495 = vld [vmem:[#allocation3 + $0x62] sm:$0xff]
        %v2496 = vld [vmem:[#allocation3 + $0x72] sm:$0xff]
        %v2497 = vmul.f32 %v1747, %v1535
        %v2498 = vmul.f32 %v1751, %v1535
        %v2499 = vmul.f32 %v1755, %v1535
        %v2500 = vmul.f32 %v1759, %v1535
        %v2501 = vmul.f32 %v1763, %v1535
        %v2502 = vmul.f32 %v1767, %v1535
        %v2503 = vmul.f32 %v1771, %v1535
        %v2504 = vmul.f32 %v1775, %v1535
        %2506 = vset.pattern.permute.xlu0 0
        %2507 = vperm.xlu0 %2506, %v2497
        %v2508 = vpop.permute.xlu0 %2507
        %2511 = vset.pattern.permute.xlu0 0
        %2512 = vperm.xlu0 %2511, %v2498
        %v2513 = vpop.permute.xlu0 %2512
        %2516 = vset.pattern.permute.xlu0 0
        %2517 = vperm.xlu0 %2516, %v2499
        %v2518 = vpop.permute.xlu0 %2517
        %2521 = vset.pattern.permute.xlu0 0
        %2522 = vperm.xlu0 %2521, %v2500
        %v2523 = vpop.permute.xlu0 %2522
        %2526 = vset.pattern.permute.xlu0 0
        %2527 = vperm.xlu0 %2526, %v2501
        %v2528 = vpop.permute.xlu0 %2527
        %2531 = vset.pattern.permute.xlu0 0
        %2532 = vperm.xlu0 %2531, %v2502
        %v2533 = vpop.permute.xlu0 %2532
        %2536 = vset.pattern.permute.xlu0 0
        %2537 = vperm.xlu0 %2536, %v2503
        %v2538 = vpop.permute.xlu0 %2537
        %2541 = vset.pattern.permute.xlu0 0
        %2542 = vperm.xlu0 %2541, %v2504
        %v2543 = vpop.permute.xlu0 %2542
        %v2545 = vmul.f32 %v2508, %v2489
        %v2546 = vmul.f32 %v2513, %v2490
        %v2547 = vmul.f32 %v2518, %v2491
        %v2548 = vmul.f32 %v2523, %v2492
        %v2549 = vmul.f32 %v2528, %v2493
        %v2550 = vmul.f32 %v2533, %v2494
        %v2551 = vmul.f32 %v2538, %v2495
        %v2552 = vmul.f32 %v2543, %v2496
        %v2553 = vadd.f32 %v2481, %v2545
        %v2554 = vadd.f32 %v2482, %v2546
        %v2555 = vadd.f32 %v2483, %v2547
        %v2556 = vadd.f32 %v2484, %v2548
        %v2557 = vadd.f32 %v2485, %v2549
        %v2558 = vadd.f32 %v2486, %v2550
        %v2559 = vadd.f32 %v2487, %v2551
        %v2560 = vadd.f32 %v2488, %v2552
        %v2561 = vmul.f32 %v1931, %v1534
        %v2562 = vmul.f32 %v1935, %v1534
        %v2563 = vmul.f32 %v1939, %v1534
        %v2564 = vmul.f32 %v1943, %v1534
        %v2565 = vmul.f32 %v1947, %v1534
        %v2566 = vmul.f32 %v1951, %v1534
        %v2567 = vmul.f32 %v1955, %v1534
        %v2568 = vmul.f32 %v1959, %v1534
        %2570 = vset.pattern.permute.xlu0 0
        %2571 = vperm.xlu0 %2570, %v2561
        %v2572 = vpop.permute.xlu0 %2571
        %2575 = vset.pattern.permute.xlu0 0
        %2576 = vperm.xlu0 %2575, %v2562
        %v2577 = vpop.permute.xlu0 %2576
        %2580 = vset.pattern.permute.xlu0 0
        %2581 = vperm.xlu0 %2580, %v2563
        %v2582 = vpop.permute.xlu0 %2581
        %2585 = vset.pattern.permute.xlu0 0
        %2586 = vperm.xlu0 %2585, %v2564
        %v2587 = vpop.permute.xlu0 %2586
        %2590 = vset.pattern.permute.xlu0 0
        %2591 = vperm.xlu0 %2590, %v2565
        %v2592 = vpop.permute.xlu0 %2591
        %2595 = vset.pattern.permute.xlu0 0
        %2596 = vperm.xlu0 %2595, %v2566
        %v2597 = vpop.permute.xlu0 %2596
        %2600 = vset.pattern.permute.xlu0 0
        %2601 = vperm.xlu0 %2600, %v2567
        %v2602 = vpop.permute.xlu0 %2601
        %2605 = vset.pattern.permute.xlu0 0
        %2606 = vperm.xlu0 %2605, %v2568
        %v2607 = vpop.permute.xlu0 %2606
        %v2609 = vmul.f32 %v2572, %v1536
        %v2610 = vmul.f32 %v2577, %v1537
        %v2611 = vmul.f32 %v2582, %v1538
        %v2612 = vmul.f32 %v2587, %v1539
        %v2613 = vmul.f32 %v2592, %v1540
        %v2614 = vmul.f32 %v2597, %v1541
        %v2615 = vmul.f32 %v2602, %v1542
        %v2616 = vmul.f32 %v2607, %v1543
        %v2617 = vadd.f32 %v2609, 0.0
        %v2618 = vadd.f32 %v2610, 0.0
        %v2619 = vadd.f32 %v2611, 0.0
        %v2620 = vadd.f32 %v2612, 0.0
        %v2621 = vadd.f32 %v2613, 0.0
        %v2622 = vadd.f32 %v2614, 0.0
        %v2623 = vadd.f32 %v2615, 0.0
        %v2624 = vadd.f32 %v2616, 0.0
        %v2625 = vmul.f32 %v1931, %v1535
        %v2626 = vmul.f32 %v1935, %v1535
        %v2627 = vmul.f32 %v1939, %v1535
        %v2628 = vmul.f32 %v1943, %v1535
        %v2629 = vmul.f32 %v1947, %v1535
        %v2630 = vmul.f32 %v1951, %v1535
        %v2631 = vmul.f32 %v1955, %v1535
        %v2632 = vmul.f32 %v1959, %v1535
        %2634 = vset.pattern.permute.xlu0 0
        %2635 = vperm.xlu0 %2634, %v2625
        %v2636 = vpop.permute.xlu0 %2635
        %2639 = vset.pattern.permute.xlu0 0
        %2640 = vperm.xlu0 %2639, %v2626
        %v2641 = vpop.permute.xlu0 %2640
        %2644 = vset.pattern.permute.xlu0 0
        %2645 = vperm.xlu0 %2644, %v2627
        %v2646 = vpop.permute.xlu0 %2645
        %2649 = vset.pattern.permute.xlu0 0
        %2650 = vperm.xlu0 %2649, %v2628
        %v2651 = vpop.permute.xlu0 %2650
        %2654 = vset.pattern.permute.xlu0 0
        %2655 = vperm.xlu0 %2654, %v2629
        %v2656 = vpop.permute.xlu0 %2655
        %2659 = vset.pattern.permute.xlu0 0
        %2660 = vperm.xlu0 %2659, %v2630
        %v2661 = vpop.permute.xlu0 %2660
        %2664 = vset.pattern.permute.xlu0 0
        %2665 = vperm.xlu0 %2664, %v2631
        %v2666 = vpop.permute.xlu0 %2665
        %2669 = vset.pattern.permute.xlu0 0
        %2670 = vperm.xlu0 %2669, %v2632
        %v2671 = vpop.permute.xlu0 %2670
        %v2673 = vmul.f32 %v2636, %v2353
        %v2674 = vmul.f32 %v2641, %v2354
        %v2675 = vmul.f32 %v2646, %v2355
        %v2676 = vmul.f32 %v2651, %v2356
        %v2677 = vmul.f32 %v2656, %v2357
        %v2678 = vmul.f32 %v2661, %v2358
        %v2679 = vmul.f32 %v2666, %v2359
        %v2680 = vmul.f32 %v2671, %v2360
        %v2681 = vadd.f32 %v2617, %v2673
        %v2682 = vadd.f32 %v2618, %v2674
        %v2683 = vadd.f32 %v2619, %v2675
        %v2684 = vadd.f32 %v2620, %v2676
        %v2685 = vadd.f32 %v2621, %v2677
        %v2686 = vadd.f32 %v2622, %v2678
        %v2687 = vadd.f32 %v2623, %v2679
        %v2688 = vadd.f32 %v2624, %v2680
        %v2689 = vmul.f32 %v2116, %v1534
        %v2690 = vmul.f32 %v2120, %v1534
        %v2691 = vmul.f32 %v2124, %v1534
        %v2692 = vmul.f32 %v2128, %v1534
        %v2693 = vmul.f32 %v2132, %v1534
        %v2694 = vmul.f32 %v2136, %v1534
        %v2695 = vmul.f32 %v2140, %v1534
        %v2696 = vmul.f32 %v2144, %v1534
        %2698 = vset.pattern.permute.xlu0 0
        %2699 = vperm.xlu0 %2698, %v2689
        %v2700 = vpop.permute.xlu0 %2699
        %2703 = vset.pattern.permute.xlu0 0
        %2704 = vperm.xlu0 %2703, %v2690
        %v2705 = vpop.permute.xlu0 %2704
        %2708 = vset.pattern.permute.xlu0 0
        %2709 = vperm.xlu0 %2708, %v2691
        %v2710 = vpop.permute.xlu0 %2709
        %2713 = vset.pattern.permute.xlu0 0
        %2714 = vperm.xlu0 %2713, %v2692
        %v2715 = vpop.permute.xlu0 %2714
        %2718 = vset.pattern.permute.xlu0 0
        %2719 = vperm.xlu0 %2718, %v2693
        %v2720 = vpop.permute.xlu0 %2719
        %2723 = vset.pattern.permute.xlu0 0
        %2724 = vperm.xlu0 %2723, %v2694
        %v2725 = vpop.permute.xlu0 %2724
        %2728 = vset.pattern.permute.xlu0 0
        %2729 = vperm.xlu0 %2728, %v2695
        %v2730 = vpop.permute.xlu0 %2729
        %2733 = vset.pattern.permute.xlu0 0
        %2734 = vperm.xlu0 %2733, %v2696
        %v2735 = vpop.permute.xlu0 %2734
        %v2737 = vmul.f32 %v2700, %v2097
        %v2738 = vmul.f32 %v2705, %v2098
        %v2739 = vmul.f32 %v2710, %v2099
        %v2740 = vmul.f32 %v2715, %v2100
        %v2741 = vmul.f32 %v2720, %v2101
        %v2742 = vmul.f32 %v2725, %v2102
        %v2743 = vmul.f32 %v2730, %v2103
        %v2744 = vmul.f32 %v2735, %v2104
        %v2745 = vadd.f32 %v2681, %v2737
        %v2746 = vadd.f32 %v2682, %v2738
        %v2747 = vadd.f32 %v2683, %v2739
        %v2748 = vadd.f32 %v2684, %v2740
        %v2749 = vadd.f32 %v2685, %v2741
        %v2750 = vadd.f32 %v2686, %v2742
        %v2751 = vadd.f32 %v2687, %v2743
        %v2752 = vadd.f32 %v2688, %v2744
        %v2753 = vld [vmem:[%s2096 + $0x2] sm:$0xff]
        %v2754 = vld [vmem:[%s2096 + $0x12] sm:$0xff]
        %v2755 = vld [vmem:[%s2096 + $0x22] sm:$0xff]
        %v2756 = vld [vmem:[%s2096 + $0x32] sm:$0xff]
        %v2757 = vld [vmem:[%s2096 + $0x42] sm:$0xff]
        %v2758 = vld [vmem:[%s2096 + $0x52] sm:$0xff]
        %v2759 = vld [vmem:[%s2096 + $0x62] sm:$0xff]
        %v2760 = vld [vmem:[%s2096 + $0x72] sm:$0xff]
        %v2761 = vmul.f32 %v2116, %v1535
        %v2762 = vmul.f32 %v2120, %v1535
        %v2763 = vmul.f32 %v2124, %v1535
        %v2764 = vmul.f32 %v2128, %v1535
        %v2765 = vmul.f32 %v2132, %v1535
        %v2766 = vmul.f32 %v2136, %v1535
        %v2767 = vmul.f32 %v2140, %v1535
        %v2768 = vmul.f32 %v2144, %v1535
        %2770 = vset.pattern.permute.xlu0 0
        %2771 = vperm.xlu0 %2770, %v2761
        %v2772 = vpop.permute.xlu0 %2771
        %2775 = vset.pattern.permute.xlu0 0
        %2776 = vperm.xlu0 %2775, %v2762
        %v2777 = vpop.permute.xlu0 %2776
        %2780 = vset.pattern.permute.xlu0 0
        %2781 = vperm.xlu0 %2780, %v2763
        %v2782 = vpop.permute.xlu0 %2781
        %2785 = vset.pattern.permute.xlu0 0
        %2786 = vperm.xlu0 %2785, %v2764
        %v2787 = vpop.permute.xlu0 %2786
        %2790 = vset.pattern.permute.xlu0 0
        %2791 = vperm.xlu0 %2790, %v2765
        %v2792 = vpop.permute.xlu0 %2791
        %2795 = vset.pattern.permute.xlu0 0
        %2796 = vperm.xlu0 %2795, %v2766
        %v2797 = vpop.permute.xlu0 %2796
        %2800 = vset.pattern.permute.xlu0 0
        %2801 = vperm.xlu0 %2800, %v2767
        %v2802 = vpop.permute.xlu0 %2801
        %2805 = vset.pattern.permute.xlu0 0
        %2806 = vperm.xlu0 %2805, %v2768
        %v2807 = vpop.permute.xlu0 %2806
        %v2809 = vmul.f32 %v2772, %v2753
        %v2810 = vmul.f32 %v2777, %v2754
        %v2811 = vmul.f32 %v2782, %v2755
        %v2812 = vmul.f32 %v2787, %v2756
        %v2813 = vmul.f32 %v2792, %v2757
        %v2814 = vmul.f32 %v2797, %v2758
        %v2815 = vmul.f32 %v2802, %v2759
        %v2816 = vmul.f32 %v2807, %v2760
        %v2817 = vadd.f32 %v2745, %v2809
        %v2818 = vadd.f32 %v2746, %v2810
        %v2819 = vadd.f32 %v2747, %v2811
        %v2820 = vadd.f32 %v2748, %v2812
        %v2821 = vadd.f32 %v2749, %v2813
        %v2822 = vadd.f32 %v2750, %v2814
        %v2823 = vadd.f32 %v2751, %v2815
        %v2824 = vadd.f32 %v2752, %v2816
        %v2825 = vld [vmem:[%s465] sm:$0xff]
        %v2826 = vld [vmem:[%s465 + $0x8] sm:$0xff]
        %v2827 = vld [vmem:[%s465 + $0x10] sm:$0xff]
        %v2828 = vld [vmem:[%s465 + $0x18] sm:$0xff]
        %v2829 = vld [vmem:[%s465 + $0x20] sm:$0xff]
        %v2830 = vld [vmem:[%s465 + $0x28] sm:$0xff]
        %v2831 = vld [vmem:[%s465 + $0x30] sm:$0xff]
        %v2832 = vld [vmem:[%s465 + $0x38] sm:$0xff]
        %2841 = vrot.lane.b32.xlu0 %v2281, 8
        %v2842 = vpop.permute.xlu0 %2841
        %2843 = vrot.lane.b32.xlu0 %v2282, 8
        %v2844 = vpop.permute.xlu0 %2843
        %2845 = vrot.lane.b32.xlu0 %v2283, 8
        %v2846 = vpop.permute.xlu0 %2845
        %2847 = vrot.lane.b32.xlu0 %v2284, 8
        %v2848 = vpop.permute.xlu0 %2847
        %2849 = vrot.lane.b32.xlu0 %v2285, 8
        %v2850 = vpop.permute.xlu0 %2849
        %2851 = vrot.lane.b32.xlu0 %v2286, 8
        %v2852 = vpop.permute.xlu0 %2851
        %2853 = vrot.lane.b32.xlu0 %v2287, 8
        %v2854 = vpop.permute.xlu0 %2853
        %2855 = vrot.lane.b32.xlu0 %v2288, 8
        %v2856 = vpop.permute.xlu0 %2855
        %2873 = vrot.lane.b32.xlu0 %v2553, 16
        %v2874 = vpop.permute.xlu0 %2873
        %2875 = vrot.lane.b32.xlu0 %v2554, 16
        %v2876 = vpop.permute.xlu0 %2875
        %2877 = vrot.lane.b32.xlu0 %v2555, 16
        %v2878 = vpop.permute.xlu0 %2877
        %2879 = vrot.lane.b32.xlu0 %v2556, 16
        %v2880 = vpop.permute.xlu0 %2879
        %2881 = vrot.lane.b32.xlu0 %v2557, 16
        %v2882 = vpop.permute.xlu0 %2881
        %2883 = vrot.lane.b32.xlu0 %v2558, 16
        %v2884 = vpop.permute.xlu0 %2883
        %2885 = vrot.lane.b32.xlu0 %v2559, 16
        %v2886 = vpop.permute.xlu0 %2885
        %2887 = vrot.lane.b32.xlu0 %v2560, 16
        %v2888 = vpop.permute.xlu0 %2887
        %2905 = vrot.lane.b32.xlu0 %v2817, 24
        %v2906 = vpop.permute.xlu0 %2905
        %2907 = vrot.lane.b32.xlu0 %v2818, 24
        %v2908 = vpop.permute.xlu0 %2907
        %2909 = vrot.lane.b32.xlu0 %v2819, 24
        %v2910 = vpop.permute.xlu0 %2909
        %2911 = vrot.lane.b32.xlu0 %v2820, 24
        %v2912 = vpop.permute.xlu0 %2911
        %2913 = vrot.lane.b32.xlu0 %v2821, 24
        %v2914 = vpop.permute.xlu0 %2913
        %2915 = vrot.lane.b32.xlu0 %v2822, 24
        %v2916 = vpop.permute.xlu0 %2915
        %2917 = vrot.lane.b32.xlu0 %v2823, 24
        %v2918 = vpop.permute.xlu0 %2917
        %2919 = vrot.lane.b32.xlu0 %v2824, 24
        %v2920 = vpop.permute.xlu0 %2919
        %v2929 = vsel %vm570, %v1912, %v2842
        %v2930 = vsel %vm570, %v1913, %v2844
        %v2931 = vsel %vm570, %v1914, %v2846
        %v2932 = vsel %vm570, %v1915, %v2848
        %v2933 = vsel %vm570, %v1916, %v2850
        %v2934 = vsel %vm570, %v1917, %v2852
        %v2935 = vsel %vm570, %v1918, %v2854
        %v2936 = vsel %vm570, %v1919, %v2856
        %vm2937 = vcmask 130048
        %v2938 = vsel %vm2937, %v2929, %v2874
        %v2939 = vsel %vm2937, %v2930, %v2876
        %v2940 = vsel %vm2937, %v2931, %v2878
        %v2941 = vsel %vm2937, %v2932, %v2880
        %v2942 = vsel %vm2937, %v2933, %v2882
        %v2943 = vsel %vm2937, %v2934, %v2884
        %v2944 = vsel %vm2937, %v2935, %v2886
        %v2945 = vsel %vm2937, %v2936, %v2888
        %vm2946 = vcmask 195584
        %v2947 = vsel %vm2946, %v2938, %v2906
        %v2948 = vsel %vm2946, %v2939, %v2908
        %v2949 = vsel %vm2946, %v2940, %v2910
        %v2950 = vsel %vm2946, %v2941, %v2912
        %v2951 = vsel %vm2946, %v2942, %v2914
        %v2952 = vsel %vm2946, %v2943, %v2916
        %v2953 = vsel %vm2946, %v2944, %v2918
        %v2954 = vsel %vm2946, %v2945, %v2920
        %v2955 = vmul.f32 %v2825, %v2947
        %v2956 = vmul.f32 %v2826, %v2948
        %v2957 = vmul.f32 %v2827, %v2949
        %v2958 = vmul.f32 %v2828, %v2950
        %v2959 = vmul.f32 %v2829, %v2951
        %v2960 = vmul.f32 %v2830, %v2952
        %v2961 = vmul.f32 %v2831, %v2953
        %v2962 = vmul.f32 %v2832, %v2954
        %2963 = vst.msk [vmem:[%s543] sm:$0xff] %vm545, %v2955
        %2964 = vst.msk [vmem:[%s543 + $0x8] sm:$0xff] %vm545, %v2956
        %2965 = vst.msk [vmem:[%s543 + $0x10] sm:$0xff] %vm545, %v2957
        %2966 = vst.msk [vmem:[%s543 + $0x18] sm:$0xff] %vm545, %v2958
        %2967 = vst.msk [vmem:[%s543 + $0x20] sm:$0xff] %vm545, %v2959
        %2968 = vst.msk [vmem:[%s543 + $0x28] sm:$0xff] %vm545, %v2960
        %2969 = vst.msk [vmem:[%s543 + $0x30] sm:$0xff] %vm545, %v2961
        %2970 = vst.msk [vmem:[%s543 + $0x38] sm:$0xff] %vm545, %v2962
        %s2971 = sand.u32 %s277, 1
        %s2972 = scalar_lea.sflag [#allocation6], %s2971
        %s2973 = sand.u32 %s277, 1
        %s2974 = smul.addr %s2973, 64
        %s2975 = scalar_lea.vmem [#allocation22], %s2974
        // Predicated region
        $region109: #{mcsa_layer.1} parent=63 // pred_check
          %p2976 = pneg %p287
        $region110: #{mcsa_layer.1} parent=63 // pred_check_branch
          %2978 = sbr.rel (%p2976) target = $region112
        $region111: #{mcsa_layer.1} parent=63 // pred_region
          %s2980 = ssub.s32 1024, 1024
          %2981 = vsyncadd %s2972, %s2980
          %s2982 = smul.addr %s33, 8
          %s2983 = smul.addr %s2982, 128
          %s2984 = scalar_lea.hbm %s11, %s2983
          %s2985 = sshll.u32 %s2975, 4
          %s2986 = int_to_ptr.vmem [resolvable:$true] %s2985
          %2991 = dma.vmem_to_hbm [thread:$0]  %s2986, 1024, %s2984, %s2972, 128, 128, 8
        $region112: #{mcsa_layer.1} parent=63 // pred_fallthru
          _
      $region64: #{mcsa_layer.1} parent=5 // pred_fallthru
        _
      %p2992 = scmp.le.s32.totalorder 2, %s28
      // Predicated region
      $region113: #{mcsa_layer.1} parent=5 // pred_check
        %p2993 = pneg %p2992
      $region114: #{mcsa_layer.1} parent=5 // pred_check_branch
        %2995 = sbr.rel (%p2993) target = $region116
      $region115: #{mcsa_layer.1} parent=5 // pred_region
        %s2996 = ssub.s32 %s28, 2
        // Predicated region
        $region117: #{mcsa_layer.1} parent=115 // pred_check
          %p2997 = pneg %p293
        $region118: #{mcsa_layer.1} parent=115 // pred_check_branch
          %2999 = sbr.rel (%p2997) target = $region120
        $region119: #{mcsa_layer.1} parent=115 // pred_region
          %s3000 = sand.u32 %s278, 1
          %s3001 = scalar_lea.sflag [#allocation6], %s3000
          %s3002 = sand.u32 %s278, 1
          %s3003 = smul.addr %s3002, 64
          %s3004 = scalar_lea.vmem [#allocation22], %s3003
          %3005 = dma.done %s3001, 1024
        $region120: #{mcsa_layer.1} parent=115 // pred_fallthru
          _
      $region116: #{mcsa_layer.1} parent=5 // pred_fallthru
        _
    $region6: #{mcsa_layer.1} parent=1 // loop_footer
      %s32 = sadd.s32 1, %s28
    $region7: #{mcsa_layer.1} parent=1 // loop_footer_branch
      %27 = sbr.rel target = $region3
    $region8: #{mcsa_layer.1} parent=1 // loop_exit
      _
    %3006 = vsyncpa [#allocation5], 1
    %s3007 = scalar_lea.sflag [#allocation5], 1
    %3008 = vsyncpa %s3007, 1
    %3009 = vsyncpa [#allocation8], 1
    %3010 = vsyncpa [#allocation11], 1
    %3011 = vsyncpa [#allocation14], 1
    %3012 = vsyncpa [#allocation17], 1
    %3013 = vsyncpa [#allocation20], 1
    %3014 = vsyncpa [#allocation6], 1
    %s3015 = scalar_lea.sflag [#allocation6], 1
    %3016 = vsyncpa %s3015, 1

</llo_original>
